<compile_context>
chip_gen: v5e
topology: v5e:2x2
jax: 0.10.0
libtpu: 0.0.40
codegen_flags: <defaults>
</compile_context>

<pallas_src>
import jax
import jax.numpy as jnp
from jax.experimental import pallas as pl
from jax.experimental.pallas import tpu as pltpu

FEATURE_LENGTH = 256   # module leaves this as a global; synthetic choice
HIDDEN = 2048
OUT = 40
OUT_PAD = 128          # lane-dense padded width for layer3's output
TN2 = 512              # layer-2 output-column slab width (grid = HIDDEN // TN2)


def _fused_mlp_kernel(x_ref, w1_ref, b1_ref, w2_ref, b2_ref, w3_ref, b3_ref,
                      o_ref, h1_ref, acc3_ref):
    """Fused 3-layer MLP.

    Grid axis 0 walks layer2's output columns (== layer3's reduction rows)
    in TN2-wide slabs.  Layer1 runs once at step 0 and its activation stays
    in VMEM scratch; layer3 accumulates into a bias-initialized f32 scratch
    that is stored (lane-dense, padded) at the last step.
    """
    j = pl.program_id(0)

    @pl.when(j == 0)
    def _():
        h1 = jnp.dot(x_ref[...], w1_ref[...],
                     preferred_element_type=jnp.float32)
        h1 = jnp.maximum(h1 + b1_ref[...], 0.0)
        h1_ref[...] = h1.astype(jnp.bfloat16)
        # Initialize the layer-3 accumulator with the (padded) bias.
        acc3_ref[...] = jnp.broadcast_to(b3_ref[...], acc3_ref.shape)

    h2 = jnp.dot(h1_ref[...], w2_ref[...],
                 preferred_element_type=jnp.float32)
    h2 = jnp.maximum(h2 + b2_ref[...], 0.0)
    acc3_ref[...] += jnp.dot(h2.astype(jnp.bfloat16), w3_ref[...],
                             preferred_element_type=jnp.float32)

    @pl.when(j == pl.num_programs(0) - 1)
    def _():
        o_ref[...] = acc3_ref[...]


def fused_feedforward(x_bf16, w1, b1, w2, b2, w3p, b3p):
    M, K = x_bf16.shape
    assert K == FEATURE_LENGTH
    assert w1.shape == (FEATURE_LENGTH, HIDDEN)
    assert w2.shape == (HIDDEN, HIDDEN)
    assert w3p.shape == (HIDDEN, OUT_PAD)
    assert HIDDEN % TN2 == 0
    grid = (HIDDEN // TN2,)

    return pl.pallas_call(
        _fused_mlp_kernel,
        out_shape=jax.ShapeDtypeStruct((M, OUT_PAD), jnp.float32),
        grid_spec=pltpu.PrefetchScalarGridSpec(
            num_scalar_prefetch=0,
            grid=grid,
            in_specs=[
                pl.BlockSpec((M, FEATURE_LENGTH), lambda j: (0, 0)),       # x (resident)
                pl.BlockSpec((FEATURE_LENGTH, HIDDEN), lambda j: (0, 0)),  # w1 (resident)
                pl.BlockSpec((1, HIDDEN), lambda j: (0, 0)),               # b1 (resident)
                pl.BlockSpec((HIDDEN, TN2), lambda j: (0, j)),             # w2 column slab
                pl.BlockSpec((1, TN2), lambda j: (0, j)),                  # b2 slab
                pl.BlockSpec((TN2, OUT_PAD), lambda j: (j, 0)),            # w3 row slab
                pl.BlockSpec((1, OUT_PAD), lambda j: (0, 0)),              # b3 (resident)
            ],
            out_specs=pl.BlockSpec((M, OUT_PAD), lambda j: (0, 0)),
            scratch_shapes=[
                pltpu.VMEM((M, HIDDEN), jnp.bfloat16),   # h1 activation
                pltpu.VMEM((M, OUT_PAD), jnp.float32),   # layer-3 accumulator
            ],
        ),
        compiler_params=pltpu.CompilerParams(
            # The single grid axis is layer3's reduction -> must be arbitrary.
            dimension_semantics=("arbitrary",),
            vmem_limit_bytes=32 * 1024 * 1024,
        ),
    )(x_bf16, w1, b1, w2, b2, w3p, b3p)


def init_params(key):
    """Deterministic init mirroring nn.Linear shapes (stored transposed, f32)."""
    def linear_init(k, fan_in, fan_out):
        kw, kb = jax.random.split(k)
        bound = 1.0 / jnp.sqrt(fan_in)
        w = jax.random.uniform(kw, (fan_in, fan_out), jnp.float32, -bound, bound)
        b = jax.random.uniform(kb, (fan_out,), jnp.float32, -bound, bound)
        return w, b

    k1, k2, k3 = jax.random.split(key, 3)
    return {
        "layer1": linear_init(k1, FEATURE_LENGTH, HIDDEN),
        "layer2": linear_init(k2, HIDDEN, HIDDEN),
        "layer3": linear_init(k3, HIDDEN, OUT),
    }


def prepare_params(params):
    """One-time conversion: weights -> bf16 (halves HBM streaming), biases as
    f32 row vectors, layer3 zero-padded to OUT_PAD lane-dense columns."""
    w1, b1 = params["layer1"]
    w2, b2 = params["layer2"]
    w3, b3 = params["layer3"]
    w3p = jnp.zeros((HIDDEN, OUT_PAD), jnp.float32).at[:, :OUT].set(w3)
    b3p = jnp.zeros((OUT_PAD,), jnp.float32).at[:OUT].set(b3)
    return {
        "w1": w1.astype(jnp.bfloat16), "b1": b1.reshape(1, HIDDEN),
        "w2": w2.astype(jnp.bfloat16), "b2": b2.reshape(1, HIDDEN),
        "w3": w3p.astype(jnp.bfloat16), "b3": b3p.reshape(1, OUT_PAD),
    }


def single_frame_feedforward(prepared, x, C=None):
    # C is unused in the PyTorch forward; kept for signature parity.
    out_pad = fused_feedforward(
        x.astype(jnp.bfloat16),
        prepared["w1"], prepared["b1"],
        prepared["w2"], prepared["b2"],
        prepared["w3"], prepared["b3"],
    )
    return out_pad[:, :OUT]


def _reference_f32(params, x):
    w1, b1 = params["layer1"]
    w2, b2 = params["layer2"]
    w3, b3 = params["layer3"]
    h = jnp.maximum(x @ w1 + b1, 0.0)
    h = jnp.maximum(h @ w2 + b2, 0.0)
    return h @ w3 + b3


def _reference_bf16(params, x):
    """Reference that mirrors the kernel's bf16-weight / f32-accumulate math."""
    bf = jnp.bfloat16
    w1, b1 = params["layer1"]
    w2, b2 = params["layer2"]
    w3, b3 = params["layer3"]
    h = jnp.dot(x.astype(bf), w1.astype(bf),
                preferred_element_type=jnp.float32) + b1
    h = jnp.maximum(h, 0.0).astype(bf)
    h = jnp.dot(h, w2.astype(bf),
                preferred_element_type=jnp.float32) + b2
    h = jnp.maximum(h, 0.0).astype(bf)
    return jnp.dot(h, w3.astype(bf),
                   preferred_element_type=jnp.float32) + b3


if __name__ == "__main__":
    key = jax.random.PRNGKey(0)
    kp, kx = jax.random.split(key)

    params = init_params(kp)
    prepared = prepare_params(params)

    B = 8
    x = jax.random.normal(kx, (B, FEATURE_LENGTH), jnp.float32)
    C = None  # unused, as in the PyTorch forward

    out = single_frame_feedforward(prepared, x, C)
    out = jax.block_until_ready(out)
    assert out.shape == (B, OUT), out.shape

    # Tight check against a reference using identical bf16-rounded weights.
    ref_bf16 = _reference_bf16(params, x)
    assert jnp.allclose(out, ref_bf16, atol=1e-3, rtol=1e-3), \
        "mismatch vs bf16-consistent reference"

    # Looser semantic check against the pure-f32 PyTorch-equivalent forward.
    ref_f32 = _reference_f32(params, x)
    assert jnp.allclose(out, ref_f32, atol=5e-2, rtol=5e-2), \
        "mismatch vs f32 reference"

    print("KERNEL_OK")
</pallas_src>

<mosaic_0001>
module attributes {stable_mosaic.version = 11 : i64} {
  func.func @_fused_mlp_kernel(%arg0: i32, %arg1: memref<8x256xbf16, #tpu.memory_space<vmem>>, %arg2: memref<256x2048xbf16, #tpu.memory_space<vmem>>, %arg3: memref<1x2048xf32, #tpu.memory_space<vmem>>, %arg4: memref<2048x512xbf16, #tpu.memory_space<vmem>>, %arg5: memref<1x512xf32, #tpu.memory_space<vmem>>, %arg6: memref<512x128xbf16, #tpu.memory_space<vmem>>, %arg7: memref<1x128xf32, #tpu.memory_space<vmem>>, %arg8: memref<8x128xf32, #tpu.memory_space<vmem>>, %arg9: memref<8x2048xbf16, #tpu.memory_space<vmem>>, %arg10: memref<8x128xf32, #tpu.memory_space<vmem>>) attributes {dimension_semantics = [#tpu.dimension_semantics<arbitrary>], iteration_bounds = array<i64: 4>, scalar_prefetch = 0 : i64, scratch_operands = 2 : i64, tpu.core_type = #tpu.core_type<tc>, window_params = [{pipeline_mode = #tpu.pipeline_mode<synchronous>, transform_indices = @transform_0, window_bounds = array<i64: 8, 256>}, {pipeline_mode = #tpu.pipeline_mode<synchronous>, transform_indices = @transform_1, window_bounds = array<i64: 256, 2048>}, {pipeline_mode = #tpu.pipeline_mode<synchronous>, transform_indices = @transform_2, window_bounds = array<i64: 1, 2048>}, {transform_indices = @transform_3, window_bounds = array<i64: 2048, 512>}, {transform_indices = @transform_4, window_bounds = array<i64: 1, 512>}, {transform_indices = @transform_5, window_bounds = array<i64: 512, 128>}, {pipeline_mode = #tpu.pipeline_mode<synchronous>, transform_indices = @transform_6, window_bounds = array<i64: 1, 128>}, {pipeline_mode = #tpu.pipeline_mode<synchronous>, transform_indices = @transform_7, window_bounds = array<i64: 8, 128>}]} {
    %c0_i32 = arith.constant 0 : i32
    %0 = arith.cmpi eq, %arg0, %c0_i32 : i32
    %1 = arith.extui %0 : i1 to i32
    %c0_i32_0 = arith.constant 0 : i32
    %2 = arith.cmpi ne, %1, %c0_i32_0 : i32
    scf.if %2 {
      %c0_15 = arith.constant 0 : index
      %c0_16 = arith.constant 0 : index
      %20 = vector.load %arg1[%c0_15, %c0_16] : memref<8x256xbf16, #tpu.memory_space<vmem>>, vector<8x256xbf16>
      %c0_17 = arith.constant 0 : index
      %c0_18 = arith.constant 0 : index
      %21 = vector.load %arg2[%c0_17, %c0_18] : memref<256x2048xbf16, #tpu.memory_space<vmem>>, vector<256x2048xbf16>
      %cst_19 = arith.constant dense<0.000000e+00> : vector<8x2048xf32>
      %22 = tpu.matmul %20, %21, %cst_19 {dimension_numbers = #tpu.dot_dimension_numbers<[1], [0], [0], [1], [0, 0, 1, 1], [], []>} : vector<8x256xbf16>, vector<256x2048xbf16>, vector<8x2048xf32> -> vector<8x2048xf32>
      %c0_20 = arith.constant 0 : index
      %c0_21 = arith.constant 0 : index
      %23 = vector.load %arg3[%c0_20, %c0_21] : memref<1x2048xf32, #tpu.memory_space<vmem>>, vector<1x2048xf32>
      %24 = vector.broadcast %23 : vector<1x2048xf32> to vector<8x2048xf32>
      %25 = arith.addf %22, %24 : vector<8x2048xf32>
      %cst_22 = arith.constant 0.000000e+00 : f32
      %26 = vector.broadcast %cst_22 : f32 to vector<8x2048xf32>
      %27 = arith.maximumf %25, %26 : vector<8x2048xf32>
      %28 = arith.truncf %27 : vector<8x2048xf32> to vector<8x2048xbf16>
      %c0_23 = arith.constant 0 : index
      %c0_24 = arith.constant 0 : index
      %29 = vector.load %arg9[%c0_23, %c0_24] : memref<8x2048xbf16, #tpu.memory_space<vmem>>, vector<8x2048xbf16>
      tpu.vector_store %arg9[%c0_23, %c0_24], %28 {strides = array<i32>} : memref<8x2048xbf16, #tpu.memory_space<vmem>>, vector<8x2048xbf16>,
      %c0_25 = arith.constant 0 : index
      %c0_26 = arith.constant 0 : index
      %30 = vector.load %arg7[%c0_25, %c0_26] : memref<1x128xf32, #tpu.memory_space<vmem>>, vector<1x128xf32>
      %31 = vector.shape_cast %30 : vector<1x128xf32> to vector<1x128xf32>
      %32 = vector.broadcast %31 : vector<1x128xf32> to vector<8x128xf32>
      %c0_27 = arith.constant 0 : index
      %c0_28 = arith.constant 0 : index
      %33 = vector.load %arg10[%c0_27, %c0_28] : memref<8x128xf32, #tpu.memory_space<vmem>>, vector<8x128xf32>
      tpu.vector_store %arg10[%c0_27, %c0_28], %32 {strides = array<i32>} : memref<8x128xf32, #tpu.memory_space<vmem>>, vector<8x128xf32>,
    } else {
    }
    %c0 = arith.constant 0 : index
    %c0_1 = arith.constant 0 : index
    %3 = vector.load %arg9[%c0, %c0_1] : memref<8x2048xbf16, #tpu.memory_space<vmem>>, vector<8x2048xbf16>
    %c0_2 = arith.constant 0 : index
    %c0_3 = arith.constant 0 : index
    %4 = vector.load %arg4[%c0_2, %c0_3] : memref<2048x512xbf16, #tpu.memory_space<vmem>>, vector<2048x512xbf16>
    %cst = arith.constant dense<0.000000e+00> : vector<8x512xf32>
    %5 = tpu.matmul %3, %4, %cst {dimension_numbers = #tpu.dot_dimension_numbers<[1], [0], [0], [1], [0, 0, 1, 1], [], []>} : vector<8x2048xbf16>, vector<2048x512xbf16>, vector<8x512xf32> -> vector<8x512xf32>
    %c0_4 = arith.constant 0 : index
    %c0_5 = arith.constant 0 : index
    %6 = vector.load %arg5[%c0_4, %c0_5] : memref<1x512xf32, #tpu.memory_space<vmem>>, vector<1x512xf32>
    %7 = vector.broadcast %6 : vector<1x512xf32> to vector<8x512xf32>
    %8 = arith.addf %5, %7 : vector<8x512xf32>
    %cst_6 = arith.constant 0.000000e+00 : f32
    %9 = vector.broadcast %cst_6 : f32 to vector<8x512xf32>
    %10 = arith.maximumf %8, %9 : vector<8x512xf32>
    %c0_7 = arith.constant 0 : index
    %c0_8 = arith.constant 0 : index
    %11 = vector.load %arg10[%c0_7, %c0_8] : memref<8x128xf32, #tpu.memory_space<vmem>>, vector<8x128xf32>
    %12 = arith.truncf %10 : vector<8x512xf32> to vector<8x512xbf16>
    %c0_9 = arith.constant 0 : index
    %c0_10 = arith.constant 0 : index
    %13 = vector.load %arg6[%c0_9, %c0_10] : memref<512x128xbf16, #tpu.memory_space<vmem>>, vector<512x128xbf16>
    %cst_11 = arith.constant dense<0.000000e+00> : vector<8x128xf32>
    %14 = tpu.matmul %12, %13, %cst_11 {dimension_numbers = #tpu.dot_dimension_numbers<[1], [0], [0], [1], [0, 0, 1, 1], [], []>} : vector<8x512xbf16>, vector<512x128xbf16>, vector<8x128xf32> -> vector<8x128xf32>
    %15 = arith.addf %11, %14 : vector<8x128xf32>
    %c0_12 = arith.constant 0 : index
    %c0_13 = arith.constant 0 : index
    %16 = vector.load %arg10[%c0_12, %c0_13] : memref<8x128xf32, #tpu.memory_space<vmem>>, vector<8x128xf32>
    tpu.vector_store %arg10[%c0_12, %c0_13], %15 {strides = array<i32>} : memref<8x128xf32, #tpu.memory_space<vmem>>, vector<8x128xf32>,
    %c3_i32 = arith.constant 3 : i32
    %17 = arith.cmpi eq, %arg0, %c3_i32 : i32
    %18 = arith.extui %17 : i1 to i32
    %c0_i32_14 = arith.constant 0 : i32
    %19 = arith.cmpi ne, %18, %c0_i32_14 : i32
    scf.if %19 {
      %c0_15 = arith.constant 0 : index
      %c0_16 = arith.constant 0 : index
      %20 = vector.load %arg10[%c0_15, %c0_16] : memref<8x128xf32, #tpu.memory_space<vmem>>, vector<8x128xf32>
      %c0_17 = arith.constant 0 : index
      %c0_18 = arith.constant 0 : index
      %21 = vector.load %arg8[%c0_17, %c0_18] : memref<8x128xf32, #tpu.memory_space<vmem>>, vector<8x128xf32>
      tpu.vector_store %arg8[%c0_17, %c0_18], %20 {strides = array<i32>} : memref<8x128xf32, #tpu.memory_space<vmem>>, vector<8x128xf32>,
    } else {
    }
    return
  }
  func.func @transform_0(%arg0: i32) -> (i32, i32) {
    %c0_i32 = arith.constant 0 : i32
    %c0_i32_0 = arith.constant 0 : i32
    %c0_i32_1 = arith.constant 0 : i32
    return %c0_i32, %c0_i32_0 : i32, i32
  }
  func.func @transform_1(%arg0: i32) -> (i32, i32) {
    %c0_i32 = arith.constant 0 : i32
    %c0_i32_0 = arith.constant 0 : i32
    %c0_i32_1 = arith.constant 0 : i32
    return %c0_i32, %c0_i32_0 : i32, i32
  }
  func.func @transform_2(%arg0: i32) -> (i32, i32) {
    %c0_i32 = arith.constant 0 : i32
    %c0_i32_0 = arith.constant 0 : i32
    %c0_i32_1 = arith.constant 0 : i32
    return %c0_i32, %c0_i32_0 : i32, i32
  }
  func.func @transform_3(%arg0: i32) -> (i32, i32) {
    %c0_i32 = arith.constant 0 : i32
    %c0_i32_0 = arith.constant 0 : i32
    return %c0_i32, %arg0 : i32, i32
  }
  func.func @transform_4(%arg0: i32) -> (i32, i32) {
    %c0_i32 = arith.constant 0 : i32
    %c0_i32_0 = arith.constant 0 : i32
    return %c0_i32, %arg0 : i32, i32
  }
  func.func @transform_5(%arg0: i32) -> (i32, i32) {
    %c0_i32 = arith.constant 0 : i32
    %c0_i32_0 = arith.constant 0 : i32
    return %arg0, %c0_i32 : i32, i32
  }
  func.func @transform_6(%arg0: i32) -> (i32, i32) {
    %c0_i32 = arith.constant 0 : i32
    %c0_i32_0 = arith.constant 0 : i32
    %c0_i32_1 = arith.constant 0 : i32
    return %c0_i32, %c0_i32_0 : i32, i32
  }
  func.func @transform_7(%arg0: i32) -> (i32, i32) {
    %c0_i32 = arith.constant 0 : i32
    %c0_i32_0 = arith.constant 0 : i32
    %c0_i32_1 = arith.constant 0 : i32
    return %c0_i32, %c0_i32_0 : i32, i32
  }
}

</mosaic_0001>

<llo_original>
// kernel: tpu_custom_call.1
$region0: #{tpu_custom_call.1}
  #allocation0 [shape = 'u32[]', space=smem, size = 0x4, offset = 0x4, fixed_abs, tag = 'smem constant byte address 0x4 - core index']
  #allocation1 [shape = 'u32[72,128]{1,0:T(1,128)}', space=vmem, size = 0x9000, scoped, tag = 'internal scratch']
  #allocation2 [shape = 'bf16[8,2048]{1,0:T(8,128)(2,1)}', space=vmem, size = 0x8000, scoped, tag = 'scratch operand']
  #allocation3 [shape = 'f32[8,128]{1,0:T(8,128)}', space=vmem, size = 0x1000, scoped, tag = 'scratch operand']
  %s0 = inlined_call_operand.hbm [shape: bf16[8,256], index: 0, kind: input, shape index: {}]
  %s1 = inlined_call_operand.hbm [shape: bf16[256,2048], index: 1, kind: input, shape index: {}]
  %s2 = inlined_call_operand.hbm [shape: f32[1,2048], index: 2, kind: input, shape index: {}]
  %s3 = inlined_call_operand.hbm [shape: bf16[2048,2048], index: 3, kind: input, shape index: {}]
  %s4 = inlined_call_operand.hbm [shape: f32[1,2048], index: 4, kind: input, shape index: {}]
  %s5 = inlined_call_operand.hbm [shape: bf16[2048,128], index: 5, kind: input, shape index: {}]
  %s6 = inlined_call_operand.hbm [shape: f32[1,128], index: 6, kind: input, shape index: {}]
  %s7 = inlined_call_operand.hbm [shape: f32[8,128], index: 7, kind: output, shape index: {}]
  %s8 = sld [smem:[#allocation0]]
  $region97: #{tpu_custom_call.1} parent=0
    _
  %s10 = ssub.s32 1, %s8
  %s11 = scalar_select 0, %s10, %s8
  $region1: #{tpu_custom_call.1} parent=0
    #allocation4 [shape = 'u8[4096]{0}', space=vmem, size = 0x1000, scoped, tag = 'input window, operand 0, single buffered']
    #allocation5 [shape = 's32[2]{0}', space=sflag, size = 0x8, scoped, tag = 'scoped memory for tpu_custom_call.1']
    #allocation6 [shape = 's32[2]{0}', space=sflag, size = 0x8, scoped, tag = 'scoped memory for tpu_custom_call.1']
    #allocation7 [shape = 'u8[1048576]{0}', space=vmem, size = 0x100000, scoped, tag = 'input window, operand 1, single buffered']
    #allocation8 [shape = 's32[1]{0}', space=sflag, size = 0x4, scoped, tag = 'scoped memory for tpu_custom_call.1']
    #allocation9 [shape = 'u8[8192]{0}', space=vmem, size = 0x2000, scoped, tag = 'input window, operand 2, single buffered']
    #allocation10 [shape = 'u8[4194304]{0}', space=vmem, size = 0x400000, scoped, tag = 'input window, operand 3']
    #allocation11 [shape = 's32[2]{0}', space=sflag, size = 0x8, scoped, tag = 'scoped memory for tpu_custom_call.1']
    #allocation12 [shape = 'u8[4096]{0}', space=vmem, size = 0x1000, scoped, tag = 'input window, operand 4']
    #allocation13 [shape = 'u8[262144]{0}', space=vmem, size = 0x40000, scoped, tag = 'input window, operand 5']
    #allocation14 [shape = 's32[2]{0}', space=sflag, size = 0x8, scoped, tag = 'scoped memory for tpu_custom_call.1']
    #allocation15 [shape = 'u8[512]{0}', space=vmem, size = 0x400, scoped, tag = 'input window, operand 6, single buffered']
    #allocation16 [shape = 'u8[4096]{0}', space=vmem, size = 0x1000, scoped, tag = 'output window, operand 0, single buffered']
    %12 = vsyncpa [#allocation5], 0
    %13 = vsyncpa [#allocation8], 0
    %14 = vsyncpa [#allocation11], 0
    %s15 = scalar_lea.sflag [#allocation11], 1
    %16 = vsyncpa %s15, 0
    %17 = vsyncpa [#allocation14], 0
    %s18 = scalar_lea.sflag [#allocation14], 1
    %19 = vsyncpa %s18, 0
    %20 = vsyncpa [#allocation6], 0
    loop: start=0, step=1, limit=6
    $region2: #{tpu_custom_call.1} parent=1 // loop_pre_header
      _
    $region3: #{tpu_custom_call.1} parent=1 // loop_header
      %s22 = sphi 0, %s26
      %p23 = scmp.ge.s32.totalorder %s22, 6
      %s30 = sphi 0, %s30
      %s32 = sphi 0, %s30
      %s33 = sphi 0, %s32
      %s47 = sphi 0, %s33
      %s51 = sphi 0, %s51
      %s53 = sphi 0, %s51
      %s54 = sphi 0, %s53
      %s68 = sphi 0, %s54
      %s72 = sphi 0, %s72
      %s74 = sphi 0, %s72
      %s75 = sphi 0, %s74
      %s89 = sphi 0, %s75
      %s95 = sphi 0, %s97
      %s98 = sphi 0, %s95
      %s99 = sphi 0, %s98
      %s115 = sphi 0, %s99
      %s121 = sphi 0, %s123
      %s124 = sphi 0, %s121
      %s125 = sphi 0, %s124
      %s141 = sphi 0, %s125
      %s147 = sphi 0, %s149
      %s150 = sphi 0, %s147
      %s151 = sphi 0, %s150
      %s167 = sphi 0, %s151
      %s171 = sphi 0, %s171
      %s173 = sphi 0, %s171
      %s174 = sphi 0, %s173
      %s188 = sphi 0, %s174
      %s192 = sphi 0, %s192
      %s194 = sphi 0, %s192
      %s195 = sphi 0, %s194
      %s209 = sphi 0, %s195
    $region4: #{tpu_custom_call.1} parent=1 // loop_header_branch
      %25 = sbr.rel (%p23) target = $region8
    $region5: #{tpu_custom_call.1} parent=1 // loop_body
      %s27 = ssub.s32 %s22, 1
      %s28 = ssub.s32 %s22, 2
      %s29 = sadd.s32 %s22, 1
      %s31 = sadd.s32 %s30, 1
      %p34 = scmp.eq.s32.totalorder %s22, 3
      %p35 = scmp.ne.s32.totalorder %s30, %s32
      %p36 = scmp.eq.s32.totalorder %s22, 0
      %p37 = por %p35, %p36
      %p38 = scmp.ne.s32.totalorder %s30, %s32
      %p39 = scmp.eq.s32.totalorder %s27, 3
      %p40 = por %p38, %p39
      %p41 = scmp.ne.s32.totalorder %s32, %s33
      %p42 = scmp.eq.s32.totalorder %s27, 0
      %p43 = por %p41, %p42
      %p44 = scmp.ne.s32.totalorder %s32, %s33
      %p45 = scmp.eq.s32.totalorder %s28, 3
      %p46 = por %p44, %p45
      %p48 = scmp.ne.s32.totalorder %s33, %s47
      %p49 = scmp.eq.s32.totalorder %s28, 0
      %p50 = por %p48, %p49
      %s52 = sadd.s32 %s51, 1
      %p55 = scmp.eq.s32.totalorder %s22, 3
      %p56 = scmp.ne.s32.totalorder %s51, %s53
      %p57 = scmp.eq.s32.totalorder %s22, 0
      %p58 = por %p56, %p57
      %p59 = scmp.ne.s32.totalorder %s51, %s53
      %p60 = scmp.eq.s32.totalorder %s27, 3
      %p61 = por %p59, %p60
      %p62 = scmp.ne.s32.totalorder %s53, %s54
      %p63 = scmp.eq.s32.totalorder %s27, 0
      %p64 = por %p62, %p63
      %p65 = scmp.ne.s32.totalorder %s53, %s54
      %p66 = scmp.eq.s32.totalorder %s28, 3
      %p67 = por %p65, %p66
      %p69 = scmp.ne.s32.totalorder %s54, %s68
      %p70 = scmp.eq.s32.totalorder %s28, 0
      %p71 = por %p69, %p70
      %s73 = sadd.s32 %s72, 1
      %p76 = scmp.eq.s32.totalorder %s22, 3
      %p77 = scmp.ne.s32.totalorder %s72, %s74
      %p78 = scmp.eq.s32.totalorder %s22, 0
      %p79 = por %p77, %p78
      %p80 = scmp.ne.s32.totalorder %s72, %s74
      %p81 = scmp.eq.s32.totalorder %s27, 3
      %p82 = por %p80, %p81
      %p83 = scmp.ne.s32.totalorder %s74, %s75
      %p84 = scmp.eq.s32.totalorder %s27, 0
      %p85 = por %p83, %p84
      %p86 = scmp.ne.s32.totalorder %s74, %s75
      %p87 = scmp.eq.s32.totalorder %s28, 3
      %p88 = por %p86, %p87
      %p90 = scmp.ne.s32.totalorder %s75, %s89
      %p91 = scmp.eq.s32.totalorder %s28, 0
      %p92 = por %p90, %p91
      %s93 = ssub.s32 %s22, %s29
      %p94 = scmp.eq.s32.totalorder %s93, 0
      %s96 = sadd.s32 %s95, 1
      %s97 = scalar_select %p94, %s95, %s96
      %p100 = pneg %p94
      %p101 = scmp.eq.s32.totalorder %s22, 3
      %p102 = por %p100, %p101
      %p103 = scmp.ne.s32.totalorder %s95, %s98
      %p104 = scmp.eq.s32.totalorder %s22, 0
      %p105 = por %p103, %p104
      %p106 = scmp.ne.s32.totalorder %s95, %s98
      %p107 = scmp.eq.s32.totalorder %s27, 3
      %p108 = por %p106, %p107
      %p109 = scmp.ne.s32.totalorder %s98, %s99
      %p110 = scmp.eq.s32.totalorder %s27, 0
      %p111 = por %p109, %p110
      %p112 = scmp.ne.s32.totalorder %s98, %s99
      %p113 = scmp.eq.s32.totalorder %s28, 3
      %p114 = por %p112, %p113
      %p116 = scmp.ne.s32.totalorder %s99, %s115
      %p117 = scmp.eq.s32.totalorder %s28, 0
      %p118 = por %p116, %p117
      %s119 = ssub.s32 %s22, %s29
      %p120 = scmp.eq.s32.totalorder %s119, 0
      %s122 = sadd.s32 %s121, 1
      %s123 = scalar_select %p120, %s121, %s122
      %p126 = pneg %p120
      %p127 = scmp.eq.s32.totalorder %s22, 3
      %p128 = por %p126, %p127
      %p129 = scmp.ne.s32.totalorder %s121, %s124
      %p130 = scmp.eq.s32.totalorder %s22, 0
      %p131 = por %p129, %p130
      %p132 = scmp.ne.s32.totalorder %s121, %s124
      %p133 = scmp.eq.s32.totalorder %s27, 3
      %p134 = por %p132, %p133
      %p135 = scmp.ne.s32.totalorder %s124, %s125
      %p136 = scmp.eq.s32.totalorder %s27, 0
      %p137 = por %p135, %p136
      %p138 = scmp.ne.s32.totalorder %s124, %s125
      %p139 = scmp.eq.s32.totalorder %s28, 3
      %p140 = por %p138, %p139
      %p142 = scmp.ne.s32.totalorder %s125, %s141
      %p143 = scmp.eq.s32.totalorder %s28, 0
      %p144 = por %p142, %p143
      %s145 = ssub.s32 %s22, %s29
      %p146 = scmp.eq.s32.totalorder %s145, 0
      %s148 = sadd.s32 %s147, 1
      %s149 = scalar_select %p146, %s147, %s148
      %p152 = pneg %p146
      %p153 = scmp.eq.s32.totalorder %s22, 3
      %p154 = por %p152, %p153
      %p155 = scmp.ne.s32.totalorder %s147, %s150
      %p156 = scmp.eq.s32.totalorder %s22, 0
      %p157 = por %p155, %p156
      %p158 = scmp.ne.s32.totalorder %s147, %s150
      %p159 = scmp.eq.s32.totalorder %s27, 3
      %p160 = por %p158, %p159
      %p161 = scmp.ne.s32.totalorder %s150, %s151
      %p162 = scmp.eq.s32.totalorder %s27, 0
      %p163 = por %p161, %p162
      %p164 = scmp.ne.s32.totalorder %s150, %s151
      %p165 = scmp.eq.s32.totalorder %s28, 3
      %p166 = por %p164, %p165
      %p168 = scmp.ne.s32.totalorder %s151, %s167
      %p169 = scmp.eq.s32.totalorder %s28, 0
      %p170 = por %p168, %p169
      %s172 = sadd.s32 %s171, 1
      %p175 = scmp.eq.s32.totalorder %s22, 3
      %p176 = scmp.ne.s32.totalorder %s171, %s173
      %p177 = scmp.eq.s32.totalorder %s22, 0
      %p178 = por %p176, %p177
      %p179 = scmp.ne.s32.totalorder %s171, %s173
      %p180 = scmp.eq.s32.totalorder %s27, 3
      %p181 = por %p179, %p180
      %p182 = scmp.ne.s32.totalorder %s173, %s174
      %p183 = scmp.eq.s32.totalorder %s27, 0
      %p184 = por %p182, %p183
      %p185 = scmp.ne.s32.totalorder %s173, %s174
      %p186 = scmp.eq.s32.totalorder %s28, 3
      %p187 = por %p185, %p186
      %p189 = scmp.ne.s32.totalorder %s174, %s188
      %p190 = scmp.eq.s32.totalorder %s28, 0
      %p191 = por %p189, %p190
      %s193 = sadd.s32 %s192, 1
      %p196 = scmp.eq.s32.totalorder %s22, 3
      %p197 = scmp.ne.s32.totalorder %s192, %s194
      %p198 = scmp.eq.s32.totalorder %s22, 0
      %p199 = por %p197, %p198
      %p200 = scmp.ne.s32.totalorder %s192, %s194
      %p201 = scmp.eq.s32.totalorder %s27, 3
      %p202 = por %p200, %p201
      %p203 = scmp.ne.s32.totalorder %s194, %s195
      %p204 = scmp.eq.s32.totalorder %s27, 0
      %p205 = por %p203, %p204
      %p206 = scmp.ne.s32.totalorder %s194, %s195
      %p207 = scmp.eq.s32.totalorder %s28, 3
      %p208 = por %p206, %p207
      %p210 = scmp.ne.s32.totalorder %s195, %s209
      %p211 = scmp.eq.s32.totalorder %s28, 0
      %p212 = por %p210, %p211
      %p213 = scmp.le.s32.totalorder 1, %s22
      %p214 = scmp.lt.s32.totalorder %s22, 5
      %p215 = pnand %p213, %p214
      %p216 = pneg %p215
      // Predicated region
      $region9: #{tpu_custom_call.1} parent=5 // pred_check
        _
      $region10: #{tpu_custom_call.1} parent=5 // pred_check_branch
        %218 = sbr.rel (%p215) target = $region12
      $region11: #{tpu_custom_call.1} parent=5 // pred_region
        %s219 = ssub.s32 %s22, 1
        // Predicated region
        $region13: #{tpu_custom_call.1} parent=11 // pred_check
          %p220 = pneg %p43
        $region14: #{tpu_custom_call.1} parent=11 // pred_check_branch
          %222 = sbr.rel (%p220) target = $region16
        $region15: #{tpu_custom_call.1} parent=11 // pred_region
          %224 = vsyncadd [#allocation5], 0
          %s226 = sshll.u32 %s0, 4
          %s227 = int_to_ptr.hbm [resolvable:$true] %s226
          %s228 = sshll.u32 [#allocation4], 4
          %s229 = int_to_ptr.vmem [resolvable:$true] %s228
          %231 = dma.hbm_to_vmem [thread:$0]  %s227, 128, %s229, [#allocation5]
        $region16: #{tpu_custom_call.1} parent=11 // pred_fallthru
          _
        // Predicated region
        $region17: #{tpu_custom_call.1} parent=11 // pred_check
          %p232 = pneg %p64
        $region18: #{tpu_custom_call.1} parent=11 // pred_check_branch
          %234 = sbr.rel (%p232) target = $region20
        $region19: #{tpu_custom_call.1} parent=11 // pred_region
          %236 = vsyncadd [#allocation8], 0
          %s237 = sshll.u32 %s1, 4
          %s238 = int_to_ptr.hbm [resolvable:$true] %s237
          %s239 = sshll.u32 [#allocation7], 4
          %s240 = int_to_ptr.vmem [resolvable:$true] %s239
          %245 = dma.hbm_to_vmem [thread:$0]  %s238, 32768, %s240, [#allocation8], 1024, 1024, 64
        $region20: #{tpu_custom_call.1} parent=11 // pred_fallthru
          _
        // Predicated region
        $region21: #{tpu_custom_call.1} parent=11 // pred_check
          %p246 = pneg %p85
        $region22: #{tpu_custom_call.1} parent=11 // pred_check_branch
          %248 = sbr.rel (%p246) target = $region24
        $region23: #{tpu_custom_call.1} parent=11 // pred_region
          %250 = vsyncadd [#allocation8], 0
          %s252 = sshll.u32 %s2, 4
          %s253 = int_to_ptr.hbm [resolvable:$true] %s252
          %s254 = sshll.u32 [#allocation9], 4
          %s255 = int_to_ptr.vmem [resolvable:$true] %s254
          %257 = dma.hbm_to_vmem [thread:$0]  %s253, 256, %s255, [#allocation8]
        $region24: #{tpu_custom_call.1} parent=11 // pred_fallthru
          _
        // Predicated region
        $region25: #{tpu_custom_call.1} parent=11 // pred_check
          %p258 = pneg %p184
        $region26: #{tpu_custom_call.1} parent=11 // pred_check_branch
          %260 = sbr.rel (%p258) target = $region28
        $region27: #{tpu_custom_call.1} parent=11 // pred_region
          %262 = vsyncadd [#allocation14], 0
          %s264 = sshll.u32 %s6, 4
          %s265 = int_to_ptr.hbm [resolvable:$true] %s264
          %s266 = sshll.u32 [#allocation15], 4
          %s267 = int_to_ptr.vmem [resolvable:$true] %s266
          %269 = dma.hbm_to_vmem [thread:$0]  %s265, 16, %s267, [#allocation14]
        $region28: #{tpu_custom_call.1} parent=11 // pred_fallthru
          _
      $region12: #{tpu_custom_call.1} parent=5 // pred_fallthru
        _
      %p270 = scmp.lt.s32.totalorder %s22, 4
      // Predicated region
      $region29: #{tpu_custom_call.1} parent=5 // pred_check
        %p271 = pneg %p270
      $region30: #{tpu_custom_call.1} parent=5 // pred_check_branch
        %273 = sbr.rel (%p271) target = $region32
      $region31: #{tpu_custom_call.1} parent=5 // pred_region
        // Predicated region
        $region33: #{tpu_custom_call.1} parent=31 // pred_check
          %p274 = pneg %p105
        $region34: #{tpu_custom_call.1} parent=31 // pred_check_branch
          %276 = sbr.rel (%p274) target = $region36
        $region35: #{tpu_custom_call.1} parent=31 // pred_region
          %s277 = sand.u32 %s22, 1
          %s278 = scalar_lea.sflag [#allocation11], %s277
          %s279 = sand.u32 %s95, 1
          %s280 = smul.addr %s279, 4096
          %s281 = scalar_lea.vmem [#allocation10], %s280
          %s282 = smul.u32 4, %s22
          %284 = vsyncadd %s278, 0
          %s285 = smul.addr %s282, 4
          %s286 = scalar_lea.hbm %s3, %s285
          %s287 = sshll.u32 %s286, 4
          %s288 = int_to_ptr.hbm [resolvable:$true] %s287
          %s289 = sshll.u32 %s281, 4
          %s290 = int_to_ptr.vmem [resolvable:$true] %s289
          %295 = dma.hbm_to_vmem [thread:$0]  %s288, 65536, %s290, %s278, 1024, 256, 16
        $region36: #{tpu_custom_call.1} parent=31 // pred_fallthru
          _
        // Predicated region
        $region37: #{tpu_custom_call.1} parent=31 // pred_check
          %p296 = pneg %p131
        $region38: #{tpu_custom_call.1} parent=31 // pred_check_branch
          %298 = sbr.rel (%p296) target = $region40
        $region39: #{tpu_custom_call.1} parent=31 // pred_region
          %s299 = sand.u32 %s22, 1
          %s300 = scalar_lea.sflag [#allocation11], %s299
          %s301 = sand.u32 %s121, 1
          %s302 = smul.addr %s301, 4
          %s303 = scalar_lea.vmem [#allocation12], %s302
          %s304 = smul.u32 4, %s22
          %306 = vsyncadd %s300, 0
          %s307 = scalar_lea.hbm %s4, %s304
          %s309 = sshll.u32 %s307, 4
          %s310 = int_to_ptr.hbm [resolvable:$true] %s309
          %s311 = sshll.u32 %s303, 4
          %s312 = int_to_ptr.vmem [resolvable:$true] %s311
          %314 = dma.hbm_to_vmem [thread:$0]  %s310, 64, %s312, %s300
        $region40: #{tpu_custom_call.1} parent=31 // pred_fallthru
          _
        // Predicated region
        $region41: #{tpu_custom_call.1} parent=31 // pred_check
          %p315 = pneg %p157
        $region42: #{tpu_custom_call.1} parent=31 // pred_check_branch
          %317 = sbr.rel (%p315) target = $region44
        $region43: #{tpu_custom_call.1} parent=31 // pred_region
          %s318 = sand.u32 %s22, 1
          %s319 = scalar_lea.sflag [#allocation14], %s318
          %s320 = sand.u32 %s147, 1
          %s321 = smul.addr %s320, 256
          %s322 = scalar_lea.vmem [#allocation13], %s321
          %s323 = smul.u32 64, %s22
          %325 = vsyncadd %s319, 0
          %s326 = smul.addr %s323, 4
          %s327 = scalar_lea.hbm %s5, %s326
          %s328 = sshll.u32 %s327, 4
          %s329 = int_to_ptr.hbm [resolvable:$true] %s328
          %s330 = sshll.u32 %s322, 4
          %s331 = int_to_ptr.vmem [resolvable:$true] %s330
          %336 = dma.hbm_to_vmem [thread:$0]  %s329, 4096, %s331, %s319, 64, 64, 4
        $region44: #{tpu_custom_call.1} parent=31 // pred_fallthru
          _
      $region32: #{tpu_custom_call.1} parent=5 // pred_fallthru
        _
      %p337 = scmp.le.s32.totalorder 1, %s22
      %p338 = scmp.lt.s32.totalorder %s22, 5
      %p339 = pnand %p337, %p338
      %p340 = pneg %p339
      // Predicated region
      $region45: #{tpu_custom_call.1} parent=5 // pred_check
        _
      $region46: #{tpu_custom_call.1} parent=5 // pred_check_branch
        %342 = sbr.rel (%p339) target = $region48
      $region47: #{tpu_custom_call.1} parent=5 // pred_region
        %s343 = ssub.s32 %s22, 1
        // Predicated region
        $region49: #{tpu_custom_call.1} parent=47 // pred_check
          %p344 = pneg %p43
        $region50: #{tpu_custom_call.1} parent=47 // pred_check_branch
          %346 = sbr.rel (%p344) target = $region52
        $region51: #{tpu_custom_call.1} parent=47 // pred_region
          %348 = dma.done [#allocation5], 128
        $region52: #{tpu_custom_call.1} parent=47 // pred_fallthru
          _
        // Predicated region
        $region53: #{tpu_custom_call.1} parent=47 // pred_check
          %p349 = pneg %p64
        $region54: #{tpu_custom_call.1} parent=47 // pred_check_branch
          %351 = sbr.rel (%p349) target = $region56
        $region55: #{tpu_custom_call.1} parent=47 // pred_region
          %353 = dma.done [#allocation8], 32768
        $region56: #{tpu_custom_call.1} parent=47 // pred_fallthru
          _
        // Predicated region
        $region57: #{tpu_custom_call.1} parent=47 // pred_check
          %p354 = pneg %p85
        $region58: #{tpu_custom_call.1} parent=47 // pred_check_branch
          %356 = sbr.rel (%p354) target = $region60
        $region59: #{tpu_custom_call.1} parent=47 // pred_region
          %358 = dma.done [#allocation8], 256
        $region60: #{tpu_custom_call.1} parent=47 // pred_fallthru
          _
        %s359 = sand.u32 %s27, 1
        %s360 = scalar_lea.sflag [#allocation11], %s359
        %s361 = sand.u32 %s98, 1
        %s362 = smul.addr %s361, 4096
        %s363 = scalar_lea.vmem [#allocation10], %s362
        // Predicated region
        $region61: #{tpu_custom_call.1} parent=47 // pred_check
          %p364 = pneg %p111
        $region62: #{tpu_custom_call.1} parent=47 // pred_check_branch
          %366 = sbr.rel (%p364) target = $region64
        $region63: #{tpu_custom_call.1} parent=47 // pred_region
          %368 = dma.done %s360, 65536
        $region64: #{tpu_custom_call.1} parent=47 // pred_fallthru
          _
        %s369 = sand.u32 %s27, 1
        %s370 = scalar_lea.sflag [#allocation11], %s369
        %s371 = sand.u32 %s124, 1
        %s372 = smul.addr %s371, 4
        %s373 = scalar_lea.vmem [#allocation12], %s372
        // Predicated region
        $region65: #{tpu_custom_call.1} parent=47 // pred_check
          %p374 = pneg %p137
        $region66: #{tpu_custom_call.1} parent=47 // pred_check_branch
          %376 = sbr.rel (%p374) target = $region68
        $region67: #{tpu_custom_call.1} parent=47 // pred_region
          %378 = dma.done %s370, 64
        $region68: #{tpu_custom_call.1} parent=47 // pred_fallthru
          _
        %s379 = sand.u32 %s27, 1
        %s380 = scalar_lea.sflag [#allocation14], %s379
        %s381 = sand.u32 %s150, 1
        %s382 = smul.addr %s381, 256
        %s383 = scalar_lea.vmem [#allocation13], %s382
        // Predicated region
        $region69: #{tpu_custom_call.1} parent=47 // pred_check
          %p384 = pneg %p163
        $region70: #{tpu_custom_call.1} parent=47 // pred_check_branch
          %386 = sbr.rel (%p384) target = $region72
        $region71: #{tpu_custom_call.1} parent=47 // pred_region
          %388 = dma.done %s380, 4096
        $region72: #{tpu_custom_call.1} parent=47 // pred_fallthru
          _
        // Predicated region
        $region73: #{tpu_custom_call.1} parent=47 // pred_check
          %p389 = pneg %p184
        $region74: #{tpu_custom_call.1} parent=47 // pred_check_branch
          %391 = sbr.rel (%p389) target = $region76
        $region75: #{tpu_custom_call.1} parent=47 // pred_region
          %393 = dma.done [#allocation14], 16
        $region76: #{tpu_custom_call.1} parent=47 // pred_fallthru
          _
        %p394 = pneg %p43
        %p395 = pneg %p40
        %p396 = pneg %p64
        %p397 = pneg %p61
        %p398 = pneg %p85
        %p399 = pneg %p82
        %s400 = sand.u32 %s27, 1
        %s401 = scalar_lea.sflag [#allocation11], %s400
        %s402 = sand.u32 %s98, 1
        %s403 = smul.addr %s402, 4096
        %s404 = scalar_lea.vmem [#allocation10], %s403
        %p405 = pneg %p111
        %p406 = pneg %p108
        %s407 = sand.u32 %s27, 1
        %s408 = scalar_lea.sflag [#allocation11], %s407
        %s409 = sand.u32 %s124, 1
        %s410 = smul.addr %s409, 4
        %s411 = scalar_lea.vmem [#allocation12], %s410
        %p412 = pneg %p137
        %p413 = pneg %p134
        %s414 = sand.u32 %s27, 1
        %s415 = scalar_lea.sflag [#allocation14], %s414
        %s416 = sand.u32 %s150, 1
        %s417 = smul.addr %s416, 256
        %s418 = scalar_lea.vmem [#allocation13], %s417
        %p419 = pneg %p163
        %p420 = pneg %p160
        %p421 = pneg %p184
        %p422 = pneg %p181
        %p423 = pneg %p205
        %p424 = pneg %p202
        %s425 = smul.u32 4, %s27
        %s426 = smul.u32 4, %s27
        %s427 = smul.u32 64, %s27
        %p428 = scmp.eq.s32.totalorder %s27, 0
        // Predicated region
        $region77: #{tpu_custom_call.1} parent=47 // pred_check
          %p429 = pneg %p428
        $region78: #{tpu_custom_call.1} parent=47 // pred_check_branch
          %431 = sbr.rel (%p429) target = $region80
        $region79: #{tpu_custom_call.1} parent=47 // pred_region
          %v432 = vld [vmem:[#allocation4] sm:$0xff]
          %v433 = vld [vmem:[#allocation7] sm:$0xff]
          %v434 = vld [vmem:[#allocation7 + $0x8] sm:$0xff]
          %v435 = vld [vmem:[#allocation7 + $0x10] sm:$0xff]
          %v436 = vld [vmem:[#allocation7 + $0x18] sm:$0xff]
          %v437 = vld [vmem:[#allocation7 + $0x20] sm:$0xff]
          %v438 = vld [vmem:[#allocation7 + $0x28] sm:$0xff]
          %v439 = vld [vmem:[#allocation7 + $0x30] sm:$0xff]
          %v440 = vld [vmem:[#allocation7 + $0x38] sm:$0xff]
          %v441 = vld [vmem:[#allocation7 + $0x40] sm:$0xff]
          %v442 = vld [vmem:[#allocation7 + $0x48] sm:$0xff]
          %v443 = vld [vmem:[#allocation7 + $0x50] sm:$0xff]
          %v444 = vld [vmem:[#allocation7 + $0x58] sm:$0xff]
          %v445 = vld [vmem:[#allocation7 + $0x60] sm:$0xff]
          %v446 = vld [vmem:[#allocation7 + $0x68] sm:$0xff]
          %v447 = vld [vmem:[#allocation7 + $0x70] sm:$0xff]
          %v448 = vld [vmem:[#allocation7 + $0x78] sm:$0xff]
          %v449 = vld [vmem:[#allocation7 + $0x80] sm:$0xff]
          %v450 = vld [vmem:[#allocation7 + $0x88] sm:$0xff]
          %v451 = vld [vmem:[#allocation7 + $0x90] sm:$0xff]
          %v452 = vld [vmem:[#allocation7 + $0x98] sm:$0xff]
          %v453 = vld [vmem:[#allocation7 + $0xa0] sm:$0xff]
          %v454 = vld [vmem:[#allocation7 + $0xa8] sm:$0xff]
          %v455 = vld [vmem:[#allocation7 + $0xb0] sm:$0xff]
          %v456 = vld [vmem:[#allocation7 + $0xb8] sm:$0xff]
          %v457 = vld [vmem:[#allocation7 + $0xc0] sm:$0xff]
          %v458 = vld [vmem:[#allocation7 + $0xc8] sm:$0xff]
          %v459 = vld [vmem:[#allocation7 + $0xd0] sm:$0xff]
          %v460 = vld [vmem:[#allocation7 + $0xd8] sm:$0xff]
          %v461 = vld [vmem:[#allocation7 + $0xe0] sm:$0xff]
          %v462 = vld [vmem:[#allocation7 + $0xe8] sm:$0xff]
          %v463 = vld [vmem:[#allocation7 + $0xf0] sm:$0xff]
          %v464 = vld [vmem:[#allocation7 + $0xf8] sm:$0xff]
          %v465 = vld [vmem:[#allocation7 + $0x100] sm:$0xff]
          %v466 = vld [vmem:[#allocation7 + $0x108] sm:$0xff]
          %v467 = vld [vmem:[#allocation7 + $0x110] sm:$0xff]
          %v468 = vld [vmem:[#allocation7 + $0x118] sm:$0xff]
          %v469 = vld [vmem:[#allocation7 + $0x120] sm:$0xff]
          %v470 = vld [vmem:[#allocation7 + $0x128] sm:$0xff]
          %v471 = vld [vmem:[#allocation7 + $0x130] sm:$0xff]
          %v472 = vld [vmem:[#allocation7 + $0x138] sm:$0xff]
          %v473 = vld [vmem:[#allocation7 + $0x140] sm:$0xff]
          %v474 = vld [vmem:[#allocation7 + $0x148] sm:$0xff]
          %v475 = vld [vmem:[#allocation7 + $0x150] sm:$0xff]
          %v476 = vld [vmem:[#allocation7 + $0x158] sm:$0xff]
          %v477 = vld [vmem:[#allocation7 + $0x160] sm:$0xff]
          %v478 = vld [vmem:[#allocation7 + $0x168] sm:$0xff]
          %v479 = vld [vmem:[#allocation7 + $0x170] sm:$0xff]
          %v480 = vld [vmem:[#allocation7 + $0x178] sm:$0xff]
          %v481 = vld [vmem:[#allocation7 + $0x180] sm:$0xff]
          %v482 = vld [vmem:[#allocation7 + $0x188] sm:$0xff]
          %v483 = vld [vmem:[#allocation7 + $0x190] sm:$0xff]
          %v484 = vld [vmem:[#allocation7 + $0x198] sm:$0xff]
          %v485 = vld [vmem:[#allocation7 + $0x1a0] sm:$0xff]
          %v486 = vld [vmem:[#allocation7 + $0x1a8] sm:$0xff]
          %v487 = vld [vmem:[#allocation7 + $0x1b0] sm:$0xff]
          %v488 = vld [vmem:[#allocation7 + $0x1b8] sm:$0xff]
          %v489 = vld [vmem:[#allocation7 + $0x1c0] sm:$0xff]
          %v490 = vld [vmem:[#allocation7 + $0x1c8] sm:$0xff]
          %v491 = vld [vmem:[#allocation7 + $0x1d0] sm:$0xff]
          %v492 = vld [vmem:[#allocation7 + $0x1d8] sm:$0xff]
          %v493 = vld [vmem:[#allocation7 + $0x1e0] sm:$0xff]
          %v494 = vld [vmem:[#allocation7 + $0x1e8] sm:$0xff]
          %v495 = vld [vmem:[#allocation7 + $0x1f0] sm:$0xff]
          %v496 = vld [vmem:[#allocation7 + $0x1f8] sm:$0xff]
          %v497 = vld [vmem:[#allocation7 + $0x200] sm:$0xff]
          %v498 = vld [vmem:[#allocation7 + $0x208] sm:$0xff]
          %v499 = vld [vmem:[#allocation7 + $0x210] sm:$0xff]
          %v500 = vld [vmem:[#allocation7 + $0x218] sm:$0xff]
          %v501 = vld [vmem:[#allocation7 + $0x220] sm:$0xff]
          %v502 = vld [vmem:[#allocation7 + $0x228] sm:$0xff]
          %v503 = vld [vmem:[#allocation7 + $0x230] sm:$0xff]
          %v504 = vld [vmem:[#allocation7 + $0x238] sm:$0xff]
          %v505 = vld [vmem:[#allocation7 + $0x240] sm:$0xff]
          %v506 = vld [vmem:[#allocation7 + $0x248] sm:$0xff]
          %v507 = vld [vmem:[#allocation7 + $0x250] sm:$0xff]
          %v508 = vld [vmem:[#allocation7 + $0x258] sm:$0xff]
          %v509 = vld [vmem:[#allocation7 + $0x260] sm:$0xff]
          %v510 = vld [vmem:[#allocation7 + $0x268] sm:$0xff]
          %v511 = vld [vmem:[#allocation7 + $0x270] sm:$0xff]
          %v512 = vld [vmem:[#allocation7 + $0x278] sm:$0xff]
          %v513 = vld [vmem:[#allocation7 + $0x280] sm:$0xff]
          %v514 = vld [vmem:[#allocation7 + $0x288] sm:$0xff]
          %v515 = vld [vmem:[#allocation7 + $0x290] sm:$0xff]
          %v516 = vld [vmem:[#allocation7 + $0x298] sm:$0xff]
          %v517 = vld [vmem:[#allocation7 + $0x2a0] sm:$0xff]
          %v518 = vld [vmem:[#allocation7 + $0x2a8] sm:$0xff]
          %v519 = vld [vmem:[#allocation7 + $0x2b0] sm:$0xff]
          %v520 = vld [vmem:[#allocation7 + $0x2b8] sm:$0xff]
          %v521 = vld [vmem:[#allocation7 + $0x2c0] sm:$0xff]
          %v522 = vld [vmem:[#allocation7 + $0x2c8] sm:$0xff]
          %v523 = vld [vmem:[#allocation7 + $0x2d0] sm:$0xff]
          %v524 = vld [vmem:[#allocation7 + $0x2d8] sm:$0xff]
          %v525 = vld [vmem:[#allocation7 + $0x2e0] sm:$0xff]
          %v526 = vld [vmem:[#allocation7 + $0x2e8] sm:$0xff]
          %v527 = vld [vmem:[#allocation7 + $0x2f0] sm:$0xff]
          %v528 = vld [vmem:[#allocation7 + $0x2f8] sm:$0xff]
          %v529 = vld [vmem:[#allocation7 + $0x300] sm:$0xff]
          %v530 = vld [vmem:[#allocation7 + $0x308] sm:$0xff]
          %v531 = vld [vmem:[#allocation7 + $0x310] sm:$0xff]
          %v532 = vld [vmem:[#allocation7 + $0x318] sm:$0xff]
          %v533 = vld [vmem:[#allocation7 + $0x320] sm:$0xff]
          %v534 = vld [vmem:[#allocation7 + $0x328] sm:$0xff]
          %v535 = vld [vmem:[#allocation7 + $0x330] sm:$0xff]
          %v536 = vld [vmem:[#allocation7 + $0x338] sm:$0xff]
          %v537 = vld [vmem:[#allocation7 + $0x340] sm:$0xff]
          %v538 = vld [vmem:[#allocation7 + $0x348] sm:$0xff]
          %v539 = vld [vmem:[#allocation7 + $0x350] sm:$0xff]
          %v540 = vld [vmem:[#allocation7 + $0x358] sm:$0xff]
          %v541 = vld [vmem:[#allocation7 + $0x360] sm:$0xff]
          %v542 = vld [vmem:[#allocation7 + $0x368] sm:$0xff]
          %v543 = vld [vmem:[#allocation7 + $0x370] sm:$0xff]
          %v544 = vld [vmem:[#allocation7 + $0x378] sm:$0xff]
          %v545 = vld [vmem:[#allocation7 + $0x380] sm:$0xff]
          %v546 = vld [vmem:[#allocation7 + $0x388] sm:$0xff]
          %v547 = vld [vmem:[#allocation7 + $0x390] sm:$0xff]
          %v548 = vld [vmem:[#allocation7 + $0x398] sm:$0xff]
          %v549 = vld [vmem:[#allocation7 + $0x3a0] sm:$0xff]
          %v550 = vld [vmem:[#allocation7 + $0x3a8] sm:$0xff]
          %v551 = vld [vmem:[#allocation7 + $0x3b0] sm:$0xff]
          %v552 = vld [vmem:[#allocation7 + $0x3b8] sm:$0xff]
          %v553 = vld [vmem:[#allocation7 + $0x3c0] sm:$0xff]
          %v554 = vld [vmem:[#allocation7 + $0x3c8] sm:$0xff]
          %v555 = vld [vmem:[#allocation7 + $0x3d0] sm:$0xff]
          %v556 = vld [vmem:[#allocation7 + $0x3d8] sm:$0xff]
          %v557 = vld [vmem:[#allocation7 + $0x3e0] sm:$0xff]
          %v558 = vld [vmem:[#allocation7 + $0x3e8] sm:$0xff]
          %v559 = vld [vmem:[#allocation7 + $0x3f0] sm:$0xff]
          %v560 = vld [vmem:[#allocation7 + $0x3f8] sm:$0xff]
          %v561 = vld [vmem:[#allocation7 + $0x400] sm:$0xff]
          %v562 = vld [vmem:[#allocation7 + $0x408] sm:$0xff]
          %v563 = vld [vmem:[#allocation7 + $0x410] sm:$0xff]
          %v564 = vld [vmem:[#allocation7 + $0x418] sm:$0xff]
          %v565 = vld [vmem:[#allocation7 + $0x420] sm:$0xff]
          %v566 = vld [vmem:[#allocation7 + $0x428] sm:$0xff]
          %v567 = vld [vmem:[#allocation7 + $0x430] sm:$0xff]
          %v568 = vld [vmem:[#allocation7 + $0x438] sm:$0xff]
          %v569 = vld [vmem:[#allocation7 + $0x440] sm:$0xff]
          %v570 = vld [vmem:[#allocation7 + $0x448] sm:$0xff]
          %v571 = vld [vmem:[#allocation7 + $0x450] sm:$0xff]
          %v572 = vld [vmem:[#allocation7 + $0x458] sm:$0xff]
          %v573 = vld [vmem:[#allocation7 + $0x460] sm:$0xff]
          %v574 = vld [vmem:[#allocation7 + $0x468] sm:$0xff]
          %v575 = vld [vmem:[#allocation7 + $0x470] sm:$0xff]
          %v576 = vld [vmem:[#allocation7 + $0x478] sm:$0xff]
          %v577 = vld [vmem:[#allocation7 + $0x480] sm:$0xff]
          %v578 = vld [vmem:[#allocation7 + $0x488] sm:$0xff]
          %v579 = vld [vmem:[#allocation7 + $0x490] sm:$0xff]
          %v580 = vld [vmem:[#allocation7 + $0x498] sm:$0xff]
          %v581 = vld [vmem:[#allocation7 + $0x4a0] sm:$0xff]
          %v582 = vld [vmem:[#allocation7 + $0x4a8] sm:$0xff]
          %v583 = vld [vmem:[#allocation7 + $0x4b0] sm:$0xff]
          %v584 = vld [vmem:[#allocation7 + $0x4b8] sm:$0xff]
          %v585 = vld [vmem:[#allocation7 + $0x4c0] sm:$0xff]
          %v586 = vld [vmem:[#allocation7 + $0x4c8] sm:$0xff]
          %v587 = vld [vmem:[#allocation7 + $0x4d0] sm:$0xff]
          %v588 = vld [vmem:[#allocation7 + $0x4d8] sm:$0xff]
          %v589 = vld [vmem:[#allocation7 + $0x4e0] sm:$0xff]
          %v590 = vld [vmem:[#allocation7 + $0x4e8] sm:$0xff]
          %v591 = vld [vmem:[#allocation7 + $0x4f0] sm:$0xff]
          %v592 = vld [vmem:[#allocation7 + $0x4f8] sm:$0xff]
          %v593 = vld [vmem:[#allocation7 + $0x500] sm:$0xff]
          %v594 = vld [vmem:[#allocation7 + $0x508] sm:$0xff]
          %v595 = vld [vmem:[#allocation7 + $0x510] sm:$0xff]
          %v596 = vld [vmem:[#allocation7 + $0x518] sm:$0xff]
          %v597 = vld [vmem:[#allocation7 + $0x520] sm:$0xff]
          %v598 = vld [vmem:[#allocation7 + $0x528] sm:$0xff]
          %v599 = vld [vmem:[#allocation7 + $0x530] sm:$0xff]
          %v600 = vld [vmem:[#allocation7 + $0x538] sm:$0xff]
          %v601 = vld [vmem:[#allocation7 + $0x540] sm:$0xff]
          %v602 = vld [vmem:[#allocation7 + $0x548] sm:$0xff]
          %v603 = vld [vmem:[#allocation7 + $0x550] sm:$0xff]
          %v604 = vld [vmem:[#allocation7 + $0x558] sm:$0xff]
          %v605 = vld [vmem:[#allocation7 + $0x560] sm:$0xff]
          %v606 = vld [vmem:[#allocation7 + $0x568] sm:$0xff]
          %v607 = vld [vmem:[#allocation7 + $0x570] sm:$0xff]
          %v608 = vld [vmem:[#allocation7 + $0x578] sm:$0xff]
          %v609 = vld [vmem:[#allocation7 + $0x580] sm:$0xff]
          %v610 = vld [vmem:[#allocation7 + $0x588] sm:$0xff]
          %v611 = vld [vmem:[#allocation7 + $0x590] sm:$0xff]
          %v612 = vld [vmem:[#allocation7 + $0x598] sm:$0xff]
          %v613 = vld [vmem:[#allocation7 + $0x5a0] sm:$0xff]
          %v614 = vld [vmem:[#allocation7 + $0x5a8] sm:$0xff]
          %v615 = vld [vmem:[#allocation7 + $0x5b0] sm:$0xff]
          %v616 = vld [vmem:[#allocation7 + $0x5b8] sm:$0xff]
          %v617 = vld [vmem:[#allocation7 + $0x5c0] sm:$0xff]
          %v618 = vld [vmem:[#allocation7 + $0x5c8] sm:$0xff]
          %v619 = vld [vmem:[#allocation7 + $0x5d0] sm:$0xff]
          %v620 = vld [vmem:[#allocation7 + $0x5d8] sm:$0xff]
          %v621 = vld [vmem:[#allocation7 + $0x5e0] sm:$0xff]
          %v622 = vld [vmem:[#allocation7 + $0x5e8] sm:$0xff]
          %v623 = vld [vmem:[#allocation7 + $0x5f0] sm:$0xff]
          %v624 = vld [vmem:[#allocation7 + $0x5f8] sm:$0xff]
          %v625 = vld [vmem:[#allocation7 + $0x600] sm:$0xff]
          %v626 = vld [vmem:[#allocation7 + $0x608] sm:$0xff]
          %v627 = vld [vmem:[#allocation7 + $0x610] sm:$0xff]
          %v628 = vld [vmem:[#allocation7 + $0x618] sm:$0xff]
          %v629 = vld [vmem:[#allocation7 + $0x620] sm:$0xff]
          %v630 = vld [vmem:[#allocation7 + $0x628] sm:$0xff]
          %v631 = vld [vmem:[#allocation7 + $0x630] sm:$0xff]
          %v632 = vld [vmem:[#allocation7 + $0x638] sm:$0xff]
          %v633 = vld [vmem:[#allocation7 + $0x640] sm:$0xff]
          %v634 = vld [vmem:[#allocation7 + $0x648] sm:$0xff]
          %v635 = vld [vmem:[#allocation7 + $0x650] sm:$0xff]
          %v636 = vld [vmem:[#allocation7 + $0x658] sm:$0xff]
          %v637 = vld [vmem:[#allocation7 + $0x660] sm:$0xff]
          %v638 = vld [vmem:[#allocation7 + $0x668] sm:$0xff]
          %v639 = vld [vmem:[#allocation7 + $0x670] sm:$0xff]
          %v640 = vld [vmem:[#allocation7 + $0x678] sm:$0xff]
          %v641 = vld [vmem:[#allocation7 + $0x680] sm:$0xff]
          %v642 = vld [vmem:[#allocation7 + $0x688] sm:$0xff]
          %v643 = vld [vmem:[#allocation7 + $0x690] sm:$0xff]
          %v644 = vld [vmem:[#allocation7 + $0x698] sm:$0xff]
          %v645 = vld [vmem:[#allocation7 + $0x6a0] sm:$0xff]
          %v646 = vld [vmem:[#allocation7 + $0x6a8] sm:$0xff]
          %v647 = vld [vmem:[#allocation7 + $0x6b0] sm:$0xff]
          %v648 = vld [vmem:[#allocation7 + $0x6b8] sm:$0xff]
          %v649 = vld [vmem:[#allocation7 + $0x6c0] sm:$0xff]
          %v650 = vld [vmem:[#allocation7 + $0x6c8] sm:$0xff]
          %v651 = vld [vmem:[#allocation7 + $0x6d0] sm:$0xff]
          %v652 = vld [vmem:[#allocation7 + $0x6d8] sm:$0xff]
          %v653 = vld [vmem:[#allocation7 + $0x6e0] sm:$0xff]
          %v654 = vld [vmem:[#allocation7 + $0x6e8] sm:$0xff]
          %v655 = vld [vmem:[#allocation7 + $0x6f0] sm:$0xff]
          %v656 = vld [vmem:[#allocation7 + $0x6f8] sm:$0xff]
          %v657 = vld [vmem:[#allocation7 + $0x700] sm:$0xff]
          %v658 = vld [vmem:[#allocation7 + $0x708] sm:$0xff]
          %v659 = vld [vmem:[#allocation7 + $0x710] sm:$0xff]
          %v660 = vld [vmem:[#allocation7 + $0x718] sm:$0xff]
          %v661 = vld [vmem:[#allocation7 + $0x720] sm:$0xff]
          %v662 = vld [vmem:[#allocation7 + $0x728] sm:$0xff]
          %v663 = vld [vmem:[#allocation7 + $0x730] sm:$0xff]
          %v664 = vld [vmem:[#allocation7 + $0x738] sm:$0xff]
          %v665 = vld [vmem:[#allocation7 + $0x740] sm:$0xff]
          %v666 = vld [vmem:[#allocation7 + $0x748] sm:$0xff]
          %v667 = vld [vmem:[#allocation7 + $0x750] sm:$0xff]
          %v668 = vld [vmem:[#allocation7 + $0x758] sm:$0xff]
          %v669 = vld [vmem:[#allocation7 + $0x760] sm:$0xff]
          %v670 = vld [vmem:[#allocation7 + $0x768] sm:$0xff]
          %v671 = vld [vmem:[#allocation7 + $0x770] sm:$0xff]
          %v672 = vld [vmem:[#allocation7 + $0x778] sm:$0xff]
          %v673 = vld [vmem:[#allocation7 + $0x780] sm:$0xff]
          %v674 = vld [vmem:[#allocation7 + $0x788] sm:$0xff]
          %v675 = vld [vmem:[#allocation7 + $0x790] sm:$0xff]
          %v676 = vld [vmem:[#allocation7 + $0x798] sm:$0xff]
          %v677 = vld [vmem:[#allocation7 + $0x7a0] sm:$0xff]
          %v678 = vld [vmem:[#allocation7 + $0x7a8] sm:$0xff]
          %v679 = vld [vmem:[#allocation7 + $0x7b0] sm:$0xff]
          %v680 = vld [vmem:[#allocation7 + $0x7b8] sm:$0xff]
          %v681 = vld [vmem:[#allocation7 + $0x7c0] sm:$0xff]
          %v682 = vld [vmem:[#allocation7 + $0x7c8] sm:$0xff]
          %v683 = vld [vmem:[#allocation7 + $0x7d0] sm:$0xff]
          %v684 = vld [vmem:[#allocation7 + $0x7d8] sm:$0xff]
          %v685 = vld [vmem:[#allocation7 + $0x7e0] sm:$0xff]
          %v686 = vld [vmem:[#allocation7 + $0x7e8] sm:$0xff]
          %v687 = vld [vmem:[#allocation7 + $0x7f0] sm:$0xff]
          %v688 = vld [vmem:[#allocation7 + $0x7f8] sm:$0xff]
          %v689 = vld [vmem:[#allocation9] sm:$0xff]
          %v690 = vld [vmem:[#allocation9 + $0x8] sm:$0xff]
          %v693 = vperm.slane %v689, 0
          %v694 = vperm.slane %v689, 1
          %v695 = vperm.slane %v689, 2
          %v696 = vperm.slane %v689, 3
          %v697 = vperm.slane %v689, 4
          %v698 = vperm.slane %v689, 5
          %v699 = vperm.slane %v689, 6
          %v700 = vperm.slane %v689, 7
          %v701 = vperm.slane %v690, 0
          %v702 = vperm.slane %v690, 1
          %v703 = vperm.slane %v690, 2
          %v704 = vperm.slane %v690, 3
          %v705 = vperm.slane %v690, 4
          %v706 = vperm.slane %v690, 5
          %v707 = vperm.slane %v690, 6
          %v708 = vperm.slane %v690, 7
          %v726 = vunpack.c.l.b16 %v432
          %v727 = vunpack.c.h.b16 %v432
          %v728 = vpack.c.b16 %v726, %v726
          %v729 = vpack.c.b16 %v727, %v727
          %v988 = vunpack.c.l.b16 %v433
          %v989 = vunpack.c.h.b16 %v433
          %v990 = vunpack.c.l.b16 %v434
          %v991 = vunpack.c.h.b16 %v434
          %v992 = vunpack.c.l.b16 %v435
          %v993 = vunpack.c.h.b16 %v435
          %v994 = vunpack.c.l.b16 %v436
          %v995 = vunpack.c.h.b16 %v436
          %v996 = vunpack.c.l.b16 %v437
          %v997 = vunpack.c.h.b16 %v437
          %v998 = vunpack.c.l.b16 %v438
          %v999 = vunpack.c.h.b16 %v438
          %v1000 = vunpack.c.l.b16 %v439
          %v1001 = vunpack.c.h.b16 %v439
          %v1002 = vunpack.c.l.b16 %v440
          %v1003 = vunpack.c.h.b16 %v440
          %v1004 = vunpack.c.l.b16 %v441
          %v1005 = vunpack.c.h.b16 %v441
          %v1006 = vunpack.c.l.b16 %v442
          %v1007 = vunpack.c.h.b16 %v442
          %v1008 = vunpack.c.l.b16 %v443
          %v1009 = vunpack.c.h.b16 %v443
          %v1010 = vunpack.c.l.b16 %v444
          %v1011 = vunpack.c.h.b16 %v444
          %v1012 = vunpack.c.l.b16 %v445
          %v1013 = vunpack.c.h.b16 %v445
          %v1014 = vunpack.c.l.b16 %v446
          %v1015 = vunpack.c.h.b16 %v446
          %v1016 = vunpack.c.l.b16 %v447
          %v1017 = vunpack.c.h.b16 %v447
          %v1018 = vunpack.c.l.b16 %v448
          %v1019 = vunpack.c.h.b16 %v448
          %v1020 = vunpack.c.l.b16 %v449
          %v1021 = vunpack.c.h.b16 %v449
          %v1022 = vunpack.c.l.b16 %v450
          %v1023 = vunpack.c.h.b16 %v450
          %v1024 = vunpack.c.l.b16 %v451
          %v1025 = vunpack.c.h.b16 %v451
          %v1026 = vunpack.c.l.b16 %v452
          %v1027 = vunpack.c.h.b16 %v452
          %v1028 = vunpack.c.l.b16 %v453
          %v1029 = vunpack.c.h.b16 %v453
          %v1030 = vunpack.c.l.b16 %v454
          %v1031 = vunpack.c.h.b16 %v454
          %v1032 = vunpack.c.l.b16 %v455
          %v1033 = vunpack.c.h.b16 %v455
          %v1034 = vunpack.c.l.b16 %v456
          %v1035 = vunpack.c.h.b16 %v456
          %v1036 = vunpack.c.l.b16 %v457
          %v1037 = vunpack.c.h.b16 %v457
          %v1038 = vunpack.c.l.b16 %v458
          %v1039 = vunpack.c.h.b16 %v458
          %v1040 = vunpack.c.l.b16 %v459
          %v1041 = vunpack.c.h.b16 %v459
          %v1042 = vunpack.c.l.b16 %v460
          %v1043 = vunpack.c.h.b16 %v460
          %v1044 = vunpack.c.l.b16 %v461
          %v1045 = vunpack.c.h.b16 %v461
          %v1046 = vunpack.c.l.b16 %v462
          %v1047 = vunpack.c.h.b16 %v462
          %v1048 = vunpack.c.l.b16 %v463
          %v1049 = vunpack.c.h.b16 %v463
          %v1050 = vunpack.c.l.b16 %v464
          %v1051 = vunpack.c.h.b16 %v464
          %v1052 = vunpack.c.l.b16 %v465
          %v1053 = vunpack.c.h.b16 %v465
          %v1054 = vunpack.c.l.b16 %v466
          %v1055 = vunpack.c.h.b16 %v466
          %v1056 = vunpack.c.l.b16 %v467
          %v1057 = vunpack.c.h.b16 %v467
          %v1058 = vunpack.c.l.b16 %v468
          %v1059 = vunpack.c.h.b16 %v468
          %v1060 = vunpack.c.l.b16 %v469
          %v1061 = vunpack.c.h.b16 %v469
          %v1062 = vunpack.c.l.b16 %v470
          %v1063 = vunpack.c.h.b16 %v470
          %v1064 = vunpack.c.l.b16 %v471
          %v1065 = vunpack.c.h.b16 %v471
          %v1066 = vunpack.c.l.b16 %v472
          %v1067 = vunpack.c.h.b16 %v472
          %v1068 = vunpack.c.l.b16 %v473
          %v1069 = vunpack.c.h.b16 %v473
          %v1070 = vunpack.c.l.b16 %v474
          %v1071 = vunpack.c.h.b16 %v474
          %v1072 = vunpack.c.l.b16 %v475
          %v1073 = vunpack.c.h.b16 %v475
          %v1074 = vunpack.c.l.b16 %v476
          %v1075 = vunpack.c.h.b16 %v476
          %v1076 = vunpack.c.l.b16 %v477
          %v1077 = vunpack.c.h.b16 %v477
          %v1078 = vunpack.c.l.b16 %v478
          %v1079 = vunpack.c.h.b16 %v478
          %v1080 = vunpack.c.l.b16 %v479
          %v1081 = vunpack.c.h.b16 %v479
          %v1082 = vunpack.c.l.b16 %v480
          %v1083 = vunpack.c.h.b16 %v480
          %v1084 = vunpack.c.l.b16 %v481
          %v1085 = vunpack.c.h.b16 %v481
          %v1086 = vunpack.c.l.b16 %v482
          %v1087 = vunpack.c.h.b16 %v482
          %v1088 = vunpack.c.l.b16 %v483
          %v1089 = vunpack.c.h.b16 %v483
          %v1090 = vunpack.c.l.b16 %v484
          %v1091 = vunpack.c.h.b16 %v484
          %v1092 = vunpack.c.l.b16 %v485
          %v1093 = vunpack.c.h.b16 %v485
          %v1094 = vunpack.c.l.b16 %v486
          %v1095 = vunpack.c.h.b16 %v486
          %v1096 = vunpack.c.l.b16 %v487
          %v1097 = vunpack.c.h.b16 %v487
          %v1098 = vunpack.c.l.b16 %v488
          %v1099 = vunpack.c.h.b16 %v488
          %v1100 = vunpack.c.l.b16 %v489
          %v1101 = vunpack.c.h.b16 %v489
          %v1102 = vunpack.c.l.b16 %v490
          %v1103 = vunpack.c.h.b16 %v490
          %v1104 = vunpack.c.l.b16 %v491
          %v1105 = vunpack.c.h.b16 %v491
          %v1106 = vunpack.c.l.b16 %v492
          %v1107 = vunpack.c.h.b16 %v492
          %v1108 = vunpack.c.l.b16 %v493
          %v1109 = vunpack.c.h.b16 %v493
          %v1110 = vunpack.c.l.b16 %v494
          %v1111 = vunpack.c.h.b16 %v494
          %v1112 = vunpack.c.l.b16 %v495
          %v1113 = vunpack.c.h.b16 %v495
          %v1114 = vunpack.c.l.b16 %v496
          %v1115 = vunpack.c.h.b16 %v496
          %v1116 = vunpack.c.l.b16 %v497
          %v1117 = vunpack.c.h.b16 %v497
          %v1118 = vunpack.c.l.b16 %v498
          %v1119 = vunpack.c.h.b16 %v498
          %v1120 = vunpack.c.l.b16 %v499
          %v1121 = vunpack.c.h.b16 %v499
          %v1122 = vunpack.c.l.b16 %v500
          %v1123 = vunpack.c.h.b16 %v500
          %v1124 = vunpack.c.l.b16 %v501
          %v1125 = vunpack.c.h.b16 %v501
          %v1126 = vunpack.c.l.b16 %v502
          %v1127 = vunpack.c.h.b16 %v502
          %v1128 = vunpack.c.l.b16 %v503
          %v1129 = vunpack.c.h.b16 %v503
          %v1130 = vunpack.c.l.b16 %v504
          %v1131 = vunpack.c.h.b16 %v504
          %v1132 = vunpack.c.l.b16 %v505
          %v1133 = vunpack.c.h.b16 %v505
          %v1134 = vunpack.c.l.b16 %v506
          %v1135 = vunpack.c.h.b16 %v506
          %v1136 = vunpack.c.l.b16 %v507
          %v1137 = vunpack.c.h.b16 %v507
          %v1138 = vunpack.c.l.b16 %v508
          %v1139 = vunpack.c.h.b16 %v508
          %v1140 = vunpack.c.l.b16 %v509
          %v1141 = vunpack.c.h.b16 %v509
          %v1142 = vunpack.c.l.b16 %v510
          %v1143 = vunpack.c.h.b16 %v510
          %v1144 = vunpack.c.l.b16 %v511
          %v1145 = vunpack.c.h.b16 %v511
          %v1146 = vunpack.c.l.b16 %v512
          %v1147 = vunpack.c.h.b16 %v512
          %v1148 = vunpack.c.l.b16 %v513
          %v1149 = vunpack.c.h.b16 %v513
          %v1150 = vunpack.c.l.b16 %v514
          %v1151 = vunpack.c.h.b16 %v514
          %v1152 = vunpack.c.l.b16 %v515
          %v1153 = vunpack.c.h.b16 %v515
          %v1154 = vunpack.c.l.b16 %v516
          %v1155 = vunpack.c.h.b16 %v516
          %v1156 = vunpack.c.l.b16 %v517
          %v1157 = vunpack.c.h.b16 %v517
          %v1158 = vunpack.c.l.b16 %v518
          %v1159 = vunpack.c.h.b16 %v518
          %v1160 = vunpack.c.l.b16 %v519
          %v1161 = vunpack.c.h.b16 %v519
          %v1162 = vunpack.c.l.b16 %v520
          %v1163 = vunpack.c.h.b16 %v520
          %v1164 = vunpack.c.l.b16 %v521
          %v1165 = vunpack.c.h.b16 %v521
          %v1166 = vunpack.c.l.b16 %v522
          %v1167 = vunpack.c.h.b16 %v522
          %v1168 = vunpack.c.l.b16 %v523
          %v1169 = vunpack.c.h.b16 %v523
          %v1170 = vunpack.c.l.b16 %v524
          %v1171 = vunpack.c.h.b16 %v524
          %v1172 = vunpack.c.l.b16 %v525
          %v1173 = vunpack.c.h.b16 %v525
          %v1174 = vunpack.c.l.b16 %v526
          %v1175 = vunpack.c.h.b16 %v526
          %v1176 = vunpack.c.l.b16 %v527
          %v1177 = vunpack.c.h.b16 %v527
          %v1178 = vunpack.c.l.b16 %v528
          %v1179 = vunpack.c.h.b16 %v528
          %v1180 = vunpack.c.l.b16 %v529
          %v1181 = vunpack.c.h.b16 %v529
          %v1182 = vunpack.c.l.b16 %v530
          %v1183 = vunpack.c.h.b16 %v530
          %v1184 = vunpack.c.l.b16 %v531
          %v1185 = vunpack.c.h.b16 %v531
          %v1186 = vunpack.c.l.b16 %v532
          %v1187 = vunpack.c.h.b16 %v532
          %v1188 = vunpack.c.l.b16 %v533
          %v1189 = vunpack.c.h.b16 %v533
          %v1190 = vunpack.c.l.b16 %v534
          %v1191 = vunpack.c.h.b16 %v534
          %v1192 = vunpack.c.l.b16 %v535
          %v1193 = vunpack.c.h.b16 %v535
          %v1194 = vunpack.c.l.b16 %v536
          %v1195 = vunpack.c.h.b16 %v536
          %v1196 = vunpack.c.l.b16 %v537
          %v1197 = vunpack.c.h.b16 %v537
          %v1198 = vunpack.c.l.b16 %v538
          %v1199 = vunpack.c.h.b16 %v538
          %v1200 = vunpack.c.l.b16 %v539
          %v1201 = vunpack.c.h.b16 %v539
          %v1202 = vunpack.c.l.b16 %v540
          %v1203 = vunpack.c.h.b16 %v540
          %v1204 = vunpack.c.l.b16 %v541
          %v1205 = vunpack.c.h.b16 %v541
          %v1206 = vunpack.c.l.b16 %v542
          %v1207 = vunpack.c.h.b16 %v542
          %v1208 = vunpack.c.l.b16 %v543
          %v1209 = vunpack.c.h.b16 %v543
          %v1210 = vunpack.c.l.b16 %v544
          %v1211 = vunpack.c.h.b16 %v544
          %v1212 = vunpack.c.l.b16 %v545
          %v1213 = vunpack.c.h.b16 %v545
          %v1214 = vunpack.c.l.b16 %v546
          %v1215 = vunpack.c.h.b16 %v546
          %v1216 = vunpack.c.l.b16 %v547
          %v1217 = vunpack.c.h.b16 %v547
          %v1218 = vunpack.c.l.b16 %v548
          %v1219 = vunpack.c.h.b16 %v548
          %v1220 = vunpack.c.l.b16 %v549
          %v1221 = vunpack.c.h.b16 %v549
          %v1222 = vunpack.c.l.b16 %v550
          %v1223 = vunpack.c.h.b16 %v550
          %v1224 = vunpack.c.l.b16 %v551
          %v1225 = vunpack.c.h.b16 %v551
          %v1226 = vunpack.c.l.b16 %v552
          %v1227 = vunpack.c.h.b16 %v552
          %v1228 = vunpack.c.l.b16 %v553
          %v1229 = vunpack.c.h.b16 %v553
          %v1230 = vunpack.c.l.b16 %v554
          %v1231 = vunpack.c.h.b16 %v554
          %v1232 = vunpack.c.l.b16 %v555
          %v1233 = vunpack.c.h.b16 %v555
          %v1234 = vunpack.c.l.b16 %v556
          %v1235 = vunpack.c.h.b16 %v556
          %v1236 = vunpack.c.l.b16 %v557
          %v1237 = vunpack.c.h.b16 %v557
          %v1238 = vunpack.c.l.b16 %v558
          %v1239 = vunpack.c.h.b16 %v558
          %v1240 = vunpack.c.l.b16 %v559
          %v1241 = vunpack.c.h.b16 %v559
          %v1242 = vunpack.c.l.b16 %v560
          %v1243 = vunpack.c.h.b16 %v560
          %v1244 = vunpack.c.l.b16 %v561
          %v1245 = vunpack.c.h.b16 %v561
          %v1246 = vunpack.c.l.b16 %v562
          %v1247 = vunpack.c.h.b16 %v562
          %v1248 = vunpack.c.l.b16 %v563
          %v1249 = vunpack.c.h.b16 %v563
          %v1250 = vunpack.c.l.b16 %v564
          %v1251 = vunpack.c.h.b16 %v564
          %v1252 = vunpack.c.l.b16 %v565
          %v1253 = vunpack.c.h.b16 %v565
          %v1254 = vunpack.c.l.b16 %v566
          %v1255 = vunpack.c.h.b16 %v566
          %v1256 = vunpack.c.l.b16 %v567
          %v1257 = vunpack.c.h.b16 %v567
          %v1258 = vunpack.c.l.b16 %v568
          %v1259 = vunpack.c.h.b16 %v568
          %v1260 = vunpack.c.l.b16 %v569
          %v1261 = vunpack.c.h.b16 %v569
          %v1262 = vunpack.c.l.b16 %v570
          %v1263 = vunpack.c.h.b16 %v570
          %v1264 = vunpack.c.l.b16 %v571
          %v1265 = vunpack.c.h.b16 %v571
          %v1266 = vunpack.c.l.b16 %v572
          %v1267 = vunpack.c.h.b16 %v572
          %v1268 = vunpack.c.l.b16 %v573
          %v1269 = vunpack.c.h.b16 %v573
          %v1270 = vunpack.c.l.b16 %v574
          %v1271 = vunpack.c.h.b16 %v574
          %v1272 = vunpack.c.l.b16 %v575
          %v1273 = vunpack.c.h.b16 %v575
          %v1274 = vunpack.c.l.b16 %v576
          %v1275 = vunpack.c.h.b16 %v576
          %v1276 = vunpack.c.l.b16 %v577
          %v1277 = vunpack.c.h.b16 %v577
          %v1278 = vunpack.c.l.b16 %v578
          %v1279 = vunpack.c.h.b16 %v578
          %v1280 = vunpack.c.l.b16 %v579
          %v1281 = vunpack.c.h.b16 %v579
          %v1282 = vunpack.c.l.b16 %v580
          %v1283 = vunpack.c.h.b16 %v580
          %v1284 = vunpack.c.l.b16 %v581
          %v1285 = vunpack.c.h.b16 %v581
          %v1286 = vunpack.c.l.b16 %v582
          %v1287 = vunpack.c.h.b16 %v582
          %v1288 = vunpack.c.l.b16 %v583
          %v1289 = vunpack.c.h.b16 %v583
          %v1290 = vunpack.c.l.b16 %v584
          %v1291 = vunpack.c.h.b16 %v584
          %v1292 = vunpack.c.l.b16 %v585
          %v1293 = vunpack.c.h.b16 %v585
          %v1294 = vunpack.c.l.b16 %v586
          %v1295 = vunpack.c.h.b16 %v586
          %v1296 = vunpack.c.l.b16 %v587
          %v1297 = vunpack.c.h.b16 %v587
          %v1298 = vunpack.c.l.b16 %v588
          %v1299 = vunpack.c.h.b16 %v588
          %v1300 = vunpack.c.l.b16 %v589
          %v1301 = vunpack.c.h.b16 %v589
          %v1302 = vunpack.c.l.b16 %v590
          %v1303 = vunpack.c.h.b16 %v590
          %v1304 = vunpack.c.l.b16 %v591
          %v1305 = vunpack.c.h.b16 %v591
          %v1306 = vunpack.c.l.b16 %v592
          %v1307 = vunpack.c.h.b16 %v592
          %v1308 = vunpack.c.l.b16 %v593
          %v1309 = vunpack.c.h.b16 %v593
          %v1310 = vunpack.c.l.b16 %v594
          %v1311 = vunpack.c.h.b16 %v594
          %v1312 = vunpack.c.l.b16 %v595
          %v1313 = vunpack.c.h.b16 %v595
          %v1314 = vunpack.c.l.b16 %v596
          %v1315 = vunpack.c.h.b16 %v596
          %v1316 = vunpack.c.l.b16 %v597
          %v1317 = vunpack.c.h.b16 %v597
          %v1318 = vunpack.c.l.b16 %v598
          %v1319 = vunpack.c.h.b16 %v598
          %v1320 = vunpack.c.l.b16 %v599
          %v1321 = vunpack.c.h.b16 %v599
          %v1322 = vunpack.c.l.b16 %v600
          %v1323 = vunpack.c.h.b16 %v600
          %v1324 = vunpack.c.l.b16 %v601
          %v1325 = vunpack.c.h.b16 %v601
          %v1326 = vunpack.c.l.b16 %v602
          %v1327 = vunpack.c.h.b16 %v602
          %v1328 = vunpack.c.l.b16 %v603
          %v1329 = vunpack.c.h.b16 %v603
          %v1330 = vunpack.c.l.b16 %v604
          %v1331 = vunpack.c.h.b16 %v604
          %v1332 = vunpack.c.l.b16 %v605
          %v1333 = vunpack.c.h.b16 %v605
          %v1334 = vunpack.c.l.b16 %v606
          %v1335 = vunpack.c.h.b16 %v606
          %v1336 = vunpack.c.l.b16 %v607
          %v1337 = vunpack.c.h.b16 %v607
          %v1338 = vunpack.c.l.b16 %v608
          %v1339 = vunpack.c.h.b16 %v608
          %v1340 = vunpack.c.l.b16 %v609
          %v1341 = vunpack.c.h.b16 %v609
          %v1342 = vunpack.c.l.b16 %v610
          %v1343 = vunpack.c.h.b16 %v610
          %v1344 = vunpack.c.l.b16 %v611
          %v1345 = vunpack.c.h.b16 %v611
          %v1346 = vunpack.c.l.b16 %v612
          %v1347 = vunpack.c.h.b16 %v612
          %v1348 = vunpack.c.l.b16 %v613
          %v1349 = vunpack.c.h.b16 %v613
          %v1350 = vunpack.c.l.b16 %v614
          %v1351 = vunpack.c.h.b16 %v614
          %v1352 = vunpack.c.l.b16 %v615
          %v1353 = vunpack.c.h.b16 %v615
          %v1354 = vunpack.c.l.b16 %v616
          %v1355 = vunpack.c.h.b16 %v616
          %v1356 = vunpack.c.l.b16 %v617
          %v1357 = vunpack.c.h.b16 %v617
          %v1358 = vunpack.c.l.b16 %v618
          %v1359 = vunpack.c.h.b16 %v618
          %v1360 = vunpack.c.l.b16 %v619
          %v1361 = vunpack.c.h.b16 %v619
          %v1362 = vunpack.c.l.b16 %v620
          %v1363 = vunpack.c.h.b16 %v620
          %v1364 = vunpack.c.l.b16 %v621
          %v1365 = vunpack.c.h.b16 %v621
          %v1366 = vunpack.c.l.b16 %v622
          %v1367 = vunpack.c.h.b16 %v622
          %v1368 = vunpack.c.l.b16 %v623
          %v1369 = vunpack.c.h.b16 %v623
          %v1370 = vunpack.c.l.b16 %v624
          %v1371 = vunpack.c.h.b16 %v624
          %v1372 = vunpack.c.l.b16 %v625
          %v1373 = vunpack.c.h.b16 %v625
          %v1374 = vunpack.c.l.b16 %v626
          %v1375 = vunpack.c.h.b16 %v626
          %v1376 = vunpack.c.l.b16 %v627
          %v1377 = vunpack.c.h.b16 %v627
          %v1378 = vunpack.c.l.b16 %v628
          %v1379 = vunpack.c.h.b16 %v628
          %v1380 = vunpack.c.l.b16 %v629
          %v1381 = vunpack.c.h.b16 %v629
          %v1382 = vunpack.c.l.b16 %v630
          %v1383 = vunpack.c.h.b16 %v630
          %v1384 = vunpack.c.l.b16 %v631
          %v1385 = vunpack.c.h.b16 %v631
          %v1386 = vunpack.c.l.b16 %v632
          %v1387 = vunpack.c.h.b16 %v632
          %v1388 = vunpack.c.l.b16 %v633
          %v1389 = vunpack.c.h.b16 %v633
          %v1390 = vunpack.c.l.b16 %v634
          %v1391 = vunpack.c.h.b16 %v634
          %v1392 = vunpack.c.l.b16 %v635
          %v1393 = vunpack.c.h.b16 %v635
          %v1394 = vunpack.c.l.b16 %v636
          %v1395 = vunpack.c.h.b16 %v636
          %v1396 = vunpack.c.l.b16 %v637
          %v1397 = vunpack.c.h.b16 %v637
          %v1398 = vunpack.c.l.b16 %v638
          %v1399 = vunpack.c.h.b16 %v638
          %v1400 = vunpack.c.l.b16 %v639
          %v1401 = vunpack.c.h.b16 %v639
          %v1402 = vunpack.c.l.b16 %v640
          %v1403 = vunpack.c.h.b16 %v640
          %v1404 = vunpack.c.l.b16 %v641
          %v1405 = vunpack.c.h.b16 %v641
          %v1406 = vunpack.c.l.b16 %v642
          %v1407 = vunpack.c.h.b16 %v642
          %v1408 = vunpack.c.l.b16 %v643
          %v1409 = vunpack.c.h.b16 %v643
          %v1410 = vunpack.c.l.b16 %v644
          %v1411 = vunpack.c.h.b16 %v644
          %v1412 = vunpack.c.l.b16 %v645
          %v1413 = vunpack.c.h.b16 %v645
          %v1414 = vunpack.c.l.b16 %v646
          %v1415 = vunpack.c.h.b16 %v646
          %v1416 = vunpack.c.l.b16 %v647
          %v1417 = vunpack.c.h.b16 %v647
          %v1418 = vunpack.c.l.b16 %v648
          %v1419 = vunpack.c.h.b16 %v648
          %v1420 = vunpack.c.l.b16 %v649
          %v1421 = vunpack.c.h.b16 %v649
          %v1422 = vunpack.c.l.b16 %v650
          %v1423 = vunpack.c.h.b16 %v650
          %v1424 = vunpack.c.l.b16 %v651
          %v1425 = vunpack.c.h.b16 %v651
          %v1426 = vunpack.c.l.b16 %v652
          %v1427 = vunpack.c.h.b16 %v652
          %v1428 = vunpack.c.l.b16 %v653
          %v1429 = vunpack.c.h.b16 %v653
          %v1430 = vunpack.c.l.b16 %v654
          %v1431 = vunpack.c.h.b16 %v654
          %v1432 = vunpack.c.l.b16 %v655
          %v1433 = vunpack.c.h.b16 %v655
          %v1434 = vunpack.c.l.b16 %v656
          %v1435 = vunpack.c.h.b16 %v656
          %v1436 = vunpack.c.l.b16 %v657
          %v1437 = vunpack.c.h.b16 %v657
          %v1438 = vunpack.c.l.b16 %v658
          %v1439 = vunpack.c.h.b16 %v658
          %v1440 = vunpack.c.l.b16 %v659
          %v1441 = vunpack.c.h.b16 %v659
          %v1442 = vunpack.c.l.b16 %v660
          %v1443 = vunpack.c.h.b16 %v660
          %v1444 = vunpack.c.l.b16 %v661
          %v1445 = vunpack.c.h.b16 %v661
          %v1446 = vunpack.c.l.b16 %v662
          %v1447 = vunpack.c.h.b16 %v662
          %v1448 = vunpack.c.l.b16 %v663
          %v1449 = vunpack.c.h.b16 %v663
          %v1450 = vunpack.c.l.b16 %v664
          %v1451 = vunpack.c.h.b16 %v664
          %v1452 = vunpack.c.l.b16 %v665
          %v1453 = vunpack.c.h.b16 %v665
          %v1454 = vunpack.c.l.b16 %v666
          %v1455 = vunpack.c.h.b16 %v666
          %v1456 = vunpack.c.l.b16 %v667
          %v1457 = vunpack.c.h.b16 %v667
          %v1458 = vunpack.c.l.b16 %v668
          %v1459 = vunpack.c.h.b16 %v668
          %v1460 = vunpack.c.l.b16 %v669
          %v1461 = vunpack.c.h.b16 %v669
          %v1462 = vunpack.c.l.b16 %v670
          %v1463 = vunpack.c.h.b16 %v670
          %v1464 = vunpack.c.l.b16 %v671
          %v1465 = vunpack.c.h.b16 %v671
          %v1466 = vunpack.c.l.b16 %v672
          %v1467 = vunpack.c.h.b16 %v672
          %v1468 = vunpack.c.l.b16 %v673
          %v1469 = vunpack.c.h.b16 %v673
          %v1470 = vunpack.c.l.b16 %v674
          %v1471 = vunpack.c.h.b16 %v674
          %v1472 = vunpack.c.l.b16 %v675
          %v1473 = vunpack.c.h.b16 %v675
          %v1474 = vunpack.c.l.b16 %v676
          %v1475 = vunpack.c.h.b16 %v676
          %v1476 = vunpack.c.l.b16 %v677
          %v1477 = vunpack.c.h.b16 %v677
          %v1478 = vunpack.c.l.b16 %v678
          %v1479 = vunpack.c.h.b16 %v678
          %v1480 = vunpack.c.l.b16 %v679
          %v1481 = vunpack.c.h.b16 %v679
          %v1482 = vunpack.c.l.b16 %v680
          %v1483 = vunpack.c.h.b16 %v680
          %v1484 = vunpack.c.l.b16 %v681
          %v1485 = vunpack.c.h.b16 %v681
          %v1486 = vunpack.c.l.b16 %v682
          %v1487 = vunpack.c.h.b16 %v682
          %v1488 = vunpack.c.l.b16 %v683
          %v1489 = vunpack.c.h.b16 %v683
          %v1490 = vunpack.c.l.b16 %v684
          %v1491 = vunpack.c.h.b16 %v684
          %v1492 = vunpack.c.l.b16 %v685
          %v1493 = vunpack.c.h.b16 %v685
          %v1494 = vunpack.c.l.b16 %v686
          %v1495 = vunpack.c.h.b16 %v686
          %v1496 = vunpack.c.l.b16 %v687
          %v1497 = vunpack.c.h.b16 %v687
          %v1498 = vunpack.c.l.b16 %v688
          %v1499 = vunpack.c.h.b16 %v688
          %v1500 = vpack.c.b16 %v1004, %v988
          %v1501 = vpack.c.b16 %v1005, %v989
          %v1502 = vpack.c.b16 %v1006, %v990
          %v1503 = vpack.c.b16 %v1007, %v991
          %v1504 = vpack.c.b16 %v1008, %v992
          %v1505 = vpack.c.b16 %v1009, %v993
          %v1506 = vpack.c.b16 %v1010, %v994
          %v1507 = vpack.c.b16 %v1011, %v995
          %v1508 = vpack.c.b16 %v1012, %v996
          %v1509 = vpack.c.b16 %v1013, %v997
          %v1510 = vpack.c.b16 %v1014, %v998
          %v1511 = vpack.c.b16 %v1015, %v999
          %v1512 = vpack.c.b16 %v1016, %v1000
          %v1513 = vpack.c.b16 %v1017, %v1001
          %v1514 = vpack.c.b16 %v1018, %v1002
          %v1515 = vpack.c.b16 %v1019, %v1003
          %v1516 = vpack.c.b16 %v1036, %v1020
          %v1517 = vpack.c.b16 %v1037, %v1021
          %v1518 = vpack.c.b16 %v1038, %v1022
          %v1519 = vpack.c.b16 %v1039, %v1023
          %v1520 = vpack.c.b16 %v1040, %v1024
          %v1521 = vpack.c.b16 %v1041, %v1025
          %v1522 = vpack.c.b16 %v1042, %v1026
          %v1523 = vpack.c.b16 %v1043, %v1027
          %v1524 = vpack.c.b16 %v1044, %v1028
          %v1525 = vpack.c.b16 %v1045, %v1029
          %v1526 = vpack.c.b16 %v1046, %v1030
          %v1527 = vpack.c.b16 %v1047, %v1031
          %v1528 = vpack.c.b16 %v1048, %v1032
          %v1529 = vpack.c.b16 %v1049, %v1033
          %v1530 = vpack.c.b16 %v1050, %v1034
          %v1531 = vpack.c.b16 %v1051, %v1035
          %v1532 = vpack.c.b16 %v1068, %v1052
          %v1533 = vpack.c.b16 %v1069, %v1053
          %v1534 = vpack.c.b16 %v1070, %v1054
          %v1535 = vpack.c.b16 %v1071, %v1055
          %v1536 = vpack.c.b16 %v1072, %v1056
          %v1537 = vpack.c.b16 %v1073, %v1057
          %v1538 = vpack.c.b16 %v1074, %v1058
          %v1539 = vpack.c.b16 %v1075, %v1059
          %v1540 = vpack.c.b16 %v1076, %v1060
          %v1541 = vpack.c.b16 %v1077, %v1061
          %v1542 = vpack.c.b16 %v1078, %v1062
          %v1543 = vpack.c.b16 %v1079, %v1063
          %v1544 = vpack.c.b16 %v1080, %v1064
          %v1545 = vpack.c.b16 %v1081, %v1065
          %v1546 = vpack.c.b16 %v1082, %v1066
          %v1547 = vpack.c.b16 %v1083, %v1067
          %v1548 = vpack.c.b16 %v1100, %v1084
          %v1549 = vpack.c.b16 %v1101, %v1085
          %v1550 = vpack.c.b16 %v1102, %v1086
          %v1551 = vpack.c.b16 %v1103, %v1087
          %v1552 = vpack.c.b16 %v1104, %v1088
          %v1553 = vpack.c.b16 %v1105, %v1089
          %v1554 = vpack.c.b16 %v1106, %v1090
          %v1555 = vpack.c.b16 %v1107, %v1091
          %v1556 = vpack.c.b16 %v1108, %v1092
          %v1557 = vpack.c.b16 %v1109, %v1093
          %v1558 = vpack.c.b16 %v1110, %v1094
          %v1559 = vpack.c.b16 %v1111, %v1095
          %v1560 = vpack.c.b16 %v1112, %v1096
          %v1561 = vpack.c.b16 %v1113, %v1097
          %v1562 = vpack.c.b16 %v1114, %v1098
          %v1563 = vpack.c.b16 %v1115, %v1099
          %v1564 = vpack.c.b16 %v1132, %v1116
          %v1565 = vpack.c.b16 %v1133, %v1117
          %v1566 = vpack.c.b16 %v1134, %v1118
          %v1567 = vpack.c.b16 %v1135, %v1119
          %v1568 = vpack.c.b16 %v1136, %v1120
          %v1569 = vpack.c.b16 %v1137, %v1121
          %v1570 = vpack.c.b16 %v1138, %v1122
          %v1571 = vpack.c.b16 %v1139, %v1123
          %v1572 = vpack.c.b16 %v1140, %v1124
          %v1573 = vpack.c.b16 %v1141, %v1125
          %v1574 = vpack.c.b16 %v1142, %v1126
          %v1575 = vpack.c.b16 %v1143, %v1127
          %v1576 = vpack.c.b16 %v1144, %v1128
          %v1577 = vpack.c.b16 %v1145, %v1129
          %v1578 = vpack.c.b16 %v1146, %v1130
          %v1579 = vpack.c.b16 %v1147, %v1131
          %v1580 = vpack.c.b16 %v1164, %v1148
          %v1581 = vpack.c.b16 %v1165, %v1149
          %v1582 = vpack.c.b16 %v1166, %v1150
          %v1583 = vpack.c.b16 %v1167, %v1151
          %v1584 = vpack.c.b16 %v1168, %v1152
          %v1585 = vpack.c.b16 %v1169, %v1153
          %v1586 = vpack.c.b16 %v1170, %v1154
          %v1587 = vpack.c.b16 %v1171, %v1155
          %v1588 = vpack.c.b16 %v1172, %v1156
          %v1589 = vpack.c.b16 %v1173, %v1157
          %v1590 = vpack.c.b16 %v1174, %v1158
          %v1591 = vpack.c.b16 %v1175, %v1159
          %v1592 = vpack.c.b16 %v1176, %v1160
          %v1593 = vpack.c.b16 %v1177, %v1161
          %v1594 = vpack.c.b16 %v1178, %v1162
          %v1595 = vpack.c.b16 %v1179, %v1163
          %v1596 = vpack.c.b16 %v1196, %v1180
          %v1597 = vpack.c.b16 %v1197, %v1181
          %v1598 = vpack.c.b16 %v1198, %v1182
          %v1599 = vpack.c.b16 %v1199, %v1183
          %v1600 = vpack.c.b16 %v1200, %v1184
          %v1601 = vpack.c.b16 %v1201, %v1185
          %v1602 = vpack.c.b16 %v1202, %v1186
          %v1603 = vpack.c.b16 %v1203, %v1187
          %v1604 = vpack.c.b16 %v1204, %v1188
          %v1605 = vpack.c.b16 %v1205, %v1189
          %v1606 = vpack.c.b16 %v1206, %v1190
          %v1607 = vpack.c.b16 %v1207, %v1191
          %v1608 = vpack.c.b16 %v1208, %v1192
          %v1609 = vpack.c.b16 %v1209, %v1193
          %v1610 = vpack.c.b16 %v1210, %v1194
          %v1611 = vpack.c.b16 %v1211, %v1195
          %v1612 = vpack.c.b16 %v1228, %v1212
          %v1613 = vpack.c.b16 %v1229, %v1213
          %v1614 = vpack.c.b16 %v1230, %v1214
          %v1615 = vpack.c.b16 %v1231, %v1215
          %v1616 = vpack.c.b16 %v1232, %v1216
          %v1617 = vpack.c.b16 %v1233, %v1217
          %v1618 = vpack.c.b16 %v1234, %v1218
          %v1619 = vpack.c.b16 %v1235, %v1219
          %v1620 = vpack.c.b16 %v1236, %v1220
          %v1621 = vpack.c.b16 %v1237, %v1221
          %v1622 = vpack.c.b16 %v1238, %v1222
          %v1623 = vpack.c.b16 %v1239, %v1223
          %v1624 = vpack.c.b16 %v1240, %v1224
          %v1625 = vpack.c.b16 %v1241, %v1225
          %v1626 = vpack.c.b16 %v1242, %v1226
          %v1627 = vpack.c.b16 %v1243, %v1227
          %v1628 = vpack.c.b16 %v1260, %v1244
          %v1629 = vpack.c.b16 %v1261, %v1245
          %v1630 = vpack.c.b16 %v1262, %v1246
          %v1631 = vpack.c.b16 %v1263, %v1247
          %v1632 = vpack.c.b16 %v1264, %v1248
          %v1633 = vpack.c.b16 %v1265, %v1249
          %v1634 = vpack.c.b16 %v1266, %v1250
          %v1635 = vpack.c.b16 %v1267, %v1251
          %v1636 = vpack.c.b16 %v1268, %v1252
          %v1637 = vpack.c.b16 %v1269, %v1253
          %v1638 = vpack.c.b16 %v1270, %v1254
          %v1639 = vpack.c.b16 %v1271, %v1255
          %v1640 = vpack.c.b16 %v1272, %v1256
          %v1641 = vpack.c.b16 %v1273, %v1257
          %v1642 = vpack.c.b16 %v1274, %v1258
          %v1643 = vpack.c.b16 %v1275, %v1259
          %v1644 = vpack.c.b16 %v1292, %v1276
          %v1645 = vpack.c.b16 %v1293, %v1277
          %v1646 = vpack.c.b16 %v1294, %v1278
          %v1647 = vpack.c.b16 %v1295, %v1279
          %v1648 = vpack.c.b16 %v1296, %v1280
          %v1649 = vpack.c.b16 %v1297, %v1281
          %v1650 = vpack.c.b16 %v1298, %v1282
          %v1651 = vpack.c.b16 %v1299, %v1283
          %v1652 = vpack.c.b16 %v1300, %v1284
          %v1653 = vpack.c.b16 %v1301, %v1285
          %v1654 = vpack.c.b16 %v1302, %v1286
          %v1655 = vpack.c.b16 %v1303, %v1287
          %v1656 = vpack.c.b16 %v1304, %v1288
          %v1657 = vpack.c.b16 %v1305, %v1289
          %v1658 = vpack.c.b16 %v1306, %v1290
          %v1659 = vpack.c.b16 %v1307, %v1291
          %v1660 = vpack.c.b16 %v1324, %v1308
          %v1661 = vpack.c.b16 %v1325, %v1309
          %v1662 = vpack.c.b16 %v1326, %v1310
          %v1663 = vpack.c.b16 %v1327, %v1311
          %v1664 = vpack.c.b16 %v1328, %v1312
          %v1665 = vpack.c.b16 %v1329, %v1313
          %v1666 = vpack.c.b16 %v1330, %v1314
          %v1667 = vpack.c.b16 %v1331, %v1315
          %v1668 = vpack.c.b16 %v1332, %v1316
          %v1669 = vpack.c.b16 %v1333, %v1317
          %v1670 = vpack.c.b16 %v1334, %v1318
          %v1671 = vpack.c.b16 %v1335, %v1319
          %v1672 = vpack.c.b16 %v1336, %v1320
          %v1673 = vpack.c.b16 %v1337, %v1321
          %v1674 = vpack.c.b16 %v1338, %v1322
          %v1675 = vpack.c.b16 %v1339, %v1323
          %v1676 = vpack.c.b16 %v1356, %v1340
          %v1677 = vpack.c.b16 %v1357, %v1341
          %v1678 = vpack.c.b16 %v1358, %v1342
          %v1679 = vpack.c.b16 %v1359, %v1343
          %v1680 = vpack.c.b16 %v1360, %v1344
          %v1681 = vpack.c.b16 %v1361, %v1345
          %v1682 = vpack.c.b16 %v1362, %v1346
          %v1683 = vpack.c.b16 %v1363, %v1347
          %v1684 = vpack.c.b16 %v1364, %v1348
          %v1685 = vpack.c.b16 %v1365, %v1349
          %v1686 = vpack.c.b16 %v1366, %v1350
          %v1687 = vpack.c.b16 %v1367, %v1351
          %v1688 = vpack.c.b16 %v1368, %v1352
          %v1689 = vpack.c.b16 %v1369, %v1353
          %v1690 = vpack.c.b16 %v1370, %v1354
          %v1691 = vpack.c.b16 %v1371, %v1355
          %v1692 = vpack.c.b16 %v1388, %v1372
          %v1693 = vpack.c.b16 %v1389, %v1373
          %v1694 = vpack.c.b16 %v1390, %v1374
          %v1695 = vpack.c.b16 %v1391, %v1375
          %v1696 = vpack.c.b16 %v1392, %v1376
          %v1697 = vpack.c.b16 %v1393, %v1377
          %v1698 = vpack.c.b16 %v1394, %v1378
          %v1699 = vpack.c.b16 %v1395, %v1379
          %v1700 = vpack.c.b16 %v1396, %v1380
          %v1701 = vpack.c.b16 %v1397, %v1381
          %v1702 = vpack.c.b16 %v1398, %v1382
          %v1703 = vpack.c.b16 %v1399, %v1383
          %v1704 = vpack.c.b16 %v1400, %v1384
          %v1705 = vpack.c.b16 %v1401, %v1385
          %v1706 = vpack.c.b16 %v1402, %v1386
          %v1707 = vpack.c.b16 %v1403, %v1387
          %v1708 = vpack.c.b16 %v1420, %v1404
          %v1709 = vpack.c.b16 %v1421, %v1405
          %v1710 = vpack.c.b16 %v1422, %v1406
          %v1711 = vpack.c.b16 %v1423, %v1407
          %v1712 = vpack.c.b16 %v1424, %v1408
          %v1713 = vpack.c.b16 %v1425, %v1409
          %v1714 = vpack.c.b16 %v1426, %v1410
          %v1715 = vpack.c.b16 %v1427, %v1411
          %v1716 = vpack.c.b16 %v1428, %v1412
          %v1717 = vpack.c.b16 %v1429, %v1413
          %v1718 = vpack.c.b16 %v1430, %v1414
          %v1719 = vpack.c.b16 %v1431, %v1415
          %v1720 = vpack.c.b16 %v1432, %v1416
          %v1721 = vpack.c.b16 %v1433, %v1417
          %v1722 = vpack.c.b16 %v1434, %v1418
          %v1723 = vpack.c.b16 %v1435, %v1419
          %v1724 = vpack.c.b16 %v1452, %v1436
          %v1725 = vpack.c.b16 %v1453, %v1437
          %v1726 = vpack.c.b16 %v1454, %v1438
          %v1727 = vpack.c.b16 %v1455, %v1439
          %v1728 = vpack.c.b16 %v1456, %v1440
          %v1729 = vpack.c.b16 %v1457, %v1441
          %v1730 = vpack.c.b16 %v1458, %v1442
          %v1731 = vpack.c.b16 %v1459, %v1443
          %v1732 = vpack.c.b16 %v1460, %v1444
          %v1733 = vpack.c.b16 %v1461, %v1445
          %v1734 = vpack.c.b16 %v1462, %v1446
          %v1735 = vpack.c.b16 %v1463, %v1447
          %v1736 = vpack.c.b16 %v1464, %v1448
          %v1737 = vpack.c.b16 %v1465, %v1449
          %v1738 = vpack.c.b16 %v1466, %v1450
          %v1739 = vpack.c.b16 %v1467, %v1451
          %v1740 = vpack.c.b16 %v1484, %v1468
          %v1741 = vpack.c.b16 %v1485, %v1469
          %v1742 = vpack.c.b16 %v1486, %v1470
          %v1743 = vpack.c.b16 %v1487, %v1471
          %v1744 = vpack.c.b16 %v1488, %v1472
          %v1745 = vpack.c.b16 %v1489, %v1473
          %v1746 = vpack.c.b16 %v1490, %v1474
          %v1747 = vpack.c.b16 %v1491, %v1475
          %v1748 = vpack.c.b16 %v1492, %v1476
          %v1749 = vpack.c.b16 %v1493, %v1477
          %v1750 = vpack.c.b16 %v1494, %v1478
          %v1751 = vpack.c.b16 %v1495, %v1479
          %v1752 = vpack.c.b16 %v1496, %v1480
          %v1753 = vpack.c.b16 %v1497, %v1481
          %v1754 = vpack.c.b16 %v1498, %v1482
          %v1755 = vpack.c.b16 %v1499, %v1483
          %2012 = vmatpush.bf16.msra.mxu0 %v1612
          %2013 = vmatpush.bf16.msra.mxu0 %v1596
          %2014 = vmatpush.bf16.msra.mxu0 %v1580
          %2015 = vmatpush.bf16.msra.mxu0 %v1564
          %2016 = vmatpush.bf16.msra.mxu0 %v1548
          %2017 = vmatpush.bf16.msra.mxu0 %v1532
          %2018 = vmatpush.bf16.msra.mxu0 %v1516
          %2019 = vmatpush.bf16.msra.mxu0 %v1500
          %2020 = vmatmul.bf16.gmra.mxu0 %v728
          %v2021 = vpop.f32.mrf.mxu0
          %v2022 = vadd.f32 %v693, %v2021
          %v2023 = vpop.f32.mrf.mxu0
          %2024 = vdwg.mxu0
          %2025 = vmatpush.bf16.msra.mxu0 %v1740
          %2026 = vmatpush.bf16.msra.mxu0 %v1724
          %2027 = vmatpush.bf16.msra.mxu0 %v1708
          %2028 = vmatpush.bf16.msra.mxu0 %v1692
          %2029 = vmatpush.bf16.msra.mxu0 %v1676
          %2030 = vmatpush.bf16.msra.mxu0 %v1660
          %2031 = vmatpush.bf16.msra.mxu0 %v1644
          %2032 = vmatpush.bf16.msra.mxu0 %v1628
          %2033 = vmatmul.bf16.gmra.mxu0 %v729
          %v2034 = vpop.f32.mrf.mxu0
          %v2035 = vadd.f32 %v2022, %v2034
          %v2036 = vpop.f32.mrf.mxu0
          %2037 = vdwg.mxu0
          %2038 = vmatpush.bf16.msra.mxu0 %v1613
          %2039 = vmatpush.bf16.msra.mxu0 %v1597
          %2040 = vmatpush.bf16.msra.mxu0 %v1581
          %2041 = vmatpush.bf16.msra.mxu0 %v1565
          %2042 = vmatpush.bf16.msra.mxu0 %v1549
          %2043 = vmatpush.bf16.msra.mxu0 %v1533
          %2044 = vmatpush.bf16.msra.mxu0 %v1517
          %2045 = vmatpush.bf16.msra.mxu0 %v1501
          %2046 = vmatmul.bf16.gmra.mxu0 %v728
          %v2047 = vpop.f32.mrf.mxu0
          %v2048 = vadd.f32 %v694, %v2047
          %v2049 = vpop.f32.mrf.mxu0
          %2050 = vdwg.mxu0
          %2051 = vmatpush.bf16.msra.mxu0 %v1741
          %2052 = vmatpush.bf16.msra.mxu0 %v1725
          %2053 = vmatpush.bf16.msra.mxu0 %v1709
          %2054 = vmatpush.bf16.msra.mxu0 %v1693
          %2055 = vmatpush.bf16.msra.mxu0 %v1677
          %2056 = vmatpush.bf16.msra.mxu0 %v1661
          %2057 = vmatpush.bf16.msra.mxu0 %v1645
          %2058 = vmatpush.bf16.msra.mxu0 %v1629
          %2059 = vmatmul.bf16.gmra.mxu0 %v729
          %v2060 = vpop.f32.mrf.mxu0
          %v2061 = vadd.f32 %v2048, %v2060
          %v2062 = vpop.f32.mrf.mxu0
          %2063 = vdwg.mxu0
          %2064 = vmatpush.bf16.msra.mxu0 %v1614
          %2065 = vmatpush.bf16.msra.mxu0 %v1598
          %2066 = vmatpush.bf16.msra.mxu0 %v1582
          %2067 = vmatpush.bf16.msra.mxu0 %v1566
          %2068 = vmatpush.bf16.msra.mxu0 %v1550
          %2069 = vmatpush.bf16.msra.mxu0 %v1534
          %2070 = vmatpush.bf16.msra.mxu0 %v1518
          %2071 = vmatpush.bf16.msra.mxu0 %v1502
          %2072 = vmatmul.bf16.gmra.mxu0 %v728
          %v2073 = vpop.f32.mrf.mxu0
          %v2074 = vadd.f32 %v695, %v2073
          %v2075 = vpop.f32.mrf.mxu0
          %2076 = vdwg.mxu0
          %2077 = vmatpush.bf16.msra.mxu0 %v1742
          %2078 = vmatpush.bf16.msra.mxu0 %v1726
          %2079 = vmatpush.bf16.msra.mxu0 %v1710
          %2080 = vmatpush.bf16.msra.mxu0 %v1694
          %2081 = vmatpush.bf16.msra.mxu0 %v1678
          %2082 = vmatpush.bf16.msra.mxu0 %v1662
          %2083 = vmatpush.bf16.msra.mxu0 %v1646
          %2084 = vmatpush.bf16.msra.mxu0 %v1630
          %2085 = vmatmul.bf16.gmra.mxu0 %v729
          %v2086 = vpop.f32.mrf.mxu0
          %v2087 = vadd.f32 %v2074, %v2086
          %v2088 = vpop.f32.mrf.mxu0
          %2089 = vdwg.mxu0
          %2090 = vmatpush.bf16.msra.mxu0 %v1615
          %2091 = vmatpush.bf16.msra.mxu0 %v1599
          %2092 = vmatpush.bf16.msra.mxu0 %v1583
          %2093 = vmatpush.bf16.msra.mxu0 %v1567
          %2094 = vmatpush.bf16.msra.mxu0 %v1551
          %2095 = vmatpush.bf16.msra.mxu0 %v1535
          %2096 = vmatpush.bf16.msra.mxu0 %v1519
          %2097 = vmatpush.bf16.msra.mxu0 %v1503
          %2098 = vmatmul.bf16.gmra.mxu0 %v728
          %v2099 = vpop.f32.mrf.mxu0
          %v2100 = vadd.f32 %v696, %v2099
          %v2101 = vpop.f32.mrf.mxu0
          %2102 = vdwg.mxu0
          %2103 = vmatpush.bf16.msra.mxu0 %v1743
          %2104 = vmatpush.bf16.msra.mxu0 %v1727
          %2105 = vmatpush.bf16.msra.mxu0 %v1711
          %2106 = vmatpush.bf16.msra.mxu0 %v1695
          %2107 = vmatpush.bf16.msra.mxu0 %v1679
          %2108 = vmatpush.bf16.msra.mxu0 %v1663
          %2109 = vmatpush.bf16.msra.mxu0 %v1647
          %2110 = vmatpush.bf16.msra.mxu0 %v1631
          %2111 = vmatmul.bf16.gmra.mxu0 %v729
          %v2112 = vpop.f32.mrf.mxu0
          %v2113 = vadd.f32 %v2100, %v2112
          %v2114 = vpop.f32.mrf.mxu0
          %2115 = vdwg.mxu0
          %2116 = vmatpush.bf16.msra.mxu0 %v1616
          %2117 = vmatpush.bf16.msra.mxu0 %v1600
          %2118 = vmatpush.bf16.msra.mxu0 %v1584
          %2119 = vmatpush.bf16.msra.mxu0 %v1568
          %2120 = vmatpush.bf16.msra.mxu0 %v1552
          %2121 = vmatpush.bf16.msra.mxu0 %v1536
          %2122 = vmatpush.bf16.msra.mxu0 %v1520
          %2123 = vmatpush.bf16.msra.mxu0 %v1504
          %2124 = vmatmul.bf16.gmra.mxu0 %v728
          %v2125 = vpop.f32.mrf.mxu0
          %v2126 = vadd.f32 %v697, %v2125
          %v2127 = vpop.f32.mrf.mxu0
          %2128 = vdwg.mxu0
          %2129 = vmatpush.bf16.msra.mxu0 %v1744
          %2130 = vmatpush.bf16.msra.mxu0 %v1728
          %2131 = vmatpush.bf16.msra.mxu0 %v1712
          %2132 = vmatpush.bf16.msra.mxu0 %v1696
          %2133 = vmatpush.bf16.msra.mxu0 %v1680
          %2134 = vmatpush.bf16.msra.mxu0 %v1664
          %2135 = vmatpush.bf16.msra.mxu0 %v1648
          %2136 = vmatpush.bf16.msra.mxu0 %v1632
          %2137 = vmatmul.bf16.gmra.mxu0 %v729
          %v2138 = vpop.f32.mrf.mxu0
          %v2139 = vadd.f32 %v2126, %v2138
          %v2140 = vpop.f32.mrf.mxu0
          %2141 = vdwg.mxu0
          %2142 = vmatpush.bf16.msra.mxu0 %v1617
          %2143 = vmatpush.bf16.msra.mxu0 %v1601
          %2144 = vmatpush.bf16.msra.mxu0 %v1585
          %2145 = vmatpush.bf16.msra.mxu0 %v1569
          %2146 = vmatpush.bf16.msra.mxu0 %v1553
          %2147 = vmatpush.bf16.msra.mxu0 %v1537
          %2148 = vmatpush.bf16.msra.mxu0 %v1521
          %2149 = vmatpush.bf16.msra.mxu0 %v1505
          %2150 = vmatmul.bf16.gmra.mxu0 %v728
          %v2151 = vpop.f32.mrf.mxu0
          %v2152 = vadd.f32 %v698, %v2151
          %v2153 = vpop.f32.mrf.mxu0
          %2154 = vdwg.mxu0
          %2155 = vmatpush.bf16.msra.mxu0 %v1745
          %2156 = vmatpush.bf16.msra.mxu0 %v1729
          %2157 = vmatpush.bf16.msra.mxu0 %v1713
          %2158 = vmatpush.bf16.msra.mxu0 %v1697
          %2159 = vmatpush.bf16.msra.mxu0 %v1681
          %2160 = vmatpush.bf16.msra.mxu0 %v1665
          %2161 = vmatpush.bf16.msra.mxu0 %v1649
          %2162 = vmatpush.bf16.msra.mxu0 %v1633
          %2163 = vmatmul.bf16.gmra.mxu0 %v729
          %v2164 = vpop.f32.mrf.mxu0
          %v2165 = vadd.f32 %v2152, %v2164
          %v2166 = vpop.f32.mrf.mxu0
          %2167 = vdwg.mxu0
          %2168 = vmatpush.bf16.msra.mxu0 %v1618
          %2169 = vmatpush.bf16.msra.mxu0 %v1602
          %2170 = vmatpush.bf16.msra.mxu0 %v1586
          %2171 = vmatpush.bf16.msra.mxu0 %v1570
          %2172 = vmatpush.bf16.msra.mxu0 %v1554
          %2173 = vmatpush.bf16.msra.mxu0 %v1538
          %2174 = vmatpush.bf16.msra.mxu0 %v1522
          %2175 = vmatpush.bf16.msra.mxu0 %v1506
          %2176 = vmatmul.bf16.gmra.mxu0 %v728
          %v2177 = vpop.f32.mrf.mxu0
          %v2178 = vadd.f32 %v699, %v2177
          %v2179 = vpop.f32.mrf.mxu0
          %2180 = vdwg.mxu0
          %2181 = vmatpush.bf16.msra.mxu0 %v1746
          %2182 = vmatpush.bf16.msra.mxu0 %v1730
          %2183 = vmatpush.bf16.msra.mxu0 %v1714
          %2184 = vmatpush.bf16.msra.mxu0 %v1698
          %2185 = vmatpush.bf16.msra.mxu0 %v1682
          %2186 = vmatpush.bf16.msra.mxu0 %v1666
          %2187 = vmatpush.bf16.msra.mxu0 %v1650
          %2188 = vmatpush.bf16.msra.mxu0 %v1634
          %2189 = vmatmul.bf16.gmra.mxu0 %v729
          %v2190 = vpop.f32.mrf.mxu0
          %v2191 = vadd.f32 %v2178, %v2190
          %v2192 = vpop.f32.mrf.mxu0
          %2193 = vdwg.mxu0
          %2194 = vmatpush.bf16.msra.mxu0 %v1619
          %2195 = vmatpush.bf16.msra.mxu0 %v1603
          %2196 = vmatpush.bf16.msra.mxu0 %v1587
          %2197 = vmatpush.bf16.msra.mxu0 %v1571
          %2198 = vmatpush.bf16.msra.mxu0 %v1555
          %2199 = vmatpush.bf16.msra.mxu0 %v1539
          %2200 = vmatpush.bf16.msra.mxu0 %v1523
          %2201 = vmatpush.bf16.msra.mxu0 %v1507
          %2202 = vmatmul.bf16.gmra.mxu0 %v728
          %v2203 = vpop.f32.mrf.mxu0
          %v2204 = vadd.f32 %v700, %v2203
          %v2205 = vpop.f32.mrf.mxu0
          %2206 = vdwg.mxu0
          %2207 = vmatpush.bf16.msra.mxu0 %v1747
          %2208 = vmatpush.bf16.msra.mxu0 %v1731
          %2209 = vmatpush.bf16.msra.mxu0 %v1715
          %2210 = vmatpush.bf16.msra.mxu0 %v1699
          %2211 = vmatpush.bf16.msra.mxu0 %v1683
          %2212 = vmatpush.bf16.msra.mxu0 %v1667
          %2213 = vmatpush.bf16.msra.mxu0 %v1651
          %2214 = vmatpush.bf16.msra.mxu0 %v1635
          %2215 = vmatmul.bf16.gmra.mxu0 %v729
          %v2216 = vpop.f32.mrf.mxu0
          %v2217 = vadd.f32 %v2204, %v2216
          %v2218 = vpop.f32.mrf.mxu0
          %2219 = vdwg.mxu0
          %2220 = vmatpush.bf16.msra.mxu0 %v1620
          %2221 = vmatpush.bf16.msra.mxu0 %v1604
          %2222 = vmatpush.bf16.msra.mxu0 %v1588
          %2223 = vmatpush.bf16.msra.mxu0 %v1572
          %2224 = vmatpush.bf16.msra.mxu0 %v1556
          %2225 = vmatpush.bf16.msra.mxu0 %v1540
          %2226 = vmatpush.bf16.msra.mxu0 %v1524
          %2227 = vmatpush.bf16.msra.mxu0 %v1508
          %2228 = vmatmul.bf16.gmra.mxu0 %v728
          %v2229 = vpop.f32.mrf.mxu0
          %v2230 = vadd.f32 %v701, %v2229
          %v2231 = vpop.f32.mrf.mxu0
          %2232 = vdwg.mxu0
          %2233 = vmatpush.bf16.msra.mxu0 %v1748
          %2234 = vmatpush.bf16.msra.mxu0 %v1732
          %2235 = vmatpush.bf16.msra.mxu0 %v1716
          %2236 = vmatpush.bf16.msra.mxu0 %v1700
          %2237 = vmatpush.bf16.msra.mxu0 %v1684
          %2238 = vmatpush.bf16.msra.mxu0 %v1668
          %2239 = vmatpush.bf16.msra.mxu0 %v1652
          %2240 = vmatpush.bf16.msra.mxu0 %v1636
          %2241 = vmatmul.bf16.gmra.mxu0 %v729
          %v2242 = vpop.f32.mrf.mxu0
          %v2243 = vadd.f32 %v2230, %v2242
          %v2244 = vpop.f32.mrf.mxu0
          %2245 = vdwg.mxu0
          %2246 = vmatpush.bf16.msra.mxu0 %v1621
          %2247 = vmatpush.bf16.msra.mxu0 %v1605
          %2248 = vmatpush.bf16.msra.mxu0 %v1589
          %2249 = vmatpush.bf16.msra.mxu0 %v1573
          %2250 = vmatpush.bf16.msra.mxu0 %v1557
          %2251 = vmatpush.bf16.msra.mxu0 %v1541
          %2252 = vmatpush.bf16.msra.mxu0 %v1525
          %2253 = vmatpush.bf16.msra.mxu0 %v1509
          %2254 = vmatmul.bf16.gmra.mxu0 %v728
          %v2255 = vpop.f32.mrf.mxu0
          %v2256 = vadd.f32 %v702, %v2255
          %v2257 = vpop.f32.mrf.mxu0
          %2258 = vdwg.mxu0
          %2259 = vmatpush.bf16.msra.mxu0 %v1749
          %2260 = vmatpush.bf16.msra.mxu0 %v1733
          %2261 = vmatpush.bf16.msra.mxu0 %v1717
          %2262 = vmatpush.bf16.msra.mxu0 %v1701
          %2263 = vmatpush.bf16.msra.mxu0 %v1685
          %2264 = vmatpush.bf16.msra.mxu0 %v1669
          %2265 = vmatpush.bf16.msra.mxu0 %v1653
          %2266 = vmatpush.bf16.msra.mxu0 %v1637
          %2267 = vmatmul.bf16.gmra.mxu0 %v729
          %v2268 = vpop.f32.mrf.mxu0
          %v2269 = vadd.f32 %v2256, %v2268
          %v2270 = vpop.f32.mrf.mxu0
          %2271 = vdwg.mxu0
          %2272 = vmatpush.bf16.msra.mxu0 %v1622
          %2273 = vmatpush.bf16.msra.mxu0 %v1606
          %2274 = vmatpush.bf16.msra.mxu0 %v1590
          %2275 = vmatpush.bf16.msra.mxu0 %v1574
          %2276 = vmatpush.bf16.msra.mxu0 %v1558
          %2277 = vmatpush.bf16.msra.mxu0 %v1542
          %2278 = vmatpush.bf16.msra.mxu0 %v1526
          %2279 = vmatpush.bf16.msra.mxu0 %v1510
          %2280 = vmatmul.bf16.gmra.mxu0 %v728
          %v2281 = vpop.f32.mrf.mxu0
          %v2282 = vadd.f32 %v703, %v2281
          %v2283 = vpop.f32.mrf.mxu0
          %2284 = vdwg.mxu0
          %2285 = vmatpush.bf16.msra.mxu0 %v1750
          %2286 = vmatpush.bf16.msra.mxu0 %v1734
          %2287 = vmatpush.bf16.msra.mxu0 %v1718
          %2288 = vmatpush.bf16.msra.mxu0 %v1702
          %2289 = vmatpush.bf16.msra.mxu0 %v1686
          %2290 = vmatpush.bf16.msra.mxu0 %v1670
          %2291 = vmatpush.bf16.msra.mxu0 %v1654
          %2292 = vmatpush.bf16.msra.mxu0 %v1638
          %2293 = vmatmul.bf16.gmra.mxu0 %v729
          %v2294 = vpop.f32.mrf.mxu0
          %v2295 = vadd.f32 %v2282, %v2294
          %v2296 = vpop.f32.mrf.mxu0
          %2297 = vdwg.mxu0
          %2298 = vmatpush.bf16.msra.mxu0 %v1623
          %2299 = vmatpush.bf16.msra.mxu0 %v1607
          %2300 = vmatpush.bf16.msra.mxu0 %v1591
          %2301 = vmatpush.bf16.msra.mxu0 %v1575
          %2302 = vmatpush.bf16.msra.mxu0 %v1559
          %2303 = vmatpush.bf16.msra.mxu0 %v1543
          %2304 = vmatpush.bf16.msra.mxu0 %v1527
          %2305 = vmatpush.bf16.msra.mxu0 %v1511
          %2306 = vmatmul.bf16.gmra.mxu0 %v728
          %v2307 = vpop.f32.mrf.mxu0
          %v2308 = vadd.f32 %v704, %v2307
          %v2309 = vpop.f32.mrf.mxu0
          %2310 = vdwg.mxu0
          %2311 = vmatpush.bf16.msra.mxu0 %v1751
          %2312 = vmatpush.bf16.msra.mxu0 %v1735
          %2313 = vmatpush.bf16.msra.mxu0 %v1719
          %2314 = vmatpush.bf16.msra.mxu0 %v1703
          %2315 = vmatpush.bf16.msra.mxu0 %v1687
          %2316 = vmatpush.bf16.msra.mxu0 %v1671
          %2317 = vmatpush.bf16.msra.mxu0 %v1655
          %2318 = vmatpush.bf16.msra.mxu0 %v1639
          %2319 = vmatmul.bf16.gmra.mxu0 %v729
          %v2320 = vpop.f32.mrf.mxu0
          %v2321 = vadd.f32 %v2308, %v2320
          %v2322 = vpop.f32.mrf.mxu0
          %2323 = vdwg.mxu0
          %2324 = vmatpush.bf16.msra.mxu0 %v1624
          %2325 = vmatpush.bf16.msra.mxu0 %v1608
          %2326 = vmatpush.bf16.msra.mxu0 %v1592
          %2327 = vmatpush.bf16.msra.mxu0 %v1576
          %2328 = vmatpush.bf16.msra.mxu0 %v1560
          %2329 = vmatpush.bf16.msra.mxu0 %v1544
          %2330 = vmatpush.bf16.msra.mxu0 %v1528
          %2331 = vmatpush.bf16.msra.mxu0 %v1512
          %2332 = vmatmul.bf16.gmra.mxu0 %v728
          %v2333 = vpop.f32.mrf.mxu0
          %v2334 = vadd.f32 %v705, %v2333
          %v2335 = vpop.f32.mrf.mxu0
          %2336 = vdwg.mxu0
          %2337 = vmatpush.bf16.msra.mxu0 %v1752
          %2338 = vmatpush.bf16.msra.mxu0 %v1736
          %2339 = vmatpush.bf16.msra.mxu0 %v1720
          %2340 = vmatpush.bf16.msra.mxu0 %v1704
          %2341 = vmatpush.bf16.msra.mxu0 %v1688
          %2342 = vmatpush.bf16.msra.mxu0 %v1672
          %2343 = vmatpush.bf16.msra.mxu0 %v1656
          %2344 = vmatpush.bf16.msra.mxu0 %v1640
          %2345 = vmatmul.bf16.gmra.mxu0 %v729
          %v2346 = vpop.f32.mrf.mxu0
          %v2347 = vadd.f32 %v2334, %v2346
          %v2348 = vpop.f32.mrf.mxu0
          %2349 = vdwg.mxu0
          %2350 = vmatpush.bf16.msra.mxu0 %v1625
          %2351 = vmatpush.bf16.msra.mxu0 %v1609
          %2352 = vmatpush.bf16.msra.mxu0 %v1593
          %2353 = vmatpush.bf16.msra.mxu0 %v1577
          %2354 = vmatpush.bf16.msra.mxu0 %v1561
          %2355 = vmatpush.bf16.msra.mxu0 %v1545
          %2356 = vmatpush.bf16.msra.mxu0 %v1529
          %2357 = vmatpush.bf16.msra.mxu0 %v1513
          %2358 = vmatmul.bf16.gmra.mxu0 %v728
          %v2359 = vpop.f32.mrf.mxu0
          %v2360 = vadd.f32 %v706, %v2359
          %v2361 = vpop.f32.mrf.mxu0
          %2362 = vdwg.mxu0
          %2363 = vmatpush.bf16.msra.mxu0 %v1753
          %2364 = vmatpush.bf16.msra.mxu0 %v1737
          %2365 = vmatpush.bf16.msra.mxu0 %v1721
          %2366 = vmatpush.bf16.msra.mxu0 %v1705
          %2367 = vmatpush.bf16.msra.mxu0 %v1689
          %2368 = vmatpush.bf16.msra.mxu0 %v1673
          %2369 = vmatpush.bf16.msra.mxu0 %v1657
          %2370 = vmatpush.bf16.msra.mxu0 %v1641
          %2371 = vmatmul.bf16.gmra.mxu0 %v729
          %v2372 = vpop.f32.mrf.mxu0
          %v2373 = vadd.f32 %v2360, %v2372
          %v2374 = vpop.f32.mrf.mxu0
          %2375 = vdwg.mxu0
          %2376 = vmatpush.bf16.msra.mxu0 %v1626
          %2377 = vmatpush.bf16.msra.mxu0 %v1610
          %2378 = vmatpush.bf16.msra.mxu0 %v1594
          %2379 = vmatpush.bf16.msra.mxu0 %v1578
          %2380 = vmatpush.bf16.msra.mxu0 %v1562
          %2381 = vmatpush.bf16.msra.mxu0 %v1546
          %2382 = vmatpush.bf16.msra.mxu0 %v1530
          %2383 = vmatpush.bf16.msra.mxu0 %v1514
          %2384 = vmatmul.bf16.gmra.mxu0 %v728
          %v2385 = vpop.f32.mrf.mxu0
          %v2386 = vadd.f32 %v707, %v2385
          %v2387 = vpop.f32.mrf.mxu0
          %2388 = vdwg.mxu0
          %2389 = vmatpush.bf16.msra.mxu0 %v1754
          %2390 = vmatpush.bf16.msra.mxu0 %v1738
          %2391 = vmatpush.bf16.msra.mxu0 %v1722
          %2392 = vmatpush.bf16.msra.mxu0 %v1706
          %2393 = vmatpush.bf16.msra.mxu0 %v1690
          %2394 = vmatpush.bf16.msra.mxu0 %v1674
          %2395 = vmatpush.bf16.msra.mxu0 %v1658
          %2396 = vmatpush.bf16.msra.mxu0 %v1642
          %2397 = vmatmul.bf16.gmra.mxu0 %v729
          %v2398 = vpop.f32.mrf.mxu0
          %v2399 = vadd.f32 %v2386, %v2398
          %v2400 = vpop.f32.mrf.mxu0
          %2401 = vdwg.mxu0
          %2402 = vmatpush.bf16.msra.mxu0 %v1627
          %2403 = vmatpush.bf16.msra.mxu0 %v1611
          %2404 = vmatpush.bf16.msra.mxu0 %v1595
          %2405 = vmatpush.bf16.msra.mxu0 %v1579
          %2406 = vmatpush.bf16.msra.mxu0 %v1563
          %2407 = vmatpush.bf16.msra.mxu0 %v1547
          %2408 = vmatpush.bf16.msra.mxu0 %v1531
          %2409 = vmatpush.bf16.msra.mxu0 %v1515
          %2410 = vmatmul.bf16.gmra.mxu0 %v728
          %v2411 = vpop.f32.mrf.mxu0
          %v2412 = vadd.f32 %v708, %v2411
          %v2413 = vpop.f32.mrf.mxu0
          %2414 = vdwg.mxu0
          %2415 = vmatpush.bf16.msra.mxu0 %v1755
          %2416 = vmatpush.bf16.msra.mxu0 %v1739
          %2417 = vmatpush.bf16.msra.mxu0 %v1723
          %2418 = vmatpush.bf16.msra.mxu0 %v1707
          %2419 = vmatpush.bf16.msra.mxu0 %v1691
          %2420 = vmatpush.bf16.msra.mxu0 %v1675
          %2421 = vmatpush.bf16.msra.mxu0 %v1659
          %2422 = vmatpush.bf16.msra.mxu0 %v1643
          %2423 = vmatmul.bf16.gmra.mxu0 %v729
          %v2424 = vpop.f32.mrf.mxu0
          %v2425 = vadd.f32 %v2412, %v2424
          %v2426 = vpop.f32.mrf.mxu0
          %2427 = vdwg.mxu0
          %v2428 = vmax.f32 %v2035, 0.0
          %v2429 = vmax.f32 %v2061, 0.0
          %v2430 = vmax.f32 %v2087, 0.0
          %v2431 = vmax.f32 %v2113, 0.0
          %v2432 = vmax.f32 %v2139, 0.0
          %v2433 = vmax.f32 %v2165, 0.0
          %v2434 = vmax.f32 %v2191, 0.0
          %v2435 = vmax.f32 %v2217, 0.0
          %v2436 = vmax.f32 %v2243, 0.0
          %v2437 = vmax.f32 %v2269, 0.0
          %v2438 = vmax.f32 %v2295, 0.0
          %v2439 = vmax.f32 %v2321, 0.0
          %v2440 = vmax.f32 %v2347, 0.0
          %v2441 = vmax.f32 %v2373, 0.0
          %v2442 = vmax.f32 %v2399, 0.0
          %v2443 = vmax.f32 %v2425, 0.0
          %v2444 = vpack.c.bf16 %v2429, %v2428
          %v2445 = vpack.c.bf16 %v2431, %v2430
          %v2446 = vpack.c.bf16 %v2433, %v2432
          %v2447 = vpack.c.bf16 %v2435, %v2434
          %v2448 = vpack.c.bf16 %v2437, %v2436
          %v2449 = vpack.c.bf16 %v2439, %v2438
          %v2450 = vpack.c.bf16 %v2441, %v2440
          %v2451 = vpack.c.bf16 %v2443, %v2442
          %2452 = vst [vmem:[#allocation2] sm:$0xff] %v2444
          %2453 = vst [vmem:[#allocation2 + $0x8] sm:$0xff] %v2445
          %2454 = vst [vmem:[#allocation2 + $0x10] sm:$0xff] %v2446
          %2455 = vst [vmem:[#allocation2 + $0x18] sm:$0xff] %v2447
          %2456 = vst [vmem:[#allocation2 + $0x20] sm:$0xff] %v2448
          %2457 = vst [vmem:[#allocation2 + $0x28] sm:$0xff] %v2449
          %2458 = vst [vmem:[#allocation2 + $0x30] sm:$0xff] %v2450
          %2459 = vst [vmem:[#allocation2 + $0x38] sm:$0xff] %v2451
          %v2460 = vld [vmem:[#allocation15] sm:$0x1]
          %v2462 = vperm.slane %v2460, 0
          %2464 = vst [vmem:[#allocation3] sm:$0xff] %v2462
        $region80: #{tpu_custom_call.1} parent=47 // pred_fallthru
          _
        %v2465 = vld [vmem:[#allocation2] sm:$0xff]
        %v2466 = vld [vmem:[#allocation2 + $0x8] sm:$0xff]
        %v2467 = vld [vmem:[#allocation2 + $0x10] sm:$0xff]
        %v2468 = vld [vmem:[#allocation2 + $0x18] sm:$0xff]
        %v2469 = vld [vmem:[#allocation2 + $0x20] sm:$0xff]
        %v2470 = vld [vmem:[#allocation2 + $0x28] sm:$0xff]
        %v2471 = vld [vmem:[#allocation2 + $0x30] sm:$0xff]
        %v2472 = vld [vmem:[#allocation2 + $0x38] sm:$0xff]
        %v2473 = vld [vmem:[%s363] sm:$0xff]
        %v2474 = vld [vmem:[%s363 + $0x8] sm:$0xff]
        %v2475 = vld [vmem:[%s363 + $0x10] sm:$0xff]
        %v2476 = vld [vmem:[%s363 + $0x18] sm:$0xff]
        %v2477 = vld [vmem:[%s363 + $0x20] sm:$0xff]
        %v2478 = vld [vmem:[%s363 + $0x28] sm:$0xff]
        %v2479 = vld [vmem:[%s363 + $0x30] sm:$0xff]
        %v2480 = vld [vmem:[%s363 + $0x38] sm:$0xff]
        %v2481 = vld [vmem:[%s363 + $0x40] sm:$0xff]
        %v2482 = vld [vmem:[%s363 + $0x48] sm:$0xff]
        %v2483 = vld [vmem:[%s363 + $0x50] sm:$0xff]
        %v2484 = vld [vmem:[%s363 + $0x58] sm:$0xff]
        %v2485 = vld [vmem:[%s363 + $0x60] sm:$0xff]
        %v2486 = vld [vmem:[%s363 + $0x68] sm:$0xff]
        %v2487 = vld [vmem:[%s363 + $0x70] sm:$0xff]
        %v2488 = vld [vmem:[%s363 + $0x78] sm:$0xff]
        %v2489 = vld [vmem:[%s363 + $0x80] sm:$0xff]
        %v2490 = vld [vmem:[%s363 + $0x88] sm:$0xff]
        %v2491 = vld [vmem:[%s363 + $0x90] sm:$0xff]
        %v2492 = vld [vmem:[%s363 + $0x98] sm:$0xff]
        %v2493 = vld [vmem:[%s363 + $0xa0] sm:$0xff]
        %v2494 = vld [vmem:[%s363 + $0xa8] sm:$0xff]
        %v2495 = vld [vmem:[%s363 + $0xb0] sm:$0xff]
        %v2496 = vld [vmem:[%s363 + $0xb8] sm:$0xff]
        %v2497 = vld [vmem:[%s363 + $0xc0] sm:$0xff]
        %v2498 = vld [vmem:[%s363 + $0xc8] sm:$0xff]
        %v2499 = vld [vmem:[%s363 + $0xd0] sm:$0xff]
        %v2500 = vld [vmem:[%s363 + $0xd8] sm:$0xff]
        %v2501 = vld [vmem:[%s363 + $0xe0] sm:$0xff]
        %v2502 = vld [vmem:[%s363 + $0xe8] sm:$0xff]
        %v2503 = vld [vmem:[%s363 + $0xf0] sm:$0xff]
        %v2504 = vld [vmem:[%s363 + $0xf8] sm:$0xff]
        %v2505 = vld [vmem:[%s363 + $0x100] sm:$0xff]
        %v2506 = vld [vmem:[%s363 + $0x108] sm:$0xff]
        %v2507 = vld [vmem:[%s363 + $0x110] sm:$0xff]
        %v2508 = vld [vmem:[%s363 + $0x118] sm:$0xff]
        %v2509 = vld [vmem:[%s363 + $0x120] sm:$0xff]
        %v2510 = vld [vmem:[%s363 + $0x128] sm:$0xff]
        %v2511 = vld [vmem:[%s363 + $0x130] sm:$0xff]
        %v2512 = vld [vmem:[%s363 + $0x138] sm:$0xff]
        %v2513 = vld [vmem:[%s363 + $0x140] sm:$0xff]
        %v2514 = vld [vmem:[%s363 + $0x148] sm:$0xff]
        %v2515 = vld [vmem:[%s363 + $0x150] sm:$0xff]
        %v2516 = vld [vmem:[%s363 + $0x158] sm:$0xff]
        %v2517 = vld [vmem:[%s363 + $0x160] sm:$0xff]
        %v2518 = vld [vmem:[%s363 + $0x168] sm:$0xff]
        %v2519 = vld [vmem:[%s363 + $0x170] sm:$0xff]
        %v2520 = vld [vmem:[%s363 + $0x178] sm:$0xff]
        %v2521 = vld [vmem:[%s363 + $0x180] sm:$0xff]
        %v2522 = vld [vmem:[%s363 + $0x188] sm:$0xff]
        %v2523 = vld [vmem:[%s363 + $0x190] sm:$0xff]
        %v2524 = vld [vmem:[%s363 + $0x198] sm:$0xff]
        %v2525 = vld [vmem:[%s363 + $0x1a0] sm:$0xff]
        %v2526 = vld [vmem:[%s363 + $0x1a8] sm:$0xff]
        %v2527 = vld [vmem:[%s363 + $0x1b0] sm:$0xff]
        %v2528 = vld [vmem:[%s363 + $0x1b8] sm:$0xff]
        %v2529 = vld [vmem:[%s363 + $0x1c0] sm:$0xff]
        %v2530 = vld [vmem:[%s363 + $0x1c8] sm:$0xff]
        %v2531 = vld [vmem:[%s363 + $0x1d0] sm:$0xff]
        %v2532 = vld [vmem:[%s363 + $0x1d8] sm:$0xff]
        %v2533 = vld [vmem:[%s363 + $0x1e0] sm:$0xff]
        %v2534 = vld [vmem:[%s363 + $0x1e8] sm:$0xff]
        %v2535 = vld [vmem:[%s363 + $0x1f0] sm:$0xff]
        %v2536 = vld [vmem:[%s363 + $0x1f8] sm:$0xff]
        %v2537 = vld [vmem:[%s363 + $0x200] sm:$0xff]
        %v2538 = vld [vmem:[%s363 + $0x208] sm:$0xff]
        %v2539 = vld [vmem:[%s363 + $0x210] sm:$0xff]
        %v2540 = vld [vmem:[%s363 + $0x218] sm:$0xff]
        %v2541 = vld [vmem:[%s363 + $0x220] sm:$0xff]
        %v2542 = vld [vmem:[%s363 + $0x228] sm:$0xff]
        %v2543 = vld [vmem:[%s363 + $0x230] sm:$0xff]
        %v2544 = vld [vmem:[%s363 + $0x238] sm:$0xff]
        %v2545 = vld [vmem:[%s363 + $0x240] sm:$0xff]
        %v2546 = vld [vmem:[%s363 + $0x248] sm:$0xff]
        %v2547 = vld [vmem:[%s363 + $0x250] sm:$0xff]
        %v2548 = vld [vmem:[%s363 + $0x258] sm:$0xff]
        %v2549 = vld [vmem:[%s363 + $0x260] sm:$0xff]
        %v2550 = vld [vmem:[%s363 + $0x268] sm:$0xff]
        %v2551 = vld [vmem:[%s363 + $0x270] sm:$0xff]
        %v2552 = vld [vmem:[%s363 + $0x278] sm:$0xff]
        %v2553 = vld [vmem:[%s363 + $0x280] sm:$0xff]
        %v2554 = vld [vmem:[%s363 + $0x288] sm:$0xff]
        %v2555 = vld [vmem:[%s363 + $0x290] sm:$0xff]
        %v2556 = vld [vmem:[%s363 + $0x298] sm:$0xff]
        %v2557 = vld [vmem:[%s363 + $0x2a0] sm:$0xff]
        %v2558 = vld [vmem:[%s363 + $0x2a8] sm:$0xff]
        %v2559 = vld [vmem:[%s363 + $0x2b0] sm:$0xff]
        %v2560 = vld [vmem:[%s363 + $0x2b8] sm:$0xff]
        %v2561 = vld [vmem:[%s363 + $0x2c0] sm:$0xff]
        %v2562 = vld [vmem:[%s363 + $0x2c8] sm:$0xff]
        %v2563 = vld [vmem:[%s363 + $0x2d0] sm:$0xff]
        %v2564 = vld [vmem:[%s363 + $0x2d8] sm:$0xff]
        %v2565 = vld [vmem:[%s363 + $0x2e0] sm:$0xff]
        %v2566 = vld [vmem:[%s363 + $0x2e8] sm:$0xff]
        %v2567 = vld [vmem:[%s363 + $0x2f0] sm:$0xff]
        %v2568 = vld [vmem:[%s363 + $0x2f8] sm:$0xff]
        %v2569 = vld [vmem:[%s363 + $0x300] sm:$0xff]
        %v2570 = vld [vmem:[%s363 + $0x308] sm:$0xff]
        %v2571 = vld [vmem:[%s363 + $0x310] sm:$0xff]
        %v2572 = vld [vmem:[%s363 + $0x318] sm:$0xff]
        %v2573 = vld [vmem:[%s363 + $0x320] sm:$0xff]
        %v2574 = vld [vmem:[%s363 + $0x328] sm:$0xff]
        %v2575 = vld [vmem:[%s363 + $0x330] sm:$0xff]
        %v2576 = vld [vmem:[%s363 + $0x338] sm:$0xff]
        %v2577 = vld [vmem:[%s363 + $0x340] sm:$0xff]
        %v2578 = vld [vmem:[%s363 + $0x348] sm:$0xff]
        %v2579 = vld [vmem:[%s363 + $0x350] sm:$0xff]
        %v2580 = vld [vmem:[%s363 + $0x358] sm:$0xff]
        %v2581 = vld [vmem:[%s363 + $0x360] sm:$0xff]
        %v2582 = vld [vmem:[%s363 + $0x368] sm:$0xff]
        %v2583 = vld [vmem:[%s363 + $0x370] sm:$0xff]
        %v2584 = vld [vmem:[%s363 + $0x378] sm:$0xff]
        %v2585 = vld [vmem:[%s363 + $0x380] sm:$0xff]
        %v2586 = vld [vmem:[%s363 + $0x388] sm:$0xff]
        %v2587 = vld [vmem:[%s363 + $0x390] sm:$0xff]
        %v2588 = vld [vmem:[%s363 + $0x398] sm:$0xff]
        %v2589 = vld [vmem:[%s363 + $0x3a0] sm:$0xff]
        %v2590 = vld [vmem:[%s363 + $0x3a8] sm:$0xff]
        %v2591 = vld [vmem:[%s363 + $0x3b0] sm:$0xff]
        %v2592 = vld [vmem:[%s363 + $0x3b8] sm:$0xff]
        %v2593 = vld [vmem:[%s363 + $0x3c0] sm:$0xff]
        %v2594 = vld [vmem:[%s363 + $0x3c8] sm:$0xff]
        %v2595 = vld [vmem:[%s363 + $0x3d0] sm:$0xff]
        %v2596 = vld [vmem:[%s363 + $0x3d8] sm:$0xff]
        %v2597 = vld [vmem:[%s363 + $0x3e0] sm:$0xff]
        %v2598 = vld [vmem:[%s363 + $0x3e8] sm:$0xff]
        %v2599 = vld [vmem:[%s363 + $0x3f0] sm:$0xff]
        %v2600 = vld [vmem:[%s363 + $0x3f8] sm:$0xff]
        %v2601 = vld [vmem:[%s363 + $0x400] sm:$0xff]
        %v2602 = vld [vmem:[%s363 + $0x408] sm:$0xff]
        %v2603 = vld [vmem:[%s363 + $0x410] sm:$0xff]
        %v2604 = vld [vmem:[%s363 + $0x418] sm:$0xff]
        %v2605 = vld [vmem:[%s363 + $0x420] sm:$0xff]
        %v2606 = vld [vmem:[%s363 + $0x428] sm:$0xff]
        %v2607 = vld [vmem:[%s363 + $0x430] sm:$0xff]
        %v2608 = vld [vmem:[%s363 + $0x438] sm:$0xff]
        %v2609 = vld [vmem:[%s363 + $0x440] sm:$0xff]
        %v2610 = vld [vmem:[%s363 + $0x448] sm:$0xff]
        %v2611 = vld [vmem:[%s363 + $0x450] sm:$0xff]
        %v2612 = vld [vmem:[%s363 + $0x458] sm:$0xff]
        %v2613 = vld [vmem:[%s363 + $0x460] sm:$0xff]
        %v2614 = vld [vmem:[%s363 + $0x468] sm:$0xff]
        %v2615 = vld [vmem:[%s363 + $0x470] sm:$0xff]
        %v2616 = vld [vmem:[%s363 + $0x478] sm:$0xff]
        %v2617 = vld [vmem:[%s363 + $0x480] sm:$0xff]
        %v2618 = vld [vmem:[%s363 + $0x488] sm:$0xff]
        %v2619 = vld [vmem:[%s363 + $0x490] sm:$0xff]
        %v2620 = vld [vmem:[%s363 + $0x498] sm:$0xff]
        %v2621 = vld [vmem:[%s363 + $0x4a0] sm:$0xff]
        %v2622 = vld [vmem:[%s363 + $0x4a8] sm:$0xff]
        %v2623 = vld [vmem:[%s363 + $0x4b0] sm:$0xff]
        %v2624 = vld [vmem:[%s363 + $0x4b8] sm:$0xff]
        %v2625 = vld [vmem:[%s363 + $0x4c0] sm:$0xff]
        %v2626 = vld [vmem:[%s363 + $0x4c8] sm:$0xff]
        %v2627 = vld [vmem:[%s363 + $0x4d0] sm:$0xff]
        %v2628 = vld [vmem:[%s363 + $0x4d8] sm:$0xff]
        %v2629 = vld [vmem:[%s363 + $0x4e0] sm:$0xff]
        %v2630 = vld [vmem:[%s363 + $0x4e8] sm:$0xff]
        %v2631 = vld [vmem:[%s363 + $0x4f0] sm:$0xff]
        %v2632 = vld [vmem:[%s363 + $0x4f8] sm:$0xff]
        %v2633 = vld [vmem:[%s363 + $0x500] sm:$0xff]
        %v2634 = vld [vmem:[%s363 + $0x508] sm:$0xff]
        %v2635 = vld [vmem:[%s363 + $0x510] sm:$0xff]
        %v2636 = vld [vmem:[%s363 + $0x518] sm:$0xff]
        %v2637 = vld [vmem:[%s363 + $0x520] sm:$0xff]
        %v2638 = vld [vmem:[%s363 + $0x528] sm:$0xff]
        %v2639 = vld [vmem:[%s363 + $0x530] sm:$0xff]
        %v2640 = vld [vmem:[%s363 + $0x538] sm:$0xff]
        %v2641 = vld [vmem:[%s363 + $0x540] sm:$0xff]
        %v2642 = vld [vmem:[%s363 + $0x548] sm:$0xff]
        %v2643 = vld [vmem:[%s363 + $0x550] sm:$0xff]
        %v2644 = vld [vmem:[%s363 + $0x558] sm:$0xff]
        %v2645 = vld [vmem:[%s363 + $0x560] sm:$0xff]
        %v2646 = vld [vmem:[%s363 + $0x568] sm:$0xff]
        %v2647 = vld [vmem:[%s363 + $0x570] sm:$0xff]
        %v2648 = vld [vmem:[%s363 + $0x578] sm:$0xff]
        %v2649 = vld [vmem:[%s363 + $0x580] sm:$0xff]
        %v2650 = vld [vmem:[%s363 + $0x588] sm:$0xff]
        %v2651 = vld [vmem:[%s363 + $0x590] sm:$0xff]
        %v2652 = vld [vmem:[%s363 + $0x598] sm:$0xff]
        %v2653 = vld [vmem:[%s363 + $0x5a0] sm:$0xff]
        %v2654 = vld [vmem:[%s363 + $0x5a8] sm:$0xff]
        %v2655 = vld [vmem:[%s363 + $0x5b0] sm:$0xff]
        %v2656 = vld [vmem:[%s363 + $0x5b8] sm:$0xff]
        %v2657 = vld [vmem:[%s363 + $0x5c0] sm:$0xff]
        %v2658 = vld [vmem:[%s363 + $0x5c8] sm:$0xff]
        %v2659 = vld [vmem:[%s363 + $0x5d0] sm:$0xff]
        %v2660 = vld [vmem:[%s363 + $0x5d8] sm:$0xff]
        %v2661 = vld [vmem:[%s363 + $0x5e0] sm:$0xff]
        %v2662 = vld [vmem:[%s363 + $0x5e8] sm:$0xff]
        %v2663 = vld [vmem:[%s363 + $0x5f0] sm:$0xff]
        %v2664 = vld [vmem:[%s363 + $0x5f8] sm:$0xff]
        %v2665 = vld [vmem:[%s363 + $0x600] sm:$0xff]
        %v2666 = vld [vmem:[%s363 + $0x608] sm:$0xff]
        %v2667 = vld [vmem:[%s363 + $0x610] sm:$0xff]
        %v2668 = vld [vmem:[%s363 + $0x618] sm:$0xff]
        %v2669 = vld [vmem:[%s363 + $0x620] sm:$0xff]
        %v2670 = vld [vmem:[%s363 + $0x628] sm:$0xff]
        %v2671 = vld [vmem:[%s363 + $0x630] sm:$0xff]
        %v2672 = vld [vmem:[%s363 + $0x638] sm:$0xff]
        %v2673 = vld [vmem:[%s363 + $0x640] sm:$0xff]
        %v2674 = vld [vmem:[%s363 + $0x648] sm:$0xff]
        %v2675 = vld [vmem:[%s363 + $0x650] sm:$0xff]
        %v2676 = vld [vmem:[%s363 + $0x658] sm:$0xff]
        %v2677 = vld [vmem:[%s363 + $0x660] sm:$0xff]
        %v2678 = vld [vmem:[%s363 + $0x668] sm:$0xff]
        %v2679 = vld [vmem:[%s363 + $0x670] sm:$0xff]
        %v2680 = vld [vmem:[%s363 + $0x678] sm:$0xff]
        %v2681 = vld [vmem:[%s363 + $0x680] sm:$0xff]
        %v2682 = vld [vmem:[%s363 + $0x688] sm:$0xff]
        %v2683 = vld [vmem:[%s363 + $0x690] sm:$0xff]
        %v2684 = vld [vmem:[%s363 + $0x698] sm:$0xff]
        %v2685 = vld [vmem:[%s363 + $0x6a0] sm:$0xff]
        %v2686 = vld [vmem:[%s363 + $0x6a8] sm:$0xff]
        %v2687 = vld [vmem:[%s363 + $0x6b0] sm:$0xff]
        %v2688 = vld [vmem:[%s363 + $0x6b8] sm:$0xff]
        %v2689 = vld [vmem:[%s363 + $0x6c0] sm:$0xff]
        %v2690 = vld [vmem:[%s363 + $0x6c8] sm:$0xff]
        %v2691 = vld [vmem:[%s363 + $0x6d0] sm:$0xff]
        %v2692 = vld [vmem:[%s363 + $0x6d8] sm:$0xff]
        %v2693 = vld [vmem:[%s363 + $0x6e0] sm:$0xff]
        %v2694 = vld [vmem:[%s363 + $0x6e8] sm:$0xff]
        %v2695 = vld [vmem:[%s363 + $0x6f0] sm:$0xff]
        %v2696 = vld [vmem:[%s363 + $0x6f8] sm:$0xff]
        %v2697 = vld [vmem:[%s363 + $0x700] sm:$0xff]
        %v2698 = vld [vmem:[%s363 + $0x708] sm:$0xff]
        %v2699 = vld [vmem:[%s363 + $0x710] sm:$0xff]
        %v2700 = vld [vmem:[%s363 + $0x718] sm:$0xff]
        %v2701 = vld [vmem:[%s363 + $0x720] sm:$0xff]
        %v2702 = vld [vmem:[%s363 + $0x728] sm:$0xff]
        %v2703 = vld [vmem:[%s363 + $0x730] sm:$0xff]
        %v2704 = vld [vmem:[%s363 + $0x738] sm:$0xff]
        %v2705 = vld [vmem:[%s363 + $0x740] sm:$0xff]
        %v2706 = vld [vmem:[%s363 + $0x748] sm:$0xff]
        %v2707 = vld [vmem:[%s363 + $0x750] sm:$0xff]
        %v2708 = vld [vmem:[%s363 + $0x758] sm:$0xff]
        %v2709 = vld [vmem:[%s363 + $0x760] sm:$0xff]
        %v2710 = vld [vmem:[%s363 + $0x768] sm:$0xff]
        %v2711 = vld [vmem:[%s363 + $0x770] sm:$0xff]
        %v2712 = vld [vmem:[%s363 + $0x778] sm:$0xff]
        %v2713 = vld [vmem:[%s363 + $0x780] sm:$0xff]
        %v2714 = vld [vmem:[%s363 + $0x788] sm:$0xff]
        %v2715 = vld [vmem:[%s363 + $0x790] sm:$0xff]
        %v2716 = vld [vmem:[%s363 + $0x798] sm:$0xff]
        %v2717 = vld [vmem:[%s363 + $0x7a0] sm:$0xff]
        %v2718 = vld [vmem:[%s363 + $0x7a8] sm:$0xff]
        %v2719 = vld [vmem:[%s363 + $0x7b0] sm:$0xff]
        %v2720 = vld [vmem:[%s363 + $0x7b8] sm:$0xff]
        %v2721 = vld [vmem:[%s363 + $0x7c0] sm:$0xff]
        %v2722 = vld [vmem:[%s363 + $0x7c8] sm:$0xff]
        %v2723 = vld [vmem:[%s363 + $0x7d0] sm:$0xff]
        %v2724 = vld [vmem:[%s363 + $0x7d8] sm:$0xff]
        %v2725 = vld [vmem:[%s363 + $0x7e0] sm:$0xff]
        %v2726 = vld [vmem:[%s363 + $0x7e8] sm:$0xff]
        %v2727 = vld [vmem:[%s363 + $0x7f0] sm:$0xff]
        %v2728 = vld [vmem:[%s363 + $0x7f8] sm:$0xff]
        %v2729 = vld [vmem:[%s363 + $0x800] sm:$0xff]
        %v2730 = vld [vmem:[%s363 + $0x808] sm:$0xff]
        %v2731 = vld [vmem:[%s363 + $0x810] sm:$0xff]
        %v2732 = vld [vmem:[%s363 + $0x818] sm:$0xff]
        %v2733 = vld [vmem:[%s363 + $0x820] sm:$0xff]
        %v2734 = vld [vmem:[%s363 + $0x828] sm:$0xff]
        %v2735 = vld [vmem:[%s363 + $0x830] sm:$0xff]
        %v2736 = vld [vmem:[%s363 + $0x838] sm:$0xff]
        %v2737 = vld [vmem:[%s363 + $0x840] sm:$0xff]
        %v2738 = vld [vmem:[%s363 + $0x848] sm:$0xff]
        %v2739 = vld [vmem:[%s363 + $0x850] sm:$0xff]
        %v2740 = vld [vmem:[%s363 + $0x858] sm:$0xff]
        %v2741 = vld [vmem:[%s363 + $0x860] sm:$0xff]
        %v2742 = vld [vmem:[%s363 + $0x868] sm:$0xff]
        %v2743 = vld [vmem:[%s363 + $0x870] sm:$0xff]
        %v2744 = vld [vmem:[%s363 + $0x878] sm:$0xff]
        %v2745 = vld [vmem:[%s363 + $0x880] sm:$0xff]
        %v2746 = vld [vmem:[%s363 + $0x888] sm:$0xff]
        %v2747 = vld [vmem:[%s363 + $0x890] sm:$0xff]
        %v2748 = vld [vmem:[%s363 + $0x898] sm:$0xff]
        %v2749 = vld [vmem:[%s363 + $0x8a0] sm:$0xff]
        %v2750 = vld [vmem:[%s363 + $0x8a8] sm:$0xff]
        %v2751 = vld [vmem:[%s363 + $0x8b0] sm:$0xff]
        %v2752 = vld [vmem:[%s363 + $0x8b8] sm:$0xff]
        %v2753 = vld [vmem:[%s363 + $0x8c0] sm:$0xff]
        %v2754 = vld [vmem:[%s363 + $0x8c8] sm:$0xff]
        %v2755 = vld [vmem:[%s363 + $0x8d0] sm:$0xff]
        %v2756 = vld [vmem:[%s363 + $0x8d8] sm:$0xff]
        %v2757 = vld [vmem:[%s363 + $0x8e0] sm:$0xff]
        %v2758 = vld [vmem:[%s363 + $0x8e8] sm:$0xff]
        %v2759 = vld [vmem:[%s363 + $0x8f0] sm:$0xff]
        %v2760 = vld [vmem:[%s363 + $0x8f8] sm:$0xff]
        %v2761 = vld [vmem:[%s363 + $0x900] sm:$0xff]
        %v2762 = vld [vmem:[%s363 + $0x908] sm:$0xff]
        %v2763 = vld [vmem:[%s363 + $0x910] sm:$0xff]
        %v2764 = vld [vmem:[%s363 + $0x918] sm:$0xff]
        %v2765 = vld [vmem:[%s363 + $0x920] sm:$0xff]
        %v2766 = vld [vmem:[%s363 + $0x928] sm:$0xff]
        %v2767 = vld [vmem:[%s363 + $0x930] sm:$0xff]
        %v2768 = vld [vmem:[%s363 + $0x938] sm:$0xff]
        %v2769 = vld [vmem:[%s363 + $0x940] sm:$0xff]
        %v2770 = vld [vmem:[%s363 + $0x948] sm:$0xff]
        %v2771 = vld [vmem:[%s363 + $0x950] sm:$0xff]
        %v2772 = vld [vmem:[%s363 + $0x958] sm:$0xff]
        %v2773 = vld [vmem:[%s363 + $0x960] sm:$0xff]
        %v2774 = vld [vmem:[%s363 + $0x968] sm:$0xff]
        %v2775 = vld [vmem:[%s363 + $0x970] sm:$0xff]
        %v2776 = vld [vmem:[%s363 + $0x978] sm:$0xff]
        %v2777 = vld [vmem:[%s363 + $0x980] sm:$0xff]
        %v2778 = vld [vmem:[%s363 + $0x988] sm:$0xff]
        %v2779 = vld [vmem:[%s363 + $0x990] sm:$0xff]
        %v2780 = vld [vmem:[%s363 + $0x998] sm:$0xff]
        %v2781 = vld [vmem:[%s363 + $0x9a0] sm:$0xff]
        %v2782 = vld [vmem:[%s363 + $0x9a8] sm:$0xff]
        %v2783 = vld [vmem:[%s363 + $0x9b0] sm:$0xff]
        %v2784 = vld [vmem:[%s363 + $0x9b8] sm:$0xff]
        %v2785 = vld [vmem:[%s363 + $0x9c0] sm:$0xff]
        %v2786 = vld [vmem:[%s363 + $0x9c8] sm:$0xff]
        %v2787 = vld [vmem:[%s363 + $0x9d0] sm:$0xff]
        %v2788 = vld [vmem:[%s363 + $0x9d8] sm:$0xff]
        %v2789 = vld [vmem:[%s363 + $0x9e0] sm:$0xff]
        %v2790 = vld [vmem:[%s363 + $0x9e8] sm:$0xff]
        %v2791 = vld [vmem:[%s363 + $0x9f0] sm:$0xff]
        %v2792 = vld [vmem:[%s363 + $0x9f8] sm:$0xff]
        %v2793 = vld [vmem:[%s363 + $0xa00] sm:$0xff]
        %v2794 = vld [vmem:[%s363 + $0xa08] sm:$0xff]
        %v2795 = vld [vmem:[%s363 + $0xa10] sm:$0xff]
        %v2796 = vld [vmem:[%s363 + $0xa18] sm:$0xff]
        %v2797 = vld [vmem:[%s363 + $0xa20] sm:$0xff]
        %v2798 = vld [vmem:[%s363 + $0xa28] sm:$0xff]
        %v2799 = vld [vmem:[%s363 + $0xa30] sm:$0xff]
        %v2800 = vld [vmem:[%s363 + $0xa38] sm:$0xff]
        %v2801 = vld [vmem:[%s363 + $0xa40] sm:$0xff]
        %v2802 = vld [vmem:[%s363 + $0xa48] sm:$0xff]
        %v2803 = vld [vmem:[%s363 + $0xa50] sm:$0xff]
        %v2804 = vld [vmem:[%s363 + $0xa58] sm:$0xff]
        %v2805 = vld [vmem:[%s363 + $0xa60] sm:$0xff]
        %v2806 = vld [vmem:[%s363 + $0xa68] sm:$0xff]
        %v2807 = vld [vmem:[%s363 + $0xa70] sm:$0xff]
        %v2808 = vld [vmem:[%s363 + $0xa78] sm:$0xff]
        %v2809 = vld [vmem:[%s363 + $0xa80] sm:$0xff]
        %v2810 = vld [vmem:[%s363 + $0xa88] sm:$0xff]
        %v2811 = vld [vmem:[%s363 + $0xa90] sm:$0xff]
        %v2812 = vld [vmem:[%s363 + $0xa98] sm:$0xff]
        %v2813 = vld [vmem:[%s363 + $0xaa0] sm:$0xff]
        %v2814 = vld [vmem:[%s363 + $0xaa8] sm:$0xff]
        %v2815 = vld [vmem:[%s363 + $0xab0] sm:$0xff]
        %v2816 = vld [vmem:[%s363 + $0xab8] sm:$0xff]
        %v2817 = vld [vmem:[%s363 + $0xac0] sm:$0xff]
        %v2818 = vld [vmem:[%s363 + $0xac8] sm:$0xff]
        %v2819 = vld [vmem:[%s363 + $0xad0] sm:$0xff]
        %v2820 = vld [vmem:[%s363 + $0xad8] sm:$0xff]
        %v2821 = vld [vmem:[%s363 + $0xae0] sm:$0xff]
        %v2822 = vld [vmem:[%s363 + $0xae8] sm:$0xff]
        %v2823 = vld [vmem:[%s363 + $0xaf0] sm:$0xff]
        %v2824 = vld [vmem:[%s363 + $0xaf8] sm:$0xff]
        %v2825 = vld [vmem:[%s363 + $0xb00] sm:$0xff]
        %v2826 = vld [vmem:[%s363 + $0xb08] sm:$0xff]
        %v2827 = vld [vmem:[%s363 + $0xb10] sm:$0xff]
        %v2828 = vld [vmem:[%s363 + $0xb18] sm:$0xff]
        %v2829 = vld [vmem:[%s363 + $0xb20] sm:$0xff]
        %v2830 = vld [vmem:[%s363 + $0xb28] sm:$0xff]
        %v2831 = vld [vmem:[%s363 + $0xb30] sm:$0xff]
        %v2832 = vld [vmem:[%s363 + $0xb38] sm:$0xff]
        %v2833 = vld [vmem:[%s363 + $0xb40] sm:$0xff]
        %v2834 = vld [vmem:[%s363 + $0xb48] sm:$0xff]
        %v2835 = vld [vmem:[%s363 + $0xb50] sm:$0xff]
        %v2836 = vld [vmem:[%s363 + $0xb58] sm:$0xff]
        %v2837 = vld [vmem:[%s363 + $0xb60] sm:$0xff]
        %v2838 = vld [vmem:[%s363 + $0xb68] sm:$0xff]
        %v2839 = vld [vmem:[%s363 + $0xb70] sm:$0xff]
        %v2840 = vld [vmem:[%s363 + $0xb78] sm:$0xff]
        %v2841 = vld [vmem:[%s363 + $0xb80] sm:$0xff]
        %v2842 = vld [vmem:[%s363 + $0xb88] sm:$0xff]
        %v2843 = vld [vmem:[%s363 + $0xb90] sm:$0xff]
        %v2844 = vld [vmem:[%s363 + $0xb98] sm:$0xff]
        %v2845 = vld [vmem:[%s363 + $0xba0] sm:$0xff]
        %v2846 = vld [vmem:[%s363 + $0xba8] sm:$0xff]
        %v2847 = vld [vmem:[%s363 + $0xbb0] sm:$0xff]
        %v2848 = vld [vmem:[%s363 + $0xbb8] sm:$0xff]
        %v2849 = vld [vmem:[%s363 + $0xbc0] sm:$0xff]
        %v2850 = vld [vmem:[%s363 + $0xbc8] sm:$0xff]
        %v2851 = vld [vmem:[%s363 + $0xbd0] sm:$0xff]
        %v2852 = vld [vmem:[%s363 + $0xbd8] sm:$0xff]
        %v2853 = vld [vmem:[%s363 + $0xbe0] sm:$0xff]
        %v2854 = vld [vmem:[%s363 + $0xbe8] sm:$0xff]
        %v2855 = vld [vmem:[%s363 + $0xbf0] sm:$0xff]
        %v2856 = vld [vmem:[%s363 + $0xbf8] sm:$0xff]
        %v2857 = vld [vmem:[%s363 + $0xc00] sm:$0xff]
        %v2858 = vld [vmem:[%s363 + $0xc08] sm:$0xff]
        %v2859 = vld [vmem:[%s363 + $0xc10] sm:$0xff]
        %v2860 = vld [vmem:[%s363 + $0xc18] sm:$0xff]
        %v2861 = vld [vmem:[%s363 + $0xc20] sm:$0xff]
        %v2862 = vld [vmem:[%s363 + $0xc28] sm:$0xff]
        %v2863 = vld [vmem:[%s363 + $0xc30] sm:$0xff]
        %v2864 = vld [vmem:[%s363 + $0xc38] sm:$0xff]
        %v2865 = vld [vmem:[%s363 + $0xc40] sm:$0xff]
        %v2866 = vld [vmem:[%s363 + $0xc48] sm:$0xff]
        %v2867 = vld [vmem:[%s363 + $0xc50] sm:$0xff]
        %v2868 = vld [vmem:[%s363 + $0xc58] sm:$0xff]
        %v2869 = vld [vmem:[%s363 + $0xc60] sm:$0xff]
        %v2870 = vld [vmem:[%s363 + $0xc68] sm:$0xff]
        %v2871 = vld [vmem:[%s363 + $0xc70] sm:$0xff]
        %v2872 = vld [vmem:[%s363 + $0xc78] sm:$0xff]
        %v2873 = vld [vmem:[%s363 + $0xc80] sm:$0xff]
        %v2874 = vld [vmem:[%s363 + $0xc88] sm:$0xff]
        %v2875 = vld [vmem:[%s363 + $0xc90] sm:$0xff]
        %v2876 = vld [vmem:[%s363 + $0xc98] sm:$0xff]
        %v2877 = vld [vmem:[%s363 + $0xca0] sm:$0xff]
        %v2878 = vld [vmem:[%s363 + $0xca8] sm:$0xff]
        %v2879 = vld [vmem:[%s363 + $0xcb0] sm:$0xff]
        %v2880 = vld [vmem:[%s363 + $0xcb8] sm:$0xff]
        %v2881 = vld [vmem:[%s363 + $0xcc0] sm:$0xff]
        %v2882 = vld [vmem:[%s363 + $0xcc8] sm:$0xff]
        %v2883 = vld [vmem:[%s363 + $0xcd0] sm:$0xff]
        %v2884 = vld [vmem:[%s363 + $0xcd8] sm:$0xff]
        %v2885 = vld [vmem:[%s363 + $0xce0] sm:$0xff]
        %v2886 = vld [vmem:[%s363 + $0xce8] sm:$0xff]
        %v2887 = vld [vmem:[%s363 + $0xcf0] sm:$0xff]
        %v2888 = vld [vmem:[%s363 + $0xcf8] sm:$0xff]
        %v2889 = vld [vmem:[%s363 + $0xd00] sm:$0xff]
        %v2890 = vld [vmem:[%s363 + $0xd08] sm:$0xff]
        %v2891 = vld [vmem:[%s363 + $0xd10] sm:$0xff]
        %v2892 = vld [vmem:[%s363 + $0xd18] sm:$0xff]
        %v2893 = vld [vmem:[%s363 + $0xd20] sm:$0xff]
        %v2894 = vld [vmem:[%s363 + $0xd28] sm:$0xff]
        %v2895 = vld [vmem:[%s363 + $0xd30] sm:$0xff]
        %v2896 = vld [vmem:[%s363 + $0xd38] sm:$0xff]
        %v2897 = vld [vmem:[%s363 + $0xd40] sm:$0xff]
        %v2898 = vld [vmem:[%s363 + $0xd48] sm:$0xff]
        %v2899 = vld [vmem:[%s363 + $0xd50] sm:$0xff]
        %v2900 = vld [vmem:[%s363 + $0xd58] sm:$0xff]
        %v2901 = vld [vmem:[%s363 + $0xd60] sm:$0xff]
        %v2902 = vld [vmem:[%s363 + $0xd68] sm:$0xff]
        %v2903 = vld [vmem:[%s363 + $0xd70] sm:$0xff]
        %v2904 = vld [vmem:[%s363 + $0xd78] sm:$0xff]
        %v2905 = vld [vmem:[%s363 + $0xd80] sm:$0xff]
        %v2906 = vld [vmem:[%s363 + $0xd88] sm:$0xff]
        %v2907 = vld [vmem:[%s363 + $0xd90] sm:$0xff]
        %v2908 = vld [vmem:[%s363 + $0xd98] sm:$0xff]
        %v2909 = vld [vmem:[%s363 + $0xda0] sm:$0xff]
        %v2910 = vld [vmem:[%s363 + $0xda8] sm:$0xff]
        %v2911 = vld [vmem:[%s363 + $0xdb0] sm:$0xff]
        %v2912 = vld [vmem:[%s363 + $0xdb8] sm:$0xff]
        %v2913 = vld [vmem:[%s363 + $0xdc0] sm:$0xff]
        %v2914 = vld [vmem:[%s363 + $0xdc8] sm:$0xff]
        %v2915 = vld [vmem:[%s363 + $0xdd0] sm:$0xff]
        %v2916 = vld [vmem:[%s363 + $0xdd8] sm:$0xff]
        %v2917 = vld [vmem:[%s363 + $0xde0] sm:$0xff]
        %v2918 = vld [vmem:[%s363 + $0xde8] sm:$0xff]
        %v2919 = vld [vmem:[%s363 + $0xdf0] sm:$0xff]
        %v2920 = vld [vmem:[%s363 + $0xdf8] sm:$0xff]
        %v2921 = vld [vmem:[%s363 + $0xe00] sm:$0xff]
        %v2922 = vld [vmem:[%s363 + $0xe08] sm:$0xff]
        %v2923 = vld [vmem:[%s363 + $0xe10] sm:$0xff]
        %v2924 = vld [vmem:[%s363 + $0xe18] sm:$0xff]
        %v2925 = vld [vmem:[%s363 + $0xe20] sm:$0xff]
        %v2926 = vld [vmem:[%s363 + $0xe28] sm:$0xff]
        %v2927 = vld [vmem:[%s363 + $0xe30] sm:$0xff]
        %v2928 = vld [vmem:[%s363 + $0xe38] sm:$0xff]
        %v2929 = vld [vmem:[%s363 + $0xe40] sm:$0xff]
        %v2930 = vld [vmem:[%s363 + $0xe48] sm:$0xff]
        %v2931 = vld [vmem:[%s363 + $0xe50] sm:$0xff]
        %v2932 = vld [vmem:[%s363 + $0xe58] sm:$0xff]
        %v2933 = vld [vmem:[%s363 + $0xe60] sm:$0xff]
        %v2934 = vld [vmem:[%s363 + $0xe68] sm:$0xff]
        %v2935 = vld [vmem:[%s363 + $0xe70] sm:$0xff]
        %v2936 = vld [vmem:[%s363 + $0xe78] sm:$0xff]
        %v2937 = vld [vmem:[%s363 + $0xe80] sm:$0xff]
        %v2938 = vld [vmem:[%s363 + $0xe88] sm:$0xff]
        %v2939 = vld [vmem:[%s363 + $0xe90] sm:$0xff]
        %v2940 = vld [vmem:[%s363 + $0xe98] sm:$0xff]
        %v2941 = vld [vmem:[%s363 + $0xea0] sm:$0xff]
        %v2942 = vld [vmem:[%s363 + $0xea8] sm:$0xff]
        %v2943 = vld [vmem:[%s363 + $0xeb0] sm:$0xff]
        %v2944 = vld [vmem:[%s363 + $0xeb8] sm:$0xff]
        %v2945 = vld [vmem:[%s363 + $0xec0] sm:$0xff]
        %v2946 = vld [vmem:[%s363 + $0xec8] sm:$0xff]
        %v2947 = vld [vmem:[%s363 + $0xed0] sm:$0xff]
        %v2948 = vld [vmem:[%s363 + $0xed8] sm:$0xff]
        %v2949 = vld [vmem:[%s363 + $0xee0] sm:$0xff]
        %v2950 = vld [vmem:[%s363 + $0xee8] sm:$0xff]
        %v2951 = vld [vmem:[%s363 + $0xef0] sm:$0xff]
        %v2952 = vld [vmem:[%s363 + $0xef8] sm:$0xff]
        %v2953 = vld [vmem:[%s363 + $0xf00] sm:$0xff]
        %v2954 = vld [vmem:[%s363 + $0xf08] sm:$0xff]
        %v2955 = vld [vmem:[%s363 + $0xf10] sm:$0xff]
        %v2956 = vld [vmem:[%s363 + $0xf18] sm:$0xff]
        %v2957 = vld [vmem:[%s363 + $0xf20] sm:$0xff]
        %v2958 = vld [vmem:[%s363 + $0xf28] sm:$0xff]
        %v2959 = vld [vmem:[%s363 + $0xf30] sm:$0xff]
        %v2960 = vld [vmem:[%s363 + $0xf38] sm:$0xff]
        %v2961 = vld [vmem:[%s363 + $0xf40] sm:$0xff]
        %v2962 = vld [vmem:[%s363 + $0xf48] sm:$0xff]
        %v2963 = vld [vmem:[%s363 + $0xf50] sm:$0xff]
        %v2964 = vld [vmem:[%s363 + $0xf58] sm:$0xff]
        %v2965 = vld [vmem:[%s363 + $0xf60] sm:$0xff]
        %v2966 = vld [vmem:[%s363 + $0xf68] sm:$0xff]
        %v2967 = vld [vmem:[%s363 + $0xf70] sm:$0xff]
        %v2968 = vld [vmem:[%s363 + $0xf78] sm:$0xff]
        %v2969 = vld [vmem:[%s363 + $0xf80] sm:$0xff]
        %v2970 = vld [vmem:[%s363 + $0xf88] sm:$0xff]
        %v2971 = vld [vmem:[%s363 + $0xf90] sm:$0xff]
        %v2972 = vld [vmem:[%s363 + $0xf98] sm:$0xff]
        %v2973 = vld [vmem:[%s363 + $0xfa0] sm:$0xff]
        %v2974 = vld [vmem:[%s363 + $0xfa8] sm:$0xff]
        %v2975 = vld [vmem:[%s363 + $0xfb0] sm:$0xff]
        %v2976 = vld [vmem:[%s363 + $0xfb8] sm:$0xff]
        %v2977 = vld [vmem:[%s363 + $0xfc0] sm:$0xff]
        %v2978 = vld [vmem:[%s363 + $0xfc8] sm:$0xff]
        %v2979 = vld [vmem:[%s363 + $0xfd0] sm:$0xff]
        %v2980 = vld [vmem:[%s363 + $0xfd8] sm:$0xff]
        %v2981 = vld [vmem:[%s363 + $0xfe0] sm:$0xff]
        %v2982 = vld [vmem:[%s363 + $0xfe8] sm:$0xff]
        %v2983 = vld [vmem:[%s363 + $0xff0] sm:$0xff]
        %v2984 = vld [vmem:[%s363 + $0xff8] sm:$0xff]
        %v2985 = vld [vmem:[%s373] sm:$0xf]
        %v2987 = vperm.slane %v2985, 0
        %v2988 = vperm.slane %v2985, 1
        %v2989 = vperm.slane %v2985, 2
        %v2990 = vperm.slane %v2985, 3
        %v3003 = vunpack.c.l.b16 %v2465
        %v3004 = vunpack.c.h.b16 %v2465
        %v3005 = vunpack.c.l.b16 %v2466
        %v3006 = vunpack.c.h.b16 %v2466
        %v3007 = vunpack.c.l.b16 %v2467
        %v3008 = vunpack.c.h.b16 %v2467
        %v3009 = vunpack.c.l.b16 %v2468
        %v3010 = vunpack.c.h.b16 %v2468
        %v3011 = vunpack.c.l.b16 %v2469
        %v3012 = vunpack.c.h.b16 %v2469
        %v3013 = vunpack.c.l.b16 %v2470
        %v3014 = vunpack.c.h.b16 %v2470
        %v3015 = vunpack.c.l.b16 %v2471
        %v3016 = vunpack.c.h.b16 %v2471
        %v3017 = vunpack.c.l.b16 %v2472
        %v3018 = vunpack.c.h.b16 %v2472
        %v3019 = vpack.c.b16 %v3003, %v3003
        %v3020 = vpack.c.b16 %v3004, %v3004
        %v3021 = vpack.c.b16 %v3005, %v3005
        %v3022 = vpack.c.b16 %v3006, %v3006
        %v3023 = vpack.c.b16 %v3007, %v3007
        %v3024 = vpack.c.b16 %v3008, %v3008
        %v3025 = vpack.c.b16 %v3009, %v3009
        %v3026 = vpack.c.b16 %v3010, %v3010
        %v3027 = vpack.c.b16 %v3011, %v3011
        %v3028 = vpack.c.b16 %v3012, %v3012
        %v3029 = vpack.c.b16 %v3013, %v3013
        %v3030 = vpack.c.b16 %v3014, %v3014
        %v3031 = vpack.c.b16 %v3015, %v3015
        %v3032 = vpack.c.b16 %v3016, %v3016
        %v3033 = vpack.c.b16 %v3017, %v3017
        %v3034 = vpack.c.b16 %v3018, %v3018
        %v3563 = vunpack.c.l.b16 %v2473
        %v3564 = vunpack.c.h.b16 %v2473
        %v3565 = vunpack.c.l.b16 %v2474
        %v3566 = vunpack.c.h.b16 %v2474
        %v3567 = vunpack.c.l.b16 %v2475
        %v3568 = vunpack.c.h.b16 %v2475
        %v3569 = vunpack.c.l.b16 %v2476
        %v3570 = vunpack.c.h.b16 %v2476
        %v3571 = vunpack.c.l.b16 %v2477
        %v3572 = vunpack.c.h.b16 %v2477
        %v3573 = vunpack.c.l.b16 %v2478
        %v3574 = vunpack.c.h.b16 %v2478
        %v3575 = vunpack.c.l.b16 %v2479
        %v3576 = vunpack.c.h.b16 %v2479
        %v3577 = vunpack.c.l.b16 %v2480
        %v3578 = vunpack.c.h.b16 %v2480
        %v3579 = vunpack.c.l.b16 %v2481
        %v3580 = vunpack.c.h.b16 %v2481
        %v3581 = vunpack.c.l.b16 %v2482
        %v3582 = vunpack.c.h.b16 %v2482
        %v3583 = vunpack.c.l.b16 %v2483
        %v3584 = vunpack.c.h.b16 %v2483
        %v3585 = vunpack.c.l.b16 %v2484
        %v3586 = vunpack.c.h.b16 %v2484
        %v3587 = vunpack.c.l.b16 %v2485
        %v3588 = vunpack.c.h.b16 %v2485
        %v3589 = vunpack.c.l.b16 %v2486
        %v3590 = vunpack.c.h.b16 %v2486
        %v3591 = vunpack.c.l.b16 %v2487
        %v3592 = vunpack.c.h.b16 %v2487
        %v3593 = vunpack.c.l.b16 %v2488
        %v3594 = vunpack.c.h.b16 %v2488
        %v3595 = vunpack.c.l.b16 %v2489
        %v3596 = vunpack.c.h.b16 %v2489
        %v3597 = vunpack.c.l.b16 %v2490
        %v3598 = vunpack.c.h.b16 %v2490
        %v3599 = vunpack.c.l.b16 %v2491
        %v3600 = vunpack.c.h.b16 %v2491
        %v3601 = vunpack.c.l.b16 %v2492
        %v3602 = vunpack.c.h.b16 %v2492
        %v3603 = vunpack.c.l.b16 %v2493
        %v3604 = vunpack.c.h.b16 %v2493
        %v3605 = vunpack.c.l.b16 %v2494
        %v3606 = vunpack.c.h.b16 %v2494
        %v3607 = vunpack.c.l.b16 %v2495
        %v3608 = vunpack.c.h.b16 %v2495
        %v3609 = vunpack.c.l.b16 %v2496
        %v3610 = vunpack.c.h.b16 %v2496
        %v3611 = vunpack.c.l.b16 %v2497
        %v3612 = vunpack.c.h.b16 %v2497
        %v3613 = vunpack.c.l.b16 %v2498
        %v3614 = vunpack.c.h.b16 %v2498
        %v3615 = vunpack.c.l.b16 %v2499
        %v3616 = vunpack.c.h.b16 %v2499
        %v3617 = vunpack.c.l.b16 %v2500
        %v3618 = vunpack.c.h.b16 %v2500
        %v3619 = vunpack.c.l.b16 %v2501
        %v3620 = vunpack.c.h.b16 %v2501
        %v3621 = vunpack.c.l.b16 %v2502
        %v3622 = vunpack.c.h.b16 %v2502
        %v3623 = vunpack.c.l.b16 %v2503
        %v3624 = vunpack.c.h.b16 %v2503
        %v3625 = vunpack.c.l.b16 %v2504
        %v3626 = vunpack.c.h.b16 %v2504
        %v3627 = vunpack.c.l.b16 %v2505
        %v3628 = vunpack.c.h.b16 %v2505
        %v3629 = vunpack.c.l.b16 %v2506
        %v3630 = vunpack.c.h.b16 %v2506
        %v3631 = vunpack.c.l.b16 %v2507
        %v3632 = vunpack.c.h.b16 %v2507
        %v3633 = vunpack.c.l.b16 %v2508
        %v3634 = vunpack.c.h.b16 %v2508
        %v3635 = vunpack.c.l.b16 %v2509
        %v3636 = vunpack.c.h.b16 %v2509
        %v3637 = vunpack.c.l.b16 %v2510
        %v3638 = vunpack.c.h.b16 %v2510
        %v3639 = vunpack.c.l.b16 %v2511
        %v3640 = vunpack.c.h.b16 %v2511
        %v3641 = vunpack.c.l.b16 %v2512
        %v3642 = vunpack.c.h.b16 %v2512
        %v3643 = vunpack.c.l.b16 %v2513
        %v3644 = vunpack.c.h.b16 %v2513
        %v3645 = vunpack.c.l.b16 %v2514
        %v3646 = vunpack.c.h.b16 %v2514
        %v3647 = vunpack.c.l.b16 %v2515
        %v3648 = vunpack.c.h.b16 %v2515
        %v3649 = vunpack.c.l.b16 %v2516
        %v3650 = vunpack.c.h.b16 %v2516
        %v3651 = vunpack.c.l.b16 %v2517
        %v3652 = vunpack.c.h.b16 %v2517
        %v3653 = vunpack.c.l.b16 %v2518
        %v3654 = vunpack.c.h.b16 %v2518
        %v3655 = vunpack.c.l.b16 %v2519
        %v3656 = vunpack.c.h.b16 %v2519
        %v3657 = vunpack.c.l.b16 %v2520
        %v3658 = vunpack.c.h.b16 %v2520
        %v3659 = vunpack.c.l.b16 %v2521
        %v3660 = vunpack.c.h.b16 %v2521
        %v3661 = vunpack.c.l.b16 %v2522
        %v3662 = vunpack.c.h.b16 %v2522
        %v3663 = vunpack.c.l.b16 %v2523
        %v3664 = vunpack.c.h.b16 %v2523
        %v3665 = vunpack.c.l.b16 %v2524
        %v3666 = vunpack.c.h.b16 %v2524
        %v3667 = vunpack.c.l.b16 %v2525
        %v3668 = vunpack.c.h.b16 %v2525
        %v3669 = vunpack.c.l.b16 %v2526
        %v3670 = vunpack.c.h.b16 %v2526
        %v3671 = vunpack.c.l.b16 %v2527
        %v3672 = vunpack.c.h.b16 %v2527
        %v3673 = vunpack.c.l.b16 %v2528
        %v3674 = vunpack.c.h.b16 %v2528
        %v3675 = vunpack.c.l.b16 %v2529
        %v3676 = vunpack.c.h.b16 %v2529
        %v3677 = vunpack.c.l.b16 %v2530
        %v3678 = vunpack.c.h.b16 %v2530
        %v3679 = vunpack.c.l.b16 %v2531
        %v3680 = vunpack.c.h.b16 %v2531
        %v3681 = vunpack.c.l.b16 %v2532
        %v3682 = vunpack.c.h.b16 %v2532
        %v3683 = vunpack.c.l.b16 %v2533
        %v3684 = vunpack.c.h.b16 %v2533
        %v3685 = vunpack.c.l.b16 %v2534
        %v3686 = vunpack.c.h.b16 %v2534
        %v3687 = vunpack.c.l.b16 %v2535
        %v3688 = vunpack.c.h.b16 %v2535
        %v3689 = vunpack.c.l.b16 %v2536
        %v3690 = vunpack.c.h.b16 %v2536
        %v3691 = vunpack.c.l.b16 %v2537
        %v3692 = vunpack.c.h.b16 %v2537
        %v3693 = vunpack.c.l.b16 %v2538
        %v3694 = vunpack.c.h.b16 %v2538
        %v3695 = vunpack.c.l.b16 %v2539
        %v3696 = vunpack.c.h.b16 %v2539
        %v3697 = vunpack.c.l.b16 %v2540
        %v3698 = vunpack.c.h.b16 %v2540
        %v3699 = vunpack.c.l.b16 %v2541
        %v3700 = vunpack.c.h.b16 %v2541
        %v3701 = vunpack.c.l.b16 %v2542
        %v3702 = vunpack.c.h.b16 %v2542
        %v3703 = vunpack.c.l.b16 %v2543
        %v3704 = vunpack.c.h.b16 %v2543
        %v3705 = vunpack.c.l.b16 %v2544
        %v3706 = vunpack.c.h.b16 %v2544
        %v3707 = vunpack.c.l.b16 %v2545
        %v3708 = vunpack.c.h.b16 %v2545
        %v3709 = vunpack.c.l.b16 %v2546
        %v3710 = vunpack.c.h.b16 %v2546
        %v3711 = vunpack.c.l.b16 %v2547
        %v3712 = vunpack.c.h.b16 %v2547
        %v3713 = vunpack.c.l.b16 %v2548
        %v3714 = vunpack.c.h.b16 %v2548
        %v3715 = vunpack.c.l.b16 %v2549
        %v3716 = vunpack.c.h.b16 %v2549
        %v3717 = vunpack.c.l.b16 %v2550
        %v3718 = vunpack.c.h.b16 %v2550
        %v3719 = vunpack.c.l.b16 %v2551
        %v3720 = vunpack.c.h.b16 %v2551
        %v3721 = vunpack.c.l.b16 %v2552
        %v3722 = vunpack.c.h.b16 %v2552
        %v3723 = vunpack.c.l.b16 %v2553
        %v3724 = vunpack.c.h.b16 %v2553
        %v3725 = vunpack.c.l.b16 %v2554
        %v3726 = vunpack.c.h.b16 %v2554
        %v3727 = vunpack.c.l.b16 %v2555
        %v3728 = vunpack.c.h.b16 %v2555
        %v3729 = vunpack.c.l.b16 %v2556
        %v3730 = vunpack.c.h.b16 %v2556
        %v3731 = vunpack.c.l.b16 %v2557
        %v3732 = vunpack.c.h.b16 %v2557
        %v3733 = vunpack.c.l.b16 %v2558
        %v3734 = vunpack.c.h.b16 %v2558
        %v3735 = vunpack.c.l.b16 %v2559
        %v3736 = vunpack.c.h.b16 %v2559
        %v3737 = vunpack.c.l.b16 %v2560
        %v3738 = vunpack.c.h.b16 %v2560
        %v3739 = vunpack.c.l.b16 %v2561
        %v3740 = vunpack.c.h.b16 %v2561
        %v3741 = vunpack.c.l.b16 %v2562
        %v3742 = vunpack.c.h.b16 %v2562
        %v3743 = vunpack.c.l.b16 %v2563
        %v3744 = vunpack.c.h.b16 %v2563
        %v3745 = vunpack.c.l.b16 %v2564
        %v3746 = vunpack.c.h.b16 %v2564
        %v3747 = vunpack.c.l.b16 %v2565
        %v3748 = vunpack.c.h.b16 %v2565
        %v3749 = vunpack.c.l.b16 %v2566
        %v3750 = vunpack.c.h.b16 %v2566
        %v3751 = vunpack.c.l.b16 %v2567
        %v3752 = vunpack.c.h.b16 %v2567
        %v3753 = vunpack.c.l.b16 %v2568
        %v3754 = vunpack.c.h.b16 %v2568
        %v3755 = vunpack.c.l.b16 %v2569
        %v3756 = vunpack.c.h.b16 %v2569
        %v3757 = vunpack.c.l.b16 %v2570
        %v3758 = vunpack.c.h.b16 %v2570
        %v3759 = vunpack.c.l.b16 %v2571
        %v3760 = vunpack.c.h.b16 %v2571
        %v3761 = vunpack.c.l.b16 %v2572
        %v3762 = vunpack.c.h.b16 %v2572
        %v3763 = vunpack.c.l.b16 %v2573
        %v3764 = vunpack.c.h.b16 %v2573
        %v3765 = vunpack.c.l.b16 %v2574
        %v3766 = vunpack.c.h.b16 %v2574
        %v3767 = vunpack.c.l.b16 %v2575
        %v3768 = vunpack.c.h.b16 %v2575
        %v3769 = vunpack.c.l.b16 %v2576
        %v3770 = vunpack.c.h.b16 %v2576
        %v3771 = vunpack.c.l.b16 %v2577
        %v3772 = vunpack.c.h.b16 %v2577
        %v3773 = vunpack.c.l.b16 %v2578
        %v3774 = vunpack.c.h.b16 %v2578
        %v3775 = vunpack.c.l.b16 %v2579
        %v3776 = vunpack.c.h.b16 %v2579
        %v3777 = vunpack.c.l.b16 %v2580
        %v3778 = vunpack.c.h.b16 %v2580
        %v3779 = vunpack.c.l.b16 %v2581
        %v3780 = vunpack.c.h.b16 %v2581
        %v3781 = vunpack.c.l.b16 %v2582
        %v3782 = vunpack.c.h.b16 %v2582
        %v3783 = vunpack.c.l.b16 %v2583
        %v3784 = vunpack.c.h.b16 %v2583
        %v3785 = vunpack.c.l.b16 %v2584
        %v3786 = vunpack.c.h.b16 %v2584
        %v3787 = vunpack.c.l.b16 %v2585
        %v3788 = vunpack.c.h.b16 %v2585
        %v3789 = vunpack.c.l.b16 %v2586
        %v3790 = vunpack.c.h.b16 %v2586
        %v3791 = vunpack.c.l.b16 %v2587
        %v3792 = vunpack.c.h.b16 %v2587
        %v3793 = vunpack.c.l.b16 %v2588
        %v3794 = vunpack.c.h.b16 %v2588
        %v3795 = vunpack.c.l.b16 %v2589
        %v3796 = vunpack.c.h.b16 %v2589
        %v3797 = vunpack.c.l.b16 %v2590
        %v3798 = vunpack.c.h.b16 %v2590
        %v3799 = vunpack.c.l.b16 %v2591
        %v3800 = vunpack.c.h.b16 %v2591
        %v3801 = vunpack.c.l.b16 %v2592
        %v3802 = vunpack.c.h.b16 %v2592
        %v3803 = vunpack.c.l.b16 %v2593
        %v3804 = vunpack.c.h.b16 %v2593
        %v3805 = vunpack.c.l.b16 %v2594
        %v3806 = vunpack.c.h.b16 %v2594
        %v3807 = vunpack.c.l.b16 %v2595
        %v3808 = vunpack.c.h.b16 %v2595
        %v3809 = vunpack.c.l.b16 %v2596
        %v3810 = vunpack.c.h.b16 %v2596
        %v3811 = vunpack.c.l.b16 %v2597
        %v3812 = vunpack.c.h.b16 %v2597
        %v3813 = vunpack.c.l.b16 %v2598
        %v3814 = vunpack.c.h.b16 %v2598
        %v3815 = vunpack.c.l.b16 %v2599
        %v3816 = vunpack.c.h.b16 %v2599
        %v3817 = vunpack.c.l.b16 %v2600
        %v3818 = vunpack.c.h.b16 %v2600
        %v3819 = vunpack.c.l.b16 %v2601
        %v3820 = vunpack.c.h.b16 %v2601
        %v3821 = vunpack.c.l.b16 %v2602
        %v3822 = vunpack.c.h.b16 %v2602
        %v3823 = vunpack.c.l.b16 %v2603
        %v3824 = vunpack.c.h.b16 %v2603
        %v3825 = vunpack.c.l.b16 %v2604
        %v3826 = vunpack.c.h.b16 %v2604
        %v3827 = vunpack.c.l.b16 %v2605
        %v3828 = vunpack.c.h.b16 %v2605
        %v3829 = vunpack.c.l.b16 %v2606
        %v3830 = vunpack.c.h.b16 %v2606
        %v3831 = vunpack.c.l.b16 %v2607
        %v3832 = vunpack.c.h.b16 %v2607
        %v3833 = vunpack.c.l.b16 %v2608
        %v3834 = vunpack.c.h.b16 %v2608
        %v3835 = vunpack.c.l.b16 %v2609
        %v3836 = vunpack.c.h.b16 %v2609
        %v3837 = vunpack.c.l.b16 %v2610
        %v3838 = vunpack.c.h.b16 %v2610
        %v3839 = vunpack.c.l.b16 %v2611
        %v3840 = vunpack.c.h.b16 %v2611
        %v3841 = vunpack.c.l.b16 %v2612
        %v3842 = vunpack.c.h.b16 %v2612
        %v3843 = vunpack.c.l.b16 %v2613
        %v3844 = vunpack.c.h.b16 %v2613
        %v3845 = vunpack.c.l.b16 %v2614
        %v3846 = vunpack.c.h.b16 %v2614
        %v3847 = vunpack.c.l.b16 %v2615
        %v3848 = vunpack.c.h.b16 %v2615
        %v3849 = vunpack.c.l.b16 %v2616
        %v3850 = vunpack.c.h.b16 %v2616
        %v3851 = vunpack.c.l.b16 %v2617
        %v3852 = vunpack.c.h.b16 %v2617
        %v3853 = vunpack.c.l.b16 %v2618
        %v3854 = vunpack.c.h.b16 %v2618
        %v3855 = vunpack.c.l.b16 %v2619
        %v3856 = vunpack.c.h.b16 %v2619
        %v3857 = vunpack.c.l.b16 %v2620
        %v3858 = vunpack.c.h.b16 %v2620
        %v3859 = vunpack.c.l.b16 %v2621
        %v3860 = vunpack.c.h.b16 %v2621
        %v3861 = vunpack.c.l.b16 %v2622
        %v3862 = vunpack.c.h.b16 %v2622
        %v3863 = vunpack.c.l.b16 %v2623
        %v3864 = vunpack.c.h.b16 %v2623
        %v3865 = vunpack.c.l.b16 %v2624
        %v3866 = vunpack.c.h.b16 %v2624
        %v3867 = vunpack.c.l.b16 %v2625
        %v3868 = vunpack.c.h.b16 %v2625
        %v3869 = vunpack.c.l.b16 %v2626
        %v3870 = vunpack.c.h.b16 %v2626
        %v3871 = vunpack.c.l.b16 %v2627
        %v3872 = vunpack.c.h.b16 %v2627
        %v3873 = vunpack.c.l.b16 %v2628
        %v3874 = vunpack.c.h.b16 %v2628
        %v3875 = vunpack.c.l.b16 %v2629
        %v3876 = vunpack.c.h.b16 %v2629
        %v3877 = vunpack.c.l.b16 %v2630
        %v3878 = vunpack.c.h.b16 %v2630
        %v3879 = vunpack.c.l.b16 %v2631
        %v3880 = vunpack.c.h.b16 %v2631
        %v3881 = vunpack.c.l.b16 %v2632
        %v3882 = vunpack.c.h.b16 %v2632
        %v3883 = vunpack.c.l.b16 %v2633
        %v3884 = vunpack.c.h.b16 %v2633
        %v3885 = vunpack.c.l.b16 %v2634
        %v3886 = vunpack.c.h.b16 %v2634
        %v3887 = vunpack.c.l.b16 %v2635
        %v3888 = vunpack.c.h.b16 %v2635
        %v3889 = vunpack.c.l.b16 %v2636
        %v3890 = vunpack.c.h.b16 %v2636
        %v3891 = vunpack.c.l.b16 %v2637
        %v3892 = vunpack.c.h.b16 %v2637
        %v3893 = vunpack.c.l.b16 %v2638
        %v3894 = vunpack.c.h.b16 %v2638
        %v3895 = vunpack.c.l.b16 %v2639
        %v3896 = vunpack.c.h.b16 %v2639
        %v3897 = vunpack.c.l.b16 %v2640
        %v3898 = vunpack.c.h.b16 %v2640
        %v3899 = vunpack.c.l.b16 %v2641
        %v3900 = vunpack.c.h.b16 %v2641
        %v3901 = vunpack.c.l.b16 %v2642
        %v3902 = vunpack.c.h.b16 %v2642
        %v3903 = vunpack.c.l.b16 %v2643
        %v3904 = vunpack.c.h.b16 %v2643
        %v3905 = vunpack.c.l.b16 %v2644
        %v3906 = vunpack.c.h.b16 %v2644
        %v3907 = vunpack.c.l.b16 %v2645
        %v3908 = vunpack.c.h.b16 %v2645
        %v3909 = vunpack.c.l.b16 %v2646
        %v3910 = vunpack.c.h.b16 %v2646
        %v3911 = vunpack.c.l.b16 %v2647
        %v3912 = vunpack.c.h.b16 %v2647
        %v3913 = vunpack.c.l.b16 %v2648
        %v3914 = vunpack.c.h.b16 %v2648
        %v3915 = vunpack.c.l.b16 %v2649
        %v3916 = vunpack.c.h.b16 %v2649
        %v3917 = vunpack.c.l.b16 %v2650
        %v3918 = vunpack.c.h.b16 %v2650
        %v3919 = vunpack.c.l.b16 %v2651
        %v3920 = vunpack.c.h.b16 %v2651
        %v3921 = vunpack.c.l.b16 %v2652
        %v3922 = vunpack.c.h.b16 %v2652
        %v3923 = vunpack.c.l.b16 %v2653
        %v3924 = vunpack.c.h.b16 %v2653
        %v3925 = vunpack.c.l.b16 %v2654
        %v3926 = vunpack.c.h.b16 %v2654
        %v3927 = vunpack.c.l.b16 %v2655
        %v3928 = vunpack.c.h.b16 %v2655
        %v3929 = vunpack.c.l.b16 %v2656
        %v3930 = vunpack.c.h.b16 %v2656
        %v3931 = vunpack.c.l.b16 %v2657
        %v3932 = vunpack.c.h.b16 %v2657
        %v3933 = vunpack.c.l.b16 %v2658
        %v3934 = vunpack.c.h.b16 %v2658
        %v3935 = vunpack.c.l.b16 %v2659
        %v3936 = vunpack.c.h.b16 %v2659
        %v3937 = vunpack.c.l.b16 %v2660
        %v3938 = vunpack.c.h.b16 %v2660
        %v3939 = vunpack.c.l.b16 %v2661
        %v3940 = vunpack.c.h.b16 %v2661
        %v3941 = vunpack.c.l.b16 %v2662
        %v3942 = vunpack.c.h.b16 %v2662
        %v3943 = vunpack.c.l.b16 %v2663
        %v3944 = vunpack.c.h.b16 %v2663
        %v3945 = vunpack.c.l.b16 %v2664
        %v3946 = vunpack.c.h.b16 %v2664
        %v3947 = vunpack.c.l.b16 %v2665
        %v3948 = vunpack.c.h.b16 %v2665
        %v3949 = vunpack.c.l.b16 %v2666
        %v3950 = vunpack.c.h.b16 %v2666
        %v3951 = vunpack.c.l.b16 %v2667
        %v3952 = vunpack.c.h.b16 %v2667
        %v3953 = vunpack.c.l.b16 %v2668
        %v3954 = vunpack.c.h.b16 %v2668
        %v3955 = vunpack.c.l.b16 %v2669
        %v3956 = vunpack.c.h.b16 %v2669
        %v3957 = vunpack.c.l.b16 %v2670
        %v3958 = vunpack.c.h.b16 %v2670
        %v3959 = vunpack.c.l.b16 %v2671
        %v3960 = vunpack.c.h.b16 %v2671
        %v3961 = vunpack.c.l.b16 %v2672
        %v3962 = vunpack.c.h.b16 %v2672
        %v3963 = vunpack.c.l.b16 %v2673
        %v3964 = vunpack.c.h.b16 %v2673
        %v3965 = vunpack.c.l.b16 %v2674
        %v3966 = vunpack.c.h.b16 %v2674
        %v3967 = vunpack.c.l.b16 %v2675
        %v3968 = vunpack.c.h.b16 %v2675
        %v3969 = vunpack.c.l.b16 %v2676
        %v3970 = vunpack.c.h.b16 %v2676
        %v3971 = vunpack.c.l.b16 %v2677
        %v3972 = vunpack.c.h.b16 %v2677
        %v3973 = vunpack.c.l.b16 %v2678
        %v3974 = vunpack.c.h.b16 %v2678
        %v3975 = vunpack.c.l.b16 %v2679
        %v3976 = vunpack.c.h.b16 %v2679
        %v3977 = vunpack.c.l.b16 %v2680
        %v3978 = vunpack.c.h.b16 %v2680
        %v3979 = vunpack.c.l.b16 %v2681
        %v3980 = vunpack.c.h.b16 %v2681
        %v3981 = vunpack.c.l.b16 %v2682
        %v3982 = vunpack.c.h.b16 %v2682
        %v3983 = vunpack.c.l.b16 %v2683
        %v3984 = vunpack.c.h.b16 %v2683
        %v3985 = vunpack.c.l.b16 %v2684
        %v3986 = vunpack.c.h.b16 %v2684
        %v3987 = vunpack.c.l.b16 %v2685
        %v3988 = vunpack.c.h.b16 %v2685
        %v3989 = vunpack.c.l.b16 %v2686
        %v3990 = vunpack.c.h.b16 %v2686
        %v3991 = vunpack.c.l.b16 %v2687
        %v3992 = vunpack.c.h.b16 %v2687
        %v3993 = vunpack.c.l.b16 %v2688
        %v3994 = vunpack.c.h.b16 %v2688
        %v3995 = vunpack.c.l.b16 %v2689
        %v3996 = vunpack.c.h.b16 %v2689
        %v3997 = vunpack.c.l.b16 %v2690
        %v3998 = vunpack.c.h.b16 %v2690
        %v3999 = vunpack.c.l.b16 %v2691
        %v4000 = vunpack.c.h.b16 %v2691
        %v4001 = vunpack.c.l.b16 %v2692
        %v4002 = vunpack.c.h.b16 %v2692
        %v4003 = vunpack.c.l.b16 %v2693
        %v4004 = vunpack.c.h.b16 %v2693
        %v4005 = vunpack.c.l.b16 %v2694
        %v4006 = vunpack.c.h.b16 %v2694
        %v4007 = vunpack.c.l.b16 %v2695
        %v4008 = vunpack.c.h.b16 %v2695
        %v4009 = vunpack.c.l.b16 %v2696
        %v4010 = vunpack.c.h.b16 %v2696
        %v4011 = vunpack.c.l.b16 %v2697
        %v4012 = vunpack.c.h.b16 %v2697
        %v4013 = vunpack.c.l.b16 %v2698
        %v4014 = vunpack.c.h.b16 %v2698
        %v4015 = vunpack.c.l.b16 %v2699
        %v4016 = vunpack.c.h.b16 %v2699
        %v4017 = vunpack.c.l.b16 %v2700
        %v4018 = vunpack.c.h.b16 %v2700
        %v4019 = vunpack.c.l.b16 %v2701
        %v4020 = vunpack.c.h.b16 %v2701
        %v4021 = vunpack.c.l.b16 %v2702
        %v4022 = vunpack.c.h.b16 %v2702
        %v4023 = vunpack.c.l.b16 %v2703
        %v4024 = vunpack.c.h.b16 %v2703
        %v4025 = vunpack.c.l.b16 %v2704
        %v4026 = vunpack.c.h.b16 %v2704
        %v4027 = vunpack.c.l.b16 %v2705
        %v4028 = vunpack.c.h.b16 %v2705
        %v4029 = vunpack.c.l.b16 %v2706
        %v4030 = vunpack.c.h.b16 %v2706
        %v4031 = vunpack.c.l.b16 %v2707
        %v4032 = vunpack.c.h.b16 %v2707
        %v4033 = vunpack.c.l.b16 %v2708
        %v4034 = vunpack.c.h.b16 %v2708
        %v4035 = vunpack.c.l.b16 %v2709
        %v4036 = vunpack.c.h.b16 %v2709
        %v4037 = vunpack.c.l.b16 %v2710
        %v4038 = vunpack.c.h.b16 %v2710
        %v4039 = vunpack.c.l.b16 %v2711
        %v4040 = vunpack.c.h.b16 %v2711
        %v4041 = vunpack.c.l.b16 %v2712
        %v4042 = vunpack.c.h.b16 %v2712
        %v4043 = vunpack.c.l.b16 %v2713
        %v4044 = vunpack.c.h.b16 %v2713
        %v4045 = vunpack.c.l.b16 %v2714
        %v4046 = vunpack.c.h.b16 %v2714
        %v4047 = vunpack.c.l.b16 %v2715
        %v4048 = vunpack.c.h.b16 %v2715
        %v4049 = vunpack.c.l.b16 %v2716
        %v4050 = vunpack.c.h.b16 %v2716
        %v4051 = vunpack.c.l.b16 %v2717
        %v4052 = vunpack.c.h.b16 %v2717
        %v4053 = vunpack.c.l.b16 %v2718
        %v4054 = vunpack.c.h.b16 %v2718
        %v4055 = vunpack.c.l.b16 %v2719
        %v4056 = vunpack.c.h.b16 %v2719
        %v4057 = vunpack.c.l.b16 %v2720
        %v4058 = vunpack.c.h.b16 %v2720
        %v4059 = vunpack.c.l.b16 %v2721
        %v4060 = vunpack.c.h.b16 %v2721
        %v4061 = vunpack.c.l.b16 %v2722
        %v4062 = vunpack.c.h.b16 %v2722
        %v4063 = vunpack.c.l.b16 %v2723
        %v4064 = vunpack.c.h.b16 %v2723
        %v4065 = vunpack.c.l.b16 %v2724
        %v4066 = vunpack.c.h.b16 %v2724
        %v4067 = vunpack.c.l.b16 %v2725
        %v4068 = vunpack.c.h.b16 %v2725
        %v4069 = vunpack.c.l.b16 %v2726
        %v4070 = vunpack.c.h.b16 %v2726
        %v4071 = vunpack.c.l.b16 %v2727
        %v4072 = vunpack.c.h.b16 %v2727
        %v4073 = vunpack.c.l.b16 %v2728
        %v4074 = vunpack.c.h.b16 %v2728
        %v4075 = vunpack.c.l.b16 %v2729
        %v4076 = vunpack.c.h.b16 %v2729
        %v4077 = vunpack.c.l.b16 %v2730
        %v4078 = vunpack.c.h.b16 %v2730
        %v4079 = vunpack.c.l.b16 %v2731
        %v4080 = vunpack.c.h.b16 %v2731
        %v4081 = vunpack.c.l.b16 %v2732
        %v4082 = vunpack.c.h.b16 %v2732
        %v4083 = vunpack.c.l.b16 %v2733
        %v4084 = vunpack.c.h.b16 %v2733
        %v4085 = vunpack.c.l.b16 %v2734
        %v4086 = vunpack.c.h.b16 %v2734
        %v4087 = vunpack.c.l.b16 %v2735
        %v4088 = vunpack.c.h.b16 %v2735
        %v4089 = vunpack.c.l.b16 %v2736
        %v4090 = vunpack.c.h.b16 %v2736
        %v4091 = vunpack.c.l.b16 %v2737
        %v4092 = vunpack.c.h.b16 %v2737
        %v4093 = vunpack.c.l.b16 %v2738
        %v4094 = vunpack.c.h.b16 %v2738
        %v4095 = vunpack.c.l.b16 %v2739
        %v4096 = vunpack.c.h.b16 %v2739
        %v4097 = vunpack.c.l.b16 %v2740
        %v4098 = vunpack.c.h.b16 %v2740
        %v4099 = vunpack.c.l.b16 %v2741
        %v4100 = vunpack.c.h.b16 %v2741
        %v4101 = vunpack.c.l.b16 %v2742
        %v4102 = vunpack.c.h.b16 %v2742
        %v4103 = vunpack.c.l.b16 %v2743
        %v4104 = vunpack.c.h.b16 %v2743
        %v4105 = vunpack.c.l.b16 %v2744
        %v4106 = vunpack.c.h.b16 %v2744
        %v4107 = vunpack.c.l.b16 %v2745
        %v4108 = vunpack.c.h.b16 %v2745
        %v4109 = vunpack.c.l.b16 %v2746
        %v4110 = vunpack.c.h.b16 %v2746
        %v4111 = vunpack.c.l.b16 %v2747
        %v4112 = vunpack.c.h.b16 %v2747
        %v4113 = vunpack.c.l.b16 %v2748
        %v4114 = vunpack.c.h.b16 %v2748
        %v4115 = vunpack.c.l.b16 %v2749
        %v4116 = vunpack.c.h.b16 %v2749
        %v4117 = vunpack.c.l.b16 %v2750
        %v4118 = vunpack.c.h.b16 %v2750
        %v4119 = vunpack.c.l.b16 %v2751
        %v4120 = vunpack.c.h.b16 %v2751
        %v4121 = vunpack.c.l.b16 %v2752
        %v4122 = vunpack.c.h.b16 %v2752
        %v4123 = vunpack.c.l.b16 %v2753
        %v4124 = vunpack.c.h.b16 %v2753
        %v4125 = vunpack.c.l.b16 %v2754
        %v4126 = vunpack.c.h.b16 %v2754
        %v4127 = vunpack.c.l.b16 %v2755
        %v4128 = vunpack.c.h.b16 %v2755
        %v4129 = vunpack.c.l.b16 %v2756
        %v4130 = vunpack.c.h.b16 %v2756
        %v4131 = vunpack.c.l.b16 %v2757
        %v4132 = vunpack.c.h.b16 %v2757
        %v4133 = vunpack.c.l.b16 %v2758
        %v4134 = vunpack.c.h.b16 %v2758
        %v4135 = vunpack.c.l.b16 %v2759
        %v4136 = vunpack.c.h.b16 %v2759
        %v4137 = vunpack.c.l.b16 %v2760
        %v4138 = vunpack.c.h.b16 %v2760
        %v4139 = vunpack.c.l.b16 %v2761
        %v4140 = vunpack.c.h.b16 %v2761
        %v4141 = vunpack.c.l.b16 %v2762
        %v4142 = vunpack.c.h.b16 %v2762
        %v4143 = vunpack.c.l.b16 %v2763
        %v4144 = vunpack.c.h.b16 %v2763
        %v4145 = vunpack.c.l.b16 %v2764
        %v4146 = vunpack.c.h.b16 %v2764
        %v4147 = vunpack.c.l.b16 %v2765
        %v4148 = vunpack.c.h.b16 %v2765
        %v4149 = vunpack.c.l.b16 %v2766
        %v4150 = vunpack.c.h.b16 %v2766
        %v4151 = vunpack.c.l.b16 %v2767
        %v4152 = vunpack.c.h.b16 %v2767
        %v4153 = vunpack.c.l.b16 %v2768
        %v4154 = vunpack.c.h.b16 %v2768
        %v4155 = vunpack.c.l.b16 %v2769
        %v4156 = vunpack.c.h.b16 %v2769
        %v4157 = vunpack.c.l.b16 %v2770
        %v4158 = vunpack.c.h.b16 %v2770
        %v4159 = vunpack.c.l.b16 %v2771
        %v4160 = vunpack.c.h.b16 %v2771
        %v4161 = vunpack.c.l.b16 %v2772
        %v4162 = vunpack.c.h.b16 %v2772
        %v4163 = vunpack.c.l.b16 %v2773
        %v4164 = vunpack.c.h.b16 %v2773
        %v4165 = vunpack.c.l.b16 %v2774
        %v4166 = vunpack.c.h.b16 %v2774
        %v4167 = vunpack.c.l.b16 %v2775
        %v4168 = vunpack.c.h.b16 %v2775
        %v4169 = vunpack.c.l.b16 %v2776
        %v4170 = vunpack.c.h.b16 %v2776
        %v4171 = vunpack.c.l.b16 %v2777
        %v4172 = vunpack.c.h.b16 %v2777
        %v4173 = vunpack.c.l.b16 %v2778
        %v4174 = vunpack.c.h.b16 %v2778
        %v4175 = vunpack.c.l.b16 %v2779
        %v4176 = vunpack.c.h.b16 %v2779
        %v4177 = vunpack.c.l.b16 %v2780
        %v4178 = vunpack.c.h.b16 %v2780
        %v4179 = vunpack.c.l.b16 %v2781
        %v4180 = vunpack.c.h.b16 %v2781
        %v4181 = vunpack.c.l.b16 %v2782
        %v4182 = vunpack.c.h.b16 %v2782
        %v4183 = vunpack.c.l.b16 %v2783
        %v4184 = vunpack.c.h.b16 %v2783
        %v4185 = vunpack.c.l.b16 %v2784
        %v4186 = vunpack.c.h.b16 %v2784
        %v4187 = vunpack.c.l.b16 %v2785
        %v4188 = vunpack.c.h.b16 %v2785
        %v4189 = vunpack.c.l.b16 %v2786
        %v4190 = vunpack.c.h.b16 %v2786
        %v4191 = vunpack.c.l.b16 %v2787
        %v4192 = vunpack.c.h.b16 %v2787
        %v4193 = vunpack.c.l.b16 %v2788
        %v4194 = vunpack.c.h.b16 %v2788
        %v4195 = vunpack.c.l.b16 %v2789
        %v4196 = vunpack.c.h.b16 %v2789
        %v4197 = vunpack.c.l.b16 %v2790
        %v4198 = vunpack.c.h.b16 %v2790
        %v4199 = vunpack.c.l.b16 %v2791
        %v4200 = vunpack.c.h.b16 %v2791
        %v4201 = vunpack.c.l.b16 %v2792
        %v4202 = vunpack.c.h.b16 %v2792
        %v4203 = vunpack.c.l.b16 %v2793
        %v4204 = vunpack.c.h.b16 %v2793
        %v4205 = vunpack.c.l.b16 %v2794
        %v4206 = vunpack.c.h.b16 %v2794
        %v4207 = vunpack.c.l.b16 %v2795
        %v4208 = vunpack.c.h.b16 %v2795
        %v4209 = vunpack.c.l.b16 %v2796
        %v4210 = vunpack.c.h.b16 %v2796
        %v4211 = vunpack.c.l.b16 %v2797
        %v4212 = vunpack.c.h.b16 %v2797
        %v4213 = vunpack.c.l.b16 %v2798
        %v4214 = vunpack.c.h.b16 %v2798
        %v4215 = vunpack.c.l.b16 %v2799
        %v4216 = vunpack.c.h.b16 %v2799
        %v4217 = vunpack.c.l.b16 %v2800
        %v4218 = vunpack.c.h.b16 %v2800
        %v4219 = vunpack.c.l.b16 %v2801
        %v4220 = vunpack.c.h.b16 %v2801
        %v4221 = vunpack.c.l.b16 %v2802
        %v4222 = vunpack.c.h.b16 %v2802
        %v4223 = vunpack.c.l.b16 %v2803
        %v4224 = vunpack.c.h.b16 %v2803
        %v4225 = vunpack.c.l.b16 %v2804
        %v4226 = vunpack.c.h.b16 %v2804
        %v4227 = vunpack.c.l.b16 %v2805
        %v4228 = vunpack.c.h.b16 %v2805
        %v4229 = vunpack.c.l.b16 %v2806
        %v4230 = vunpack.c.h.b16 %v2806
        %v4231 = vunpack.c.l.b16 %v2807
        %v4232 = vunpack.c.h.b16 %v2807
        %v4233 = vunpack.c.l.b16 %v2808
        %v4234 = vunpack.c.h.b16 %v2808
        %v4235 = vunpack.c.l.b16 %v2809
        %v4236 = vunpack.c.h.b16 %v2809
        %v4237 = vunpack.c.l.b16 %v2810
        %v4238 = vunpack.c.h.b16 %v2810
        %v4239 = vunpack.c.l.b16 %v2811
        %v4240 = vunpack.c.h.b16 %v2811
        %v4241 = vunpack.c.l.b16 %v2812
        %v4242 = vunpack.c.h.b16 %v2812
        %v4243 = vunpack.c.l.b16 %v2813
        %v4244 = vunpack.c.h.b16 %v2813
        %v4245 = vunpack.c.l.b16 %v2814
        %v4246 = vunpack.c.h.b16 %v2814
        %v4247 = vunpack.c.l.b16 %v2815
        %v4248 = vunpack.c.h.b16 %v2815
        %v4249 = vunpack.c.l.b16 %v2816
        %v4250 = vunpack.c.h.b16 %v2816
        %v4251 = vunpack.c.l.b16 %v2817
        %v4252 = vunpack.c.h.b16 %v2817
        %v4253 = vunpack.c.l.b16 %v2818
        %v4254 = vunpack.c.h.b16 %v2818
        %v4255 = vunpack.c.l.b16 %v2819
        %v4256 = vunpack.c.h.b16 %v2819
        %v4257 = vunpack.c.l.b16 %v2820
        %v4258 = vunpack.c.h.b16 %v2820
        %v4259 = vunpack.c.l.b16 %v2821
        %v4260 = vunpack.c.h.b16 %v2821
        %v4261 = vunpack.c.l.b16 %v2822
        %v4262 = vunpack.c.h.b16 %v2822
        %v4263 = vunpack.c.l.b16 %v2823
        %v4264 = vunpack.c.h.b16 %v2823
        %v4265 = vunpack.c.l.b16 %v2824
        %v4266 = vunpack.c.h.b16 %v2824
        %v4267 = vunpack.c.l.b16 %v2825
        %v4268 = vunpack.c.h.b16 %v2825
        %v4269 = vunpack.c.l.b16 %v2826
        %v4270 = vunpack.c.h.b16 %v2826
        %v4271 = vunpack.c.l.b16 %v2827
        %v4272 = vunpack.c.h.b16 %v2827
        %v4273 = vunpack.c.l.b16 %v2828
        %v4274 = vunpack.c.h.b16 %v2828
        %v4275 = vunpack.c.l.b16 %v2829
        %v4276 = vunpack.c.h.b16 %v2829
        %v4277 = vunpack.c.l.b16 %v2830
        %v4278 = vunpack.c.h.b16 %v2830
        %v4279 = vunpack.c.l.b16 %v2831
        %v4280 = vunpack.c.h.b16 %v2831
        %v4281 = vunpack.c.l.b16 %v2832
        %v4282 = vunpack.c.h.b16 %v2832
        %v4283 = vunpack.c.l.b16 %v2833
        %v4284 = vunpack.c.h.b16 %v2833
        %v4285 = vunpack.c.l.b16 %v2834
        %v4286 = vunpack.c.h.b16 %v2834
        %v4287 = vunpack.c.l.b16 %v2835
        %v4288 = vunpack.c.h.b16 %v2835
        %v4289 = vunpack.c.l.b16 %v2836
        %v4290 = vunpack.c.h.b16 %v2836
        %v4291 = vunpack.c.l.b16 %v2837
        %v4292 = vunpack.c.h.b16 %v2837
        %v4293 = vunpack.c.l.b16 %v2838
        %v4294 = vunpack.c.h.b16 %v2838
        %v4295 = vunpack.c.l.b16 %v2839
        %v4296 = vunpack.c.h.b16 %v2839
        %v4297 = vunpack.c.l.b16 %v2840
        %v4298 = vunpack.c.h.b16 %v2840
        %v4299 = vunpack.c.l.b16 %v2841
        %v4300 = vunpack.c.h.b16 %v2841
        %v4301 = vunpack.c.l.b16 %v2842
        %v4302 = vunpack.c.h.b16 %v2842
        %v4303 = vunpack.c.l.b16 %v2843
        %v4304 = vunpack.c.h.b16 %v2843
        %v4305 = vunpack.c.l.b16 %v2844
        %v4306 = vunpack.c.h.b16 %v2844
        %v4307 = vunpack.c.l.b16 %v2845
        %v4308 = vunpack.c.h.b16 %v2845
        %v4309 = vunpack.c.l.b16 %v2846
        %v4310 = vunpack.c.h.b16 %v2846
        %v4311 = vunpack.c.l.b16 %v2847
        %v4312 = vunpack.c.h.b16 %v2847
        %v4313 = vunpack.c.l.b16 %v2848
        %v4314 = vunpack.c.h.b16 %v2848
        %v4315 = vunpack.c.l.b16 %v2849
        %v4316 = vunpack.c.h.b16 %v2849
        %v4317 = vunpack.c.l.b16 %v2850
        %v4318 = vunpack.c.h.b16 %v2850
        %v4319 = vunpack.c.l.b16 %v2851
        %v4320 = vunpack.c.h.b16 %v2851
        %v4321 = vunpack.c.l.b16 %v2852
        %v4322 = vunpack.c.h.b16 %v2852
        %v4323 = vunpack.c.l.b16 %v2853
        %v4324 = vunpack.c.h.b16 %v2853
        %v4325 = vunpack.c.l.b16 %v2854
        %v4326 = vunpack.c.h.b16 %v2854
        %v4327 = vunpack.c.l.b16 %v2855
        %v4328 = vunpack.c.h.b16 %v2855
        %v4329 = vunpack.c.l.b16 %v2856
        %v4330 = vunpack.c.h.b16 %v2856
        %v4331 = vunpack.c.l.b16 %v2857
        %v4332 = vunpack.c.h.b16 %v2857
        %v4333 = vunpack.c.l.b16 %v2858
        %v4334 = vunpack.c.h.b16 %v2858
        %v4335 = vunpack.c.l.b16 %v2859
        %v4336 = vunpack.c.h.b16 %v2859
        %v4337 = vunpack.c.l.b16 %v2860
        %v4338 = vunpack.c.h.b16 %v2860
        %v4339 = vunpack.c.l.b16 %v2861
        %v4340 = vunpack.c.h.b16 %v2861
        %v4341 = vunpack.c.l.b16 %v2862
        %v4342 = vunpack.c.h.b16 %v2862
        %v4343 = vunpack.c.l.b16 %v2863
        %v4344 = vunpack.c.h.b16 %v2863
        %v4345 = vunpack.c.l.b16 %v2864
        %v4346 = vunpack.c.h.b16 %v2864
        %v4347 = vunpack.c.l.b16 %v2865
        %v4348 = vunpack.c.h.b16 %v2865
        %v4349 = vunpack.c.l.b16 %v2866
        %v4350 = vunpack.c.h.b16 %v2866
        %v4351 = vunpack.c.l.b16 %v2867
        %v4352 = vunpack.c.h.b16 %v2867
        %v4353 = vunpack.c.l.b16 %v2868
        %v4354 = vunpack.c.h.b16 %v2868
        %v4355 = vunpack.c.l.b16 %v2869
        %v4356 = vunpack.c.h.b16 %v2869
        %v4357 = vunpack.c.l.b16 %v2870
        %v4358 = vunpack.c.h.b16 %v2870
        %v4359 = vunpack.c.l.b16 %v2871
        %v4360 = vunpack.c.h.b16 %v2871
        %v4361 = vunpack.c.l.b16 %v2872
        %v4362 = vunpack.c.h.b16 %v2872
        %v4363 = vunpack.c.l.b16 %v2873
        %v4364 = vunpack.c.h.b16 %v2873
        %v4365 = vunpack.c.l.b16 %v2874
        %v4366 = vunpack.c.h.b16 %v2874
        %v4367 = vunpack.c.l.b16 %v2875
        %v4368 = vunpack.c.h.b16 %v2875
        %v4369 = vunpack.c.l.b16 %v2876
        %v4370 = vunpack.c.h.b16 %v2876
        %v4371 = vunpack.c.l.b16 %v2877
        %v4372 = vunpack.c.h.b16 %v2877
        %v4373 = vunpack.c.l.b16 %v2878
        %v4374 = vunpack.c.h.b16 %v2878
        %v4375 = vunpack.c.l.b16 %v2879
        %v4376 = vunpack.c.h.b16 %v2879
        %v4377 = vunpack.c.l.b16 %v2880
        %v4378 = vunpack.c.h.b16 %v2880
        %v4379 = vunpack.c.l.b16 %v2881
        %v4380 = vunpack.c.h.b16 %v2881
        %v4381 = vunpack.c.l.b16 %v2882
        %v4382 = vunpack.c.h.b16 %v2882
        %v4383 = vunpack.c.l.b16 %v2883
        %v4384 = vunpack.c.h.b16 %v2883
        %v4385 = vunpack.c.l.b16 %v2884
        %v4386 = vunpack.c.h.b16 %v2884
        %v4387 = vunpack.c.l.b16 %v2885
        %v4388 = vunpack.c.h.b16 %v2885
        %v4389 = vunpack.c.l.b16 %v2886
        %v4390 = vunpack.c.h.b16 %v2886
        %v4391 = vunpack.c.l.b16 %v2887
        %v4392 = vunpack.c.h.b16 %v2887
        %v4393 = vunpack.c.l.b16 %v2888
        %v4394 = vunpack.c.h.b16 %v2888
        %v4395 = vunpack.c.l.b16 %v2889
        %v4396 = vunpack.c.h.b16 %v2889
        %v4397 = vunpack.c.l.b16 %v2890
        %v4398 = vunpack.c.h.b16 %v2890
        %v4399 = vunpack.c.l.b16 %v2891
        %v4400 = vunpack.c.h.b16 %v2891
        %v4401 = vunpack.c.l.b16 %v2892
        %v4402 = vunpack.c.h.b16 %v2892
        %v4403 = vunpack.c.l.b16 %v2893
        %v4404 = vunpack.c.h.b16 %v2893
        %v4405 = vunpack.c.l.b16 %v2894
        %v4406 = vunpack.c.h.b16 %v2894
        %v4407 = vunpack.c.l.b16 %v2895
        %v4408 = vunpack.c.h.b16 %v2895
        %v4409 = vunpack.c.l.b16 %v2896
        %v4410 = vunpack.c.h.b16 %v2896
        %v4411 = vunpack.c.l.b16 %v2897
        %v4412 = vunpack.c.h.b16 %v2897
        %v4413 = vunpack.c.l.b16 %v2898
        %v4414 = vunpack.c.h.b16 %v2898
        %v4415 = vunpack.c.l.b16 %v2899
        %v4416 = vunpack.c.h.b16 %v2899
        %v4417 = vunpack.c.l.b16 %v2900
        %v4418 = vunpack.c.h.b16 %v2900
        %v4419 = vunpack.c.l.b16 %v2901
        %v4420 = vunpack.c.h.b16 %v2901
        %v4421 = vunpack.c.l.b16 %v2902
        %v4422 = vunpack.c.h.b16 %v2902
        %v4423 = vunpack.c.l.b16 %v2903
        %v4424 = vunpack.c.h.b16 %v2903
        %v4425 = vunpack.c.l.b16 %v2904
        %v4426 = vunpack.c.h.b16 %v2904
        %v4427 = vunpack.c.l.b16 %v2905
        %v4428 = vunpack.c.h.b16 %v2905
        %v4429 = vunpack.c.l.b16 %v2906
        %v4430 = vunpack.c.h.b16 %v2906
        %v4431 = vunpack.c.l.b16 %v2907
        %v4432 = vunpack.c.h.b16 %v2907
        %v4433 = vunpack.c.l.b16 %v2908
        %v4434 = vunpack.c.h.b16 %v2908
        %v4435 = vunpack.c.l.b16 %v2909
        %v4436 = vunpack.c.h.b16 %v2909
        %v4437 = vunpack.c.l.b16 %v2910
        %v4438 = vunpack.c.h.b16 %v2910
        %v4439 = vunpack.c.l.b16 %v2911
        %v4440 = vunpack.c.h.b16 %v2911
        %v4441 = vunpack.c.l.b16 %v2912
        %v4442 = vunpack.c.h.b16 %v2912
        %v4443 = vunpack.c.l.b16 %v2913
        %v4444 = vunpack.c.h.b16 %v2913
        %v4445 = vunpack.c.l.b16 %v2914
        %v4446 = vunpack.c.h.b16 %v2914
        %v4447 = vunpack.c.l.b16 %v2915
        %v4448 = vunpack.c.h.b16 %v2915
        %v4449 = vunpack.c.l.b16 %v2916
        %v4450 = vunpack.c.h.b16 %v2916
        %v4451 = vunpack.c.l.b16 %v2917
        %v4452 = vunpack.c.h.b16 %v2917
        %v4453 = vunpack.c.l.b16 %v2918
        %v4454 = vunpack.c.h.b16 %v2918
        %v4455 = vunpack.c.l.b16 %v2919
        %v4456 = vunpack.c.h.b16 %v2919
        %v4457 = vunpack.c.l.b16 %v2920
        %v4458 = vunpack.c.h.b16 %v2920
        %v4459 = vunpack.c.l.b16 %v2921
        %v4460 = vunpack.c.h.b16 %v2921
        %v4461 = vunpack.c.l.b16 %v2922
        %v4462 = vunpack.c.h.b16 %v2922
        %v4463 = vunpack.c.l.b16 %v2923
        %v4464 = vunpack.c.h.b16 %v2923
        %v4465 = vunpack.c.l.b16 %v2924
        %v4466 = vunpack.c.h.b16 %v2924
        %v4467 = vunpack.c.l.b16 %v2925
        %v4468 = vunpack.c.h.b16 %v2925
        %v4469 = vunpack.c.l.b16 %v2926
        %v4470 = vunpack.c.h.b16 %v2926
        %v4471 = vunpack.c.l.b16 %v2927
        %v4472 = vunpack.c.h.b16 %v2927
        %v4473 = vunpack.c.l.b16 %v2928
        %v4474 = vunpack.c.h.b16 %v2928
        %v4475 = vunpack.c.l.b16 %v2929
        %v4476 = vunpack.c.h.b16 %v2929
        %v4477 = vunpack.c.l.b16 %v2930
        %v4478 = vunpack.c.h.b16 %v2930
        %v4479 = vunpack.c.l.b16 %v2931
        %v4480 = vunpack.c.h.b16 %v2931
        %v4481 = vunpack.c.l.b16 %v2932
        %v4482 = vunpack.c.h.b16 %v2932
        %v4483 = vunpack.c.l.b16 %v2933
        %v4484 = vunpack.c.h.b16 %v2933
        %v4485 = vunpack.c.l.b16 %v2934
        %v4486 = vunpack.c.h.b16 %v2934
        %v4487 = vunpack.c.l.b16 %v2935
        %v4488 = vunpack.c.h.b16 %v2935
        %v4489 = vunpack.c.l.b16 %v2936
        %v4490 = vunpack.c.h.b16 %v2936
        %v4491 = vunpack.c.l.b16 %v2937
        %v4492 = vunpack.c.h.b16 %v2937
        %v4493 = vunpack.c.l.b16 %v2938
        %v4494 = vunpack.c.h.b16 %v2938
        %v4495 = vunpack.c.l.b16 %v2939
        %v4496 = vunpack.c.h.b16 %v2939
        %v4497 = vunpack.c.l.b16 %v2940
        %v4498 = vunpack.c.h.b16 %v2940
        %v4499 = vunpack.c.l.b16 %v2941
        %v4500 = vunpack.c.h.b16 %v2941
        %v4501 = vunpack.c.l.b16 %v2942
        %v4502 = vunpack.c.h.b16 %v2942
        %v4503 = vunpack.c.l.b16 %v2943
        %v4504 = vunpack.c.h.b16 %v2943
        %v4505 = vunpack.c.l.b16 %v2944
        %v4506 = vunpack.c.h.b16 %v2944
        %v4507 = vunpack.c.l.b16 %v2945
        %v4508 = vunpack.c.h.b16 %v2945
        %v4509 = vunpack.c.l.b16 %v2946
        %v4510 = vunpack.c.h.b16 %v2946
        %v4511 = vunpack.c.l.b16 %v2947
        %v4512 = vunpack.c.h.b16 %v2947
        %v4513 = vunpack.c.l.b16 %v2948
        %v4514 = vunpack.c.h.b16 %v2948
        %v4515 = vunpack.c.l.b16 %v2949
        %v4516 = vunpack.c.h.b16 %v2949
        %v4517 = vunpack.c.l.b16 %v2950
        %v4518 = vunpack.c.h.b16 %v2950
        %v4519 = vunpack.c.l.b16 %v2951
        %v4520 = vunpack.c.h.b16 %v2951
        %v4521 = vunpack.c.l.b16 %v2952
        %v4522 = vunpack.c.h.b16 %v2952
        %v4523 = vunpack.c.l.b16 %v2953
        %v4524 = vunpack.c.h.b16 %v2953
        %v4525 = vunpack.c.l.b16 %v2954
        %v4526 = vunpack.c.h.b16 %v2954
        %v4527 = vunpack.c.l.b16 %v2955
        %v4528 = vunpack.c.h.b16 %v2955
        %v4529 = vunpack.c.l.b16 %v2956
        %v4530 = vunpack.c.h.b16 %v2956
        %v4531 = vunpack.c.l.b16 %v2957
        %v4532 = vunpack.c.h.b16 %v2957
        %v4533 = vunpack.c.l.b16 %v2958
        %v4534 = vunpack.c.h.b16 %v2958
        %v4535 = vunpack.c.l.b16 %v2959
        %v4536 = vunpack.c.h.b16 %v2959
        %v4537 = vunpack.c.l.b16 %v2960
        %v4538 = vunpack.c.h.b16 %v2960
        %v4539 = vunpack.c.l.b16 %v2961
        %v4540 = vunpack.c.h.b16 %v2961
        %v4541 = vunpack.c.l.b16 %v2962
        %v4542 = vunpack.c.h.b16 %v2962
        %v4543 = vunpack.c.l.b16 %v2963
        %v4544 = vunpack.c.h.b16 %v2963
        %v4545 = vunpack.c.l.b16 %v2964
        %v4546 = vunpack.c.h.b16 %v2964
        %v4547 = vunpack.c.l.b16 %v2965
        %v4548 = vunpack.c.h.b16 %v2965
        %v4549 = vunpack.c.l.b16 %v2966
        %v4550 = vunpack.c.h.b16 %v2966
        %v4551 = vunpack.c.l.b16 %v2967
        %v4552 = vunpack.c.h.b16 %v2967
        %v4553 = vunpack.c.l.b16 %v2968
        %v4554 = vunpack.c.h.b16 %v2968
        %v4555 = vunpack.c.l.b16 %v2969
        %v4556 = vunpack.c.h.b16 %v2969
        %v4557 = vunpack.c.l.b16 %v2970
        %v4558 = vunpack.c.h.b16 %v2970
        %v4559 = vunpack.c.l.b16 %v2971
        %v4560 = vunpack.c.h.b16 %v2971
        %v4561 = vunpack.c.l.b16 %v2972
        %v4562 = vunpack.c.h.b16 %v2972
        %v4563 = vunpack.c.l.b16 %v2973
        %v4564 = vunpack.c.h.b16 %v2973
        %v4565 = vunpack.c.l.b16 %v2974
        %v4566 = vunpack.c.h.b16 %v2974
        %v4567 = vunpack.c.l.b16 %v2975
        %v4568 = vunpack.c.h.b16 %v2975
        %v4569 = vunpack.c.l.b16 %v2976
        %v4570 = vunpack.c.h.b16 %v2976
        %v4571 = vunpack.c.l.b16 %v2977
        %v4572 = vunpack.c.h.b16 %v2977
        %v4573 = vunpack.c.l.b16 %v2978
        %v4574 = vunpack.c.h.b16 %v2978
        %v4575 = vunpack.c.l.b16 %v2979
        %v4576 = vunpack.c.h.b16 %v2979
        %v4577 = vunpack.c.l.b16 %v2980
        %v4578 = vunpack.c.h.b16 %v2980
        %v4579 = vunpack.c.l.b16 %v2981
        %v4580 = vunpack.c.h.b16 %v2981
        %v4581 = vunpack.c.l.b16 %v2982
        %v4582 = vunpack.c.h.b16 %v2982
        %v4583 = vunpack.c.l.b16 %v2983
        %v4584 = vunpack.c.h.b16 %v2983
        %v4585 = vunpack.c.l.b16 %v2984
        %v4586 = vunpack.c.h.b16 %v2984
        %v4587 = vpack.c.b16 %v3567, %v3563
        %v4588 = vpack.c.b16 %v3568, %v3564
        %v4589 = vpack.c.b16 %v3569, %v3565
        %v4590 = vpack.c.b16 %v3570, %v3566
        %v4591 = vpack.c.b16 %v3575, %v3571
        %v4592 = vpack.c.b16 %v3576, %v3572
        %v4593 = vpack.c.b16 %v3577, %v3573
        %v4594 = vpack.c.b16 %v3578, %v3574
        %v4595 = vpack.c.b16 %v3583, %v3579
        %v4596 = vpack.c.b16 %v3584, %v3580
        %v4597 = vpack.c.b16 %v3585, %v3581
        %v4598 = vpack.c.b16 %v3586, %v3582
        %v4599 = vpack.c.b16 %v3591, %v3587
        %v4600 = vpack.c.b16 %v3592, %v3588
        %v4601 = vpack.c.b16 %v3593, %v3589
        %v4602 = vpack.c.b16 %v3594, %v3590
        %v4603 = vpack.c.b16 %v3599, %v3595
        %v4604 = vpack.c.b16 %v3600, %v3596
        %v4605 = vpack.c.b16 %v3601, %v3597
        %v4606 = vpack.c.b16 %v3602, %v3598
        %v4607 = vpack.c.b16 %v3607, %v3603
        %v4608 = vpack.c.b16 %v3608, %v3604
        %v4609 = vpack.c.b16 %v3609, %v3605
        %v4610 = vpack.c.b16 %v3610, %v3606
        %v4611 = vpack.c.b16 %v3615, %v3611
        %v4612 = vpack.c.b16 %v3616, %v3612
        %v4613 = vpack.c.b16 %v3617, %v3613
        %v4614 = vpack.c.b16 %v3618, %v3614
        %v4615 = vpack.c.b16 %v3623, %v3619
        %v4616 = vpack.c.b16 %v3624, %v3620
        %v4617 = vpack.c.b16 %v3625, %v3621
        %v4618 = vpack.c.b16 %v3626, %v3622
        %v4619 = vpack.c.b16 %v3631, %v3627
        %v4620 = vpack.c.b16 %v3632, %v3628
        %v4621 = vpack.c.b16 %v3633, %v3629
        %v4622 = vpack.c.b16 %v3634, %v3630
        %v4623 = vpack.c.b16 %v3639, %v3635
        %v4624 = vpack.c.b16 %v3640, %v3636
        %v4625 = vpack.c.b16 %v3641, %v3637
        %v4626 = vpack.c.b16 %v3642, %v3638
        %v4627 = vpack.c.b16 %v3647, %v3643
        %v4628 = vpack.c.b16 %v3648, %v3644
        %v4629 = vpack.c.b16 %v3649, %v3645
        %v4630 = vpack.c.b16 %v3650, %v3646
        %v4631 = vpack.c.b16 %v3655, %v3651
        %v4632 = vpack.c.b16 %v3656, %v3652
        %v4633 = vpack.c.b16 %v3657, %v3653
        %v4634 = vpack.c.b16 %v3658, %v3654
        %v4635 = vpack.c.b16 %v3663, %v3659
        %v4636 = vpack.c.b16 %v3664, %v3660
        %v4637 = vpack.c.b16 %v3665, %v3661
        %v4638 = vpack.c.b16 %v3666, %v3662
        %v4639 = vpack.c.b16 %v3671, %v3667
        %v4640 = vpack.c.b16 %v3672, %v3668
        %v4641 = vpack.c.b16 %v3673, %v3669
        %v4642 = vpack.c.b16 %v3674, %v3670
        %v4643 = vpack.c.b16 %v3679, %v3675
        %v4644 = vpack.c.b16 %v3680, %v3676
        %v4645 = vpack.c.b16 %v3681, %v3677
        %v4646 = vpack.c.b16 %v3682, %v3678
        %v4647 = vpack.c.b16 %v3687, %v3683
        %v4648 = vpack.c.b16 %v3688, %v3684
        %v4649 = vpack.c.b16 %v3689, %v3685
        %v4650 = vpack.c.b16 %v3690, %v3686
        %v4651 = vpack.c.b16 %v3695, %v3691
        %v4652 = vpack.c.b16 %v3696, %v3692
        %v4653 = vpack.c.b16 %v3697, %v3693
        %v4654 = vpack.c.b16 %v3698, %v3694
        %v4655 = vpack.c.b16 %v3703, %v3699
        %v4656 = vpack.c.b16 %v3704, %v3700
        %v4657 = vpack.c.b16 %v3705, %v3701
        %v4658 = vpack.c.b16 %v3706, %v3702
        %v4659 = vpack.c.b16 %v3711, %v3707
        %v4660 = vpack.c.b16 %v3712, %v3708
        %v4661 = vpack.c.b16 %v3713, %v3709
        %v4662 = vpack.c.b16 %v3714, %v3710
        %v4663 = vpack.c.b16 %v3719, %v3715
        %v4664 = vpack.c.b16 %v3720, %v3716
        %v4665 = vpack.c.b16 %v3721, %v3717
        %v4666 = vpack.c.b16 %v3722, %v3718
        %v4667 = vpack.c.b16 %v3727, %v3723
        %v4668 = vpack.c.b16 %v3728, %v3724
        %v4669 = vpack.c.b16 %v3729, %v3725
        %v4670 = vpack.c.b16 %v3730, %v3726
        %v4671 = vpack.c.b16 %v3735, %v3731
        %v4672 = vpack.c.b16 %v3736, %v3732
        %v4673 = vpack.c.b16 %v3737, %v3733
        %v4674 = vpack.c.b16 %v3738, %v3734
        %v4675 = vpack.c.b16 %v3743, %v3739
        %v4676 = vpack.c.b16 %v3744, %v3740
        %v4677 = vpack.c.b16 %v3745, %v3741
        %v4678 = vpack.c.b16 %v3746, %v3742
        %v4679 = vpack.c.b16 %v3751, %v3747
        %v4680 = vpack.c.b16 %v3752, %v3748
        %v4681 = vpack.c.b16 %v3753, %v3749
        %v4682 = vpack.c.b16 %v3754, %v3750
        %v4683 = vpack.c.b16 %v3759, %v3755
        %v4684 = vpack.c.b16 %v3760, %v3756
        %v4685 = vpack.c.b16 %v3761, %v3757
        %v4686 = vpack.c.b16 %v3762, %v3758
        %v4687 = vpack.c.b16 %v3767, %v3763
        %v4688 = vpack.c.b16 %v3768, %v3764
        %v4689 = vpack.c.b16 %v3769, %v3765
        %v4690 = vpack.c.b16 %v3770, %v3766
        %v4691 = vpack.c.b16 %v3775, %v3771
        %v4692 = vpack.c.b16 %v3776, %v3772
        %v4693 = vpack.c.b16 %v3777, %v3773
        %v4694 = vpack.c.b16 %v3778, %v3774
        %v4695 = vpack.c.b16 %v3783, %v3779
        %v4696 = vpack.c.b16 %v3784, %v3780
        %v4697 = vpack.c.b16 %v3785, %v3781
        %v4698 = vpack.c.b16 %v3786, %v3782
        %v4699 = vpack.c.b16 %v3791, %v3787
        %v4700 = vpack.c.b16 %v3792, %v3788
        %v4701 = vpack.c.b16 %v3793, %v3789
        %v4702 = vpack.c.b16 %v3794, %v3790
        %v4703 = vpack.c.b16 %v3799, %v3795
        %v4704 = vpack.c.b16 %v3800, %v3796
        %v4705 = vpack.c.b16 %v3801, %v3797
        %v4706 = vpack.c.b16 %v3802, %v3798
        %v4707 = vpack.c.b16 %v3807, %v3803
        %v4708 = vpack.c.b16 %v3808, %v3804
        %v4709 = vpack.c.b16 %v3809, %v3805
        %v4710 = vpack.c.b16 %v3810, %v3806
        %v4711 = vpack.c.b16 %v3815, %v3811
        %v4712 = vpack.c.b16 %v3816, %v3812
        %v4713 = vpack.c.b16 %v3817, %v3813
        %v4714 = vpack.c.b16 %v3818, %v3814
        %v4715 = vpack.c.b16 %v3823, %v3819
        %v4716 = vpack.c.b16 %v3824, %v3820
        %v4717 = vpack.c.b16 %v3825, %v3821
        %v4718 = vpack.c.b16 %v3826, %v3822
        %v4719 = vpack.c.b16 %v3831, %v3827
        %v4720 = vpack.c.b16 %v3832, %v3828
        %v4721 = vpack.c.b16 %v3833, %v3829
        %v4722 = vpack.c.b16 %v3834, %v3830
        %v4723 = vpack.c.b16 %v3839, %v3835
        %v4724 = vpack.c.b16 %v3840, %v3836
        %v4725 = vpack.c.b16 %v3841, %v3837
        %v4726 = vpack.c.b16 %v3842, %v3838
        %v4727 = vpack.c.b16 %v3847, %v3843
        %v4728 = vpack.c.b16 %v3848, %v3844
        %v4729 = vpack.c.b16 %v3849, %v3845
        %v4730 = vpack.c.b16 %v3850, %v3846
        %v4731 = vpack.c.b16 %v3855, %v3851
        %v4732 = vpack.c.b16 %v3856, %v3852
        %v4733 = vpack.c.b16 %v3857, %v3853
        %v4734 = vpack.c.b16 %v3858, %v3854
        %v4735 = vpack.c.b16 %v3863, %v3859
        %v4736 = vpack.c.b16 %v3864, %v3860
        %v4737 = vpack.c.b16 %v3865, %v3861
        %v4738 = vpack.c.b16 %v3866, %v3862
        %v4739 = vpack.c.b16 %v3871, %v3867
        %v4740 = vpack.c.b16 %v3872, %v3868
        %v4741 = vpack.c.b16 %v3873, %v3869
        %v4742 = vpack.c.b16 %v3874, %v3870
        %v4743 = vpack.c.b16 %v3879, %v3875
        %v4744 = vpack.c.b16 %v3880, %v3876
        %v4745 = vpack.c.b16 %v3881, %v3877
        %v4746 = vpack.c.b16 %v3882, %v3878
        %v4747 = vpack.c.b16 %v3887, %v3883
        %v4748 = vpack.c.b16 %v3888, %v3884
        %v4749 = vpack.c.b16 %v3889, %v3885
        %v4750 = vpack.c.b16 %v3890, %v3886
        %v4751 = vpack.c.b16 %v3895, %v3891
        %v4752 = vpack.c.b16 %v3896, %v3892
        %v4753 = vpack.c.b16 %v3897, %v3893
        %v4754 = vpack.c.b16 %v3898, %v3894
        %v4755 = vpack.c.b16 %v3903, %v3899
        %v4756 = vpack.c.b16 %v3904, %v3900
        %v4757 = vpack.c.b16 %v3905, %v3901
        %v4758 = vpack.c.b16 %v3906, %v3902
        %v4759 = vpack.c.b16 %v3911, %v3907
        %v4760 = vpack.c.b16 %v3912, %v3908
        %v4761 = vpack.c.b16 %v3913, %v3909
        %v4762 = vpack.c.b16 %v3914, %v3910
        %v4763 = vpack.c.b16 %v3919, %v3915
        %v4764 = vpack.c.b16 %v3920, %v3916
        %v4765 = vpack.c.b16 %v3921, %v3917
        %v4766 = vpack.c.b16 %v3922, %v3918
        %v4767 = vpack.c.b16 %v3927, %v3923
        %v4768 = vpack.c.b16 %v3928, %v3924
        %v4769 = vpack.c.b16 %v3929, %v3925
        %v4770 = vpack.c.b16 %v3930, %v3926
        %v4771 = vpack.c.b16 %v3935, %v3931
        %v4772 = vpack.c.b16 %v3936, %v3932
        %v4773 = vpack.c.b16 %v3937, %v3933
        %v4774 = vpack.c.b16 %v3938, %v3934
        %v4775 = vpack.c.b16 %v3943, %v3939
        %v4776 = vpack.c.b16 %v3944, %v3940
        %v4777 = vpack.c.b16 %v3945, %v3941
        %v4778 = vpack.c.b16 %v3946, %v3942
        %v4779 = vpack.c.b16 %v3951, %v3947
        %v4780 = vpack.c.b16 %v3952, %v3948
        %v4781 = vpack.c.b16 %v3953, %v3949
        %v4782 = vpack.c.b16 %v3954, %v3950
        %v4783 = vpack.c.b16 %v3959, %v3955
        %v4784 = vpack.c.b16 %v3960, %v3956
        %v4785 = vpack.c.b16 %v3961, %v3957
        %v4786 = vpack.c.b16 %v3962, %v3958
        %v4787 = vpack.c.b16 %v3967, %v3963
        %v4788 = vpack.c.b16 %v3968, %v3964
        %v4789 = vpack.c.b16 %v3969, %v3965
        %v4790 = vpack.c.b16 %v3970, %v3966
        %v4791 = vpack.c.b16 %v3975, %v3971
        %v4792 = vpack.c.b16 %v3976, %v3972
        %v4793 = vpack.c.b16 %v3977, %v3973
        %v4794 = vpack.c.b16 %v3978, %v3974
        %v4795 = vpack.c.b16 %v3983, %v3979
        %v4796 = vpack.c.b16 %v3984, %v3980
        %v4797 = vpack.c.b16 %v3985, %v3981
        %v4798 = vpack.c.b16 %v3986, %v3982
        %v4799 = vpack.c.b16 %v3991, %v3987
        %v4800 = vpack.c.b16 %v3992, %v3988
        %v4801 = vpack.c.b16 %v3993, %v3989
        %v4802 = vpack.c.b16 %v3994, %v3990
        %v4803 = vpack.c.b16 %v3999, %v3995
        %v4804 = vpack.c.b16 %v4000, %v3996
        %v4805 = vpack.c.b16 %v4001, %v3997
        %v4806 = vpack.c.b16 %v4002, %v3998
        %v4807 = vpack.c.b16 %v4007, %v4003
        %v4808 = vpack.c.b16 %v4008, %v4004
        %v4809 = vpack.c.b16 %v4009, %v4005
        %v4810 = vpack.c.b16 %v4010, %v4006
        %v4811 = vpack.c.b16 %v4015, %v4011
        %v4812 = vpack.c.b16 %v4016, %v4012
        %v4813 = vpack.c.b16 %v4017, %v4013
        %v4814 = vpack.c.b16 %v4018, %v4014
        %v4815 = vpack.c.b16 %v4023, %v4019
        %v4816 = vpack.c.b16 %v4024, %v4020
        %v4817 = vpack.c.b16 %v4025, %v4021
        %v4818 = vpack.c.b16 %v4026, %v4022
        %v4819 = vpack.c.b16 %v4031, %v4027
        %v4820 = vpack.c.b16 %v4032, %v4028
        %v4821 = vpack.c.b16 %v4033, %v4029
        %v4822 = vpack.c.b16 %v4034, %v4030
        %v4823 = vpack.c.b16 %v4039, %v4035
        %v4824 = vpack.c.b16 %v4040, %v4036
        %v4825 = vpack.c.b16 %v4041, %v4037
        %v4826 = vpack.c.b16 %v4042, %v4038
        %v4827 = vpack.c.b16 %v4047, %v4043
        %v4828 = vpack.c.b16 %v4048, %v4044
        %v4829 = vpack.c.b16 %v4049, %v4045
        %v4830 = vpack.c.b16 %v4050, %v4046
        %v4831 = vpack.c.b16 %v4055, %v4051
        %v4832 = vpack.c.b16 %v4056, %v4052
        %v4833 = vpack.c.b16 %v4057, %v4053
        %v4834 = vpack.c.b16 %v4058, %v4054
        %v4835 = vpack.c.b16 %v4063, %v4059
        %v4836 = vpack.c.b16 %v4064, %v4060
        %v4837 = vpack.c.b16 %v4065, %v4061
        %v4838 = vpack.c.b16 %v4066, %v4062
        %v4839 = vpack.c.b16 %v4071, %v4067
        %v4840 = vpack.c.b16 %v4072, %v4068
        %v4841 = vpack.c.b16 %v4073, %v4069
        %v4842 = vpack.c.b16 %v4074, %v4070
        %v4843 = vpack.c.b16 %v4079, %v4075
        %v4844 = vpack.c.b16 %v4080, %v4076
        %v4845 = vpack.c.b16 %v4081, %v4077
        %v4846 = vpack.c.b16 %v4082, %v4078
        %v4847 = vpack.c.b16 %v4087, %v4083
        %v4848 = vpack.c.b16 %v4088, %v4084
        %v4849 = vpack.c.b16 %v4089, %v4085
        %v4850 = vpack.c.b16 %v4090, %v4086
        %v4851 = vpack.c.b16 %v4095, %v4091
        %v4852 = vpack.c.b16 %v4096, %v4092
        %v4853 = vpack.c.b16 %v4097, %v4093
        %v4854 = vpack.c.b16 %v4098, %v4094
        %v4855 = vpack.c.b16 %v4103, %v4099
        %v4856 = vpack.c.b16 %v4104, %v4100
        %v4857 = vpack.c.b16 %v4105, %v4101
        %v4858 = vpack.c.b16 %v4106, %v4102
        %v4859 = vpack.c.b16 %v4111, %v4107
        %v4860 = vpack.c.b16 %v4112, %v4108
        %v4861 = vpack.c.b16 %v4113, %v4109
        %v4862 = vpack.c.b16 %v4114, %v4110
        %v4863 = vpack.c.b16 %v4119, %v4115
        %v4864 = vpack.c.b16 %v4120, %v4116
        %v4865 = vpack.c.b16 %v4121, %v4117
        %v4866 = vpack.c.b16 %v4122, %v4118
        %v4867 = vpack.c.b16 %v4127, %v4123
        %v4868 = vpack.c.b16 %v4128, %v4124
        %v4869 = vpack.c.b16 %v4129, %v4125
        %v4870 = vpack.c.b16 %v4130, %v4126
        %v4871 = vpack.c.b16 %v4135, %v4131
        %v4872 = vpack.c.b16 %v4136, %v4132
        %v4873 = vpack.c.b16 %v4137, %v4133
        %v4874 = vpack.c.b16 %v4138, %v4134
        %v4875 = vpack.c.b16 %v4143, %v4139
        %v4876 = vpack.c.b16 %v4144, %v4140
        %v4877 = vpack.c.b16 %v4145, %v4141
        %v4878 = vpack.c.b16 %v4146, %v4142
        %v4879 = vpack.c.b16 %v4151, %v4147
        %v4880 = vpack.c.b16 %v4152, %v4148
        %v4881 = vpack.c.b16 %v4153, %v4149
        %v4882 = vpack.c.b16 %v4154, %v4150
        %v4883 = vpack.c.b16 %v4159, %v4155
        %v4884 = vpack.c.b16 %v4160, %v4156
        %v4885 = vpack.c.b16 %v4161, %v4157
        %v4886 = vpack.c.b16 %v4162, %v4158
        %v4887 = vpack.c.b16 %v4167, %v4163
        %v4888 = vpack.c.b16 %v4168, %v4164
        %v4889 = vpack.c.b16 %v4169, %v4165
        %v4890 = vpack.c.b16 %v4170, %v4166
        %v4891 = vpack.c.b16 %v4175, %v4171
        %v4892 = vpack.c.b16 %v4176, %v4172
        %v4893 = vpack.c.b16 %v4177, %v4173
        %v4894 = vpack.c.b16 %v4178, %v4174
        %v4895 = vpack.c.b16 %v4183, %v4179
        %v4896 = vpack.c.b16 %v4184, %v4180
        %v4897 = vpack.c.b16 %v4185, %v4181
        %v4898 = vpack.c.b16 %v4186, %v4182
        %v4899 = vpack.c.b16 %v4191, %v4187
        %v4900 = vpack.c.b16 %v4192, %v4188
        %v4901 = vpack.c.b16 %v4193, %v4189
        %v4902 = vpack.c.b16 %v4194, %v4190
        %v4903 = vpack.c.b16 %v4199, %v4195
        %v4904 = vpack.c.b16 %v4200, %v4196
        %v4905 = vpack.c.b16 %v4201, %v4197
        %v4906 = vpack.c.b16 %v4202, %v4198
        %v4907 = vpack.c.b16 %v4207, %v4203
        %v4908 = vpack.c.b16 %v4208, %v4204
        %v4909 = vpack.c.b16 %v4209, %v4205
        %v4910 = vpack.c.b16 %v4210, %v4206
        %v4911 = vpack.c.b16 %v4215, %v4211
        %v4912 = vpack.c.b16 %v4216, %v4212
        %v4913 = vpack.c.b16 %v4217, %v4213
        %v4914 = vpack.c.b16 %v4218, %v4214
        %v4915 = vpack.c.b16 %v4223, %v4219
        %v4916 = vpack.c.b16 %v4224, %v4220
        %v4917 = vpack.c.b16 %v4225, %v4221
        %v4918 = vpack.c.b16 %v4226, %v4222
        %v4919 = vpack.c.b16 %v4231, %v4227
        %v4920 = vpack.c.b16 %v4232, %v4228
        %v4921 = vpack.c.b16 %v4233, %v4229
        %v4922 = vpack.c.b16 %v4234, %v4230
        %v4923 = vpack.c.b16 %v4239, %v4235
        %v4924 = vpack.c.b16 %v4240, %v4236
        %v4925 = vpack.c.b16 %v4241, %v4237
        %v4926 = vpack.c.b16 %v4242, %v4238
        %v4927 = vpack.c.b16 %v4247, %v4243
        %v4928 = vpack.c.b16 %v4248, %v4244
        %v4929 = vpack.c.b16 %v4249, %v4245
        %v4930 = vpack.c.b16 %v4250, %v4246
        %v4931 = vpack.c.b16 %v4255, %v4251
        %v4932 = vpack.c.b16 %v4256, %v4252
        %v4933 = vpack.c.b16 %v4257, %v4253
        %v4934 = vpack.c.b16 %v4258, %v4254
        %v4935 = vpack.c.b16 %v4263, %v4259
        %v4936 = vpack.c.b16 %v4264, %v4260
        %v4937 = vpack.c.b16 %v4265, %v4261
        %v4938 = vpack.c.b16 %v4266, %v4262
        %v4939 = vpack.c.b16 %v4271, %v4267
        %v4940 = vpack.c.b16 %v4272, %v4268
        %v4941 = vpack.c.b16 %v4273, %v4269
        %v4942 = vpack.c.b16 %v4274, %v4270
        %v4943 = vpack.c.b16 %v4279, %v4275
        %v4944 = vpack.c.b16 %v4280, %v4276
        %v4945 = vpack.c.b16 %v4281, %v4277
        %v4946 = vpack.c.b16 %v4282, %v4278
        %v4947 = vpack.c.b16 %v4287, %v4283
        %v4948 = vpack.c.b16 %v4288, %v4284
        %v4949 = vpack.c.b16 %v4289, %v4285
        %v4950 = vpack.c.b16 %v4290, %v4286
        %v4951 = vpack.c.b16 %v4295, %v4291
        %v4952 = vpack.c.b16 %v4296, %v4292
        %v4953 = vpack.c.b16 %v4297, %v4293
        %v4954 = vpack.c.b16 %v4298, %v4294
        %v4955 = vpack.c.b16 %v4303, %v4299
        %v4956 = vpack.c.b16 %v4304, %v4300
        %v4957 = vpack.c.b16 %v4305, %v4301
        %v4958 = vpack.c.b16 %v4306, %v4302
        %v4959 = vpack.c.b16 %v4311, %v4307
        %v4960 = vpack.c.b16 %v4312, %v4308
        %v4961 = vpack.c.b16 %v4313, %v4309
        %v4962 = vpack.c.b16 %v4314, %v4310
        %v4963 = vpack.c.b16 %v4319, %v4315
        %v4964 = vpack.c.b16 %v4320, %v4316
        %v4965 = vpack.c.b16 %v4321, %v4317
        %v4966 = vpack.c.b16 %v4322, %v4318
        %v4967 = vpack.c.b16 %v4327, %v4323
        %v4968 = vpack.c.b16 %v4328, %v4324
        %v4969 = vpack.c.b16 %v4329, %v4325
        %v4970 = vpack.c.b16 %v4330, %v4326
        %v4971 = vpack.c.b16 %v4335, %v4331
        %v4972 = vpack.c.b16 %v4336, %v4332
        %v4973 = vpack.c.b16 %v4337, %v4333
        %v4974 = vpack.c.b16 %v4338, %v4334
        %v4975 = vpack.c.b16 %v4343, %v4339
        %v4976 = vpack.c.b16 %v4344, %v4340
        %v4977 = vpack.c.b16 %v4345, %v4341
        %v4978 = vpack.c.b16 %v4346, %v4342
        %v4979 = vpack.c.b16 %v4351, %v4347
        %v4980 = vpack.c.b16 %v4352, %v4348
        %v4981 = vpack.c.b16 %v4353, %v4349
        %v4982 = vpack.c.b16 %v4354, %v4350
        %v4983 = vpack.c.b16 %v4359, %v4355
        %v4984 = vpack.c.b16 %v4360, %v4356
        %v4985 = vpack.c.b16 %v4361, %v4357
        %v4986 = vpack.c.b16 %v4362, %v4358
        %v4987 = vpack.c.b16 %v4367, %v4363
        %v4988 = vpack.c.b16 %v4368, %v4364
        %v4989 = vpack.c.b16 %v4369, %v4365
        %v4990 = vpack.c.b16 %v4370, %v4366
        %v4991 = vpack.c.b16 %v4375, %v4371
        %v4992 = vpack.c.b16 %v4376, %v4372
        %v4993 = vpack.c.b16 %v4377, %v4373
        %v4994 = vpack.c.b16 %v4378, %v4374
        %v4995 = vpack.c.b16 %v4383, %v4379
        %v4996 = vpack.c.b16 %v4384, %v4380
        %v4997 = vpack.c.b16 %v4385, %v4381
        %v4998 = vpack.c.b16 %v4386, %v4382
        %v4999 = vpack.c.b16 %v4391, %v4387
        %v5000 = vpack.c.b16 %v4392, %v4388
        %v5001 = vpack.c.b16 %v4393, %v4389
        %v5002 = vpack.c.b16 %v4394, %v4390
        %v5003 = vpack.c.b16 %v4399, %v4395
        %v5004 = vpack.c.b16 %v4400, %v4396
        %v5005 = vpack.c.b16 %v4401, %v4397
        %v5006 = vpack.c.b16 %v4402, %v4398
        %v5007 = vpack.c.b16 %v4407, %v4403
        %v5008 = vpack.c.b16 %v4408, %v4404
        %v5009 = vpack.c.b16 %v4409, %v4405
        %v5010 = vpack.c.b16 %v4410, %v4406
        %v5011 = vpack.c.b16 %v4415, %v4411
        %v5012 = vpack.c.b16 %v4416, %v4412
        %v5013 = vpack.c.b16 %v4417, %v4413
        %v5014 = vpack.c.b16 %v4418, %v4414
        %v5015 = vpack.c.b16 %v4423, %v4419
        %v5016 = vpack.c.b16 %v4424, %v4420
        %v5017 = vpack.c.b16 %v4425, %v4421
        %v5018 = vpack.c.b16 %v4426, %v4422
        %v5019 = vpack.c.b16 %v4431, %v4427
        %v5020 = vpack.c.b16 %v4432, %v4428
        %v5021 = vpack.c.b16 %v4433, %v4429
        %v5022 = vpack.c.b16 %v4434, %v4430
        %v5023 = vpack.c.b16 %v4439, %v4435
        %v5024 = vpack.c.b16 %v4440, %v4436
        %v5025 = vpack.c.b16 %v4441, %v4437
        %v5026 = vpack.c.b16 %v4442, %v4438
        %v5027 = vpack.c.b16 %v4447, %v4443
        %v5028 = vpack.c.b16 %v4448, %v4444
        %v5029 = vpack.c.b16 %v4449, %v4445
        %v5030 = vpack.c.b16 %v4450, %v4446
        %v5031 = vpack.c.b16 %v4455, %v4451
        %v5032 = vpack.c.b16 %v4456, %v4452
        %v5033 = vpack.c.b16 %v4457, %v4453
        %v5034 = vpack.c.b16 %v4458, %v4454
        %v5035 = vpack.c.b16 %v4463, %v4459
        %v5036 = vpack.c.b16 %v4464, %v4460
        %v5037 = vpack.c.b16 %v4465, %v4461
        %v5038 = vpack.c.b16 %v4466, %v4462
        %v5039 = vpack.c.b16 %v4471, %v4467
        %v5040 = vpack.c.b16 %v4472, %v4468
        %v5041 = vpack.c.b16 %v4473, %v4469
        %v5042 = vpack.c.b16 %v4474, %v4470
        %v5043 = vpack.c.b16 %v4479, %v4475
        %v5044 = vpack.c.b16 %v4480, %v4476
        %v5045 = vpack.c.b16 %v4481, %v4477
        %v5046 = vpack.c.b16 %v4482, %v4478
        %v5047 = vpack.c.b16 %v4487, %v4483
        %v5048 = vpack.c.b16 %v4488, %v4484
        %v5049 = vpack.c.b16 %v4489, %v4485
        %v5050 = vpack.c.b16 %v4490, %v4486
        %v5051 = vpack.c.b16 %v4495, %v4491
        %v5052 = vpack.c.b16 %v4496, %v4492
        %v5053 = vpack.c.b16 %v4497, %v4493
        %v5054 = vpack.c.b16 %v4498, %v4494
        %v5055 = vpack.c.b16 %v4503, %v4499
        %v5056 = vpack.c.b16 %v4504, %v4500
        %v5057 = vpack.c.b16 %v4505, %v4501
        %v5058 = vpack.c.b16 %v4506, %v4502
        %v5059 = vpack.c.b16 %v4511, %v4507
        %v5060 = vpack.c.b16 %v4512, %v4508
        %v5061 = vpack.c.b16 %v4513, %v4509
        %v5062 = vpack.c.b16 %v4514, %v4510
        %v5063 = vpack.c.b16 %v4519, %v4515
        %v5064 = vpack.c.b16 %v4520, %v4516
        %v5065 = vpack.c.b16 %v4521, %v4517
        %v5066 = vpack.c.b16 %v4522, %v4518
        %v5067 = vpack.c.b16 %v4527, %v4523
        %v5068 = vpack.c.b16 %v4528, %v4524
        %v5069 = vpack.c.b16 %v4529, %v4525
        %v5070 = vpack.c.b16 %v4530, %v4526
        %v5071 = vpack.c.b16 %v4535, %v4531
        %v5072 = vpack.c.b16 %v4536, %v4532
        %v5073 = vpack.c.b16 %v4537, %v4533
        %v5074 = vpack.c.b16 %v4538, %v4534
        %v5075 = vpack.c.b16 %v4543, %v4539
        %v5076 = vpack.c.b16 %v4544, %v4540
        %v5077 = vpack.c.b16 %v4545, %v4541
        %v5078 = vpack.c.b16 %v4546, %v4542
        %v5079 = vpack.c.b16 %v4551, %v4547
        %v5080 = vpack.c.b16 %v4552, %v4548
        %v5081 = vpack.c.b16 %v4553, %v4549
        %v5082 = vpack.c.b16 %v4554, %v4550
        %v5083 = vpack.c.b16 %v4559, %v4555
        %v5084 = vpack.c.b16 %v4560, %v4556
        %v5085 = vpack.c.b16 %v4561, %v4557
        %v5086 = vpack.c.b16 %v4562, %v4558
        %v5087 = vpack.c.b16 %v4567, %v4563
        %v5088 = vpack.c.b16 %v4568, %v4564
        %v5089 = vpack.c.b16 %v4569, %v4565
        %v5090 = vpack.c.b16 %v4570, %v4566
        %v5091 = vpack.c.b16 %v4575, %v4571
        %v5092 = vpack.c.b16 %v4576, %v4572
        %v5093 = vpack.c.b16 %v4577, %v4573
        %v5094 = vpack.c.b16 %v4578, %v4574
        %v5095 = vpack.c.b16 %v4583, %v4579
        %v5096 = vpack.c.b16 %v4584, %v4580
        %v5097 = vpack.c.b16 %v4585, %v4581
        %v5098 = vpack.c.b16 %v4586, %v4582
        %5611 = vmatpush.bf16.msra.mxu0 %v4615
        %5612 = vmatpush.bf16.msra.mxu0 %v4611
        %5613 = vmatpush.bf16.msra.mxu0 %v4607
        %5614 = vmatpush.bf16.msra.mxu0 %v4603
        %5615 = vmatpush.bf16.msra.mxu0 %v4599
        %5616 = vmatpush.bf16.msra.mxu0 %v4595
        %5617 = vmatpush.bf16.msra.mxu0 %v4591
        %5618 = vmatpush.bf16.msra.mxu0 %v4587
        %5619 = vmatmul.bf16.gmra.mxu0 %v3019
        %v5620 = vpop.f32.mrf.mxu0
        %v5621 = vadd.f32 %v2987, %v5620
        %v5622 = vpop.f32.mrf.mxu0
        %5623 = vdwg.mxu0
        %5624 = vmatpush.bf16.msra.mxu0 %v4647
        %5625 = vmatpush.bf16.msra.mxu0 %v4643
        %5626 = vmatpush.bf16.msra.mxu0 %v4639
        %5627 = vmatpush.bf16.msra.mxu0 %v4635
        %5628 = vmatpush.bf16.msra.mxu0 %v4631
        %5629 = vmatpush.bf16.msra.mxu0 %v4627
        %5630 = vmatpush.bf16.msra.mxu0 %v4623
        %5631 = vmatpush.bf16.msra.mxu0 %v4619
        %5632 = vmatmul.bf16.gmra.mxu0 %v3020
        %v5633 = vpop.f32.mrf.mxu0
        %v5634 = vadd.f32 %v5621, %v5633
        %v5635 = vpop.f32.mrf.mxu0
        %5636 = vdwg.mxu0
        %5637 = vmatpush.bf16.msra.mxu0 %v4679
        %5638 = vmatpush.bf16.msra.mxu0 %v4675
        %5639 = vmatpush.bf16.msra.mxu0 %v4671
        %5640 = vmatpush.bf16.msra.mxu0 %v4667
        %5641 = vmatpush.bf16.msra.mxu0 %v4663
        %5642 = vmatpush.bf16.msra.mxu0 %v4659
        %5643 = vmatpush.bf16.msra.mxu0 %v4655
        %5644 = vmatpush.bf16.msra.mxu0 %v4651
        %5645 = vmatmul.bf16.gmra.mxu0 %v3021
        %v5646 = vpop.f32.mrf.mxu0
        %v5647 = vadd.f32 %v5634, %v5646
        %v5648 = vpop.f32.mrf.mxu0
        %5649 = vdwg.mxu0
        %5650 = vmatpush.bf16.msra.mxu0 %v4711
        %5651 = vmatpush.bf16.msra.mxu0 %v4707
        %5652 = vmatpush.bf16.msra.mxu0 %v4703
        %5653 = vmatpush.bf16.msra.mxu0 %v4699
        %5654 = vmatpush.bf16.msra.mxu0 %v4695
        %5655 = vmatpush.bf16.msra.mxu0 %v4691
        %5656 = vmatpush.bf16.msra.mxu0 %v4687
        %5657 = vmatpush.bf16.msra.mxu0 %v4683
        %5658 = vmatmul.bf16.gmra.mxu0 %v3022
        %v5659 = vpop.f32.mrf.mxu0
        %v5660 = vadd.f32 %v5647, %v5659
        %v5661 = vpop.f32.mrf.mxu0
        %5662 = vdwg.mxu0
        %5663 = vmatpush.bf16.msra.mxu0 %v4743
        %5664 = vmatpush.bf16.msra.mxu0 %v4739
        %5665 = vmatpush.bf16.msra.mxu0 %v4735
        %5666 = vmatpush.bf16.msra.mxu0 %v4731
        %5667 = vmatpush.bf16.msra.mxu0 %v4727
        %5668 = vmatpush.bf16.msra.mxu0 %v4723
        %5669 = vmatpush.bf16.msra.mxu0 %v4719
        %5670 = vmatpush.bf16.msra.mxu0 %v4715
        %5671 = vmatmul.bf16.gmra.mxu0 %v3023
        %v5672 = vpop.f32.mrf.mxu0
        %v5673 = vadd.f32 %v5660, %v5672
        %v5674 = vpop.f32.mrf.mxu0
        %5675 = vdwg.mxu0
        %5676 = vmatpush.bf16.msra.mxu0 %v4775
        %5677 = vmatpush.bf16.msra.mxu0 %v4771
        %5678 = vmatpush.bf16.msra.mxu0 %v4767
        %5679 = vmatpush.bf16.msra.mxu0 %v4763
        %5680 = vmatpush.bf16.msra.mxu0 %v4759
        %5681 = vmatpush.bf16.msra.mxu0 %v4755
        %5682 = vmatpush.bf16.msra.mxu0 %v4751
        %5683 = vmatpush.bf16.msra.mxu0 %v4747
        %5684 = vmatmul.bf16.gmra.mxu0 %v3024
        %v5685 = vpop.f32.mrf.mxu0
        %v5686 = vadd.f32 %v5673, %v5685
        %v5687 = vpop.f32.mrf.mxu0
        %5688 = vdwg.mxu0
        %5689 = vmatpush.bf16.msra.mxu0 %v4807
        %5690 = vmatpush.bf16.msra.mxu0 %v4803
        %5691 = vmatpush.bf16.msra.mxu0 %v4799
        %5692 = vmatpush.bf16.msra.mxu0 %v4795
        %5693 = vmatpush.bf16.msra.mxu0 %v4791
        %5694 = vmatpush.bf16.msra.mxu0 %v4787
        %5695 = vmatpush.bf16.msra.mxu0 %v4783
        %5696 = vmatpush.bf16.msra.mxu0 %v4779
        %5697 = vmatmul.bf16.gmra.mxu0 %v3025
        %v5698 = vpop.f32.mrf.mxu0
        %v5699 = vadd.f32 %v5686, %v5698
        %v5700 = vpop.f32.mrf.mxu0
        %5701 = vdwg.mxu0
        %5702 = vmatpush.bf16.msra.mxu0 %v4839
        %5703 = vmatpush.bf16.msra.mxu0 %v4835
        %5704 = vmatpush.bf16.msra.mxu0 %v4831
        %5705 = vmatpush.bf16.msra.mxu0 %v4827
        %5706 = vmatpush.bf16.msra.mxu0 %v4823
        %5707 = vmatpush.bf16.msra.mxu0 %v4819
        %5708 = vmatpush.bf16.msra.mxu0 %v4815
        %5709 = vmatpush.bf16.msra.mxu0 %v4811
        %5710 = vmatmul.bf16.gmra.mxu0 %v3026
        %v5711 = vpop.f32.mrf.mxu0
        %v5712 = vadd.f32 %v5699, %v5711
        %v5713 = vpop.f32.mrf.mxu0
        %5714 = vdwg.mxu0
        %5715 = vmatpush.bf16.msra.mxu0 %v4871
        %5716 = vmatpush.bf16.msra.mxu0 %v4867
        %5717 = vmatpush.bf16.msra.mxu0 %v4863
        %5718 = vmatpush.bf16.msra.mxu0 %v4859
        %5719 = vmatpush.bf16.msra.mxu0 %v4855
        %5720 = vmatpush.bf16.msra.mxu0 %v4851
        %5721 = vmatpush.bf16.msra.mxu0 %v4847
        %5722 = vmatpush.bf16.msra.mxu0 %v4843
        %5723 = vmatmul.bf16.gmra.mxu0 %v3027
        %v5724 = vpop.f32.mrf.mxu0
        %v5725 = vadd.f32 %v5712, %v5724
        %v5726 = vpop.f32.mrf.mxu0
        %5727 = vdwg.mxu0
        %5728 = vmatpush.bf16.msra.mxu0 %v4903
        %5729 = vmatpush.bf16.msra.mxu0 %v4899
        %5730 = vmatpush.bf16.msra.mxu0 %v4895
        %5731 = vmatpush.bf16.msra.mxu0 %v4891
        %5732 = vmatpush.bf16.msra.mxu0 %v4887
        %5733 = vmatpush.bf16.msra.mxu0 %v4883
        %5734 = vmatpush.bf16.msra.mxu0 %v4879
        %5735 = vmatpush.bf16.msra.mxu0 %v4875
        %5736 = vmatmul.bf16.gmra.mxu0 %v3028
        %v5737 = vpop.f32.mrf.mxu0
        %v5738 = vadd.f32 %v5725, %v5737
        %v5739 = vpop.f32.mrf.mxu0
        %5740 = vdwg.mxu0
        %5741 = vmatpush.bf16.msra.mxu0 %v4935
        %5742 = vmatpush.bf16.msra.mxu0 %v4931
        %5743 = vmatpush.bf16.msra.mxu0 %v4927
        %5744 = vmatpush.bf16.msra.mxu0 %v4923
        %5745 = vmatpush.bf16.msra.mxu0 %v4919
        %5746 = vmatpush.bf16.msra.mxu0 %v4915
        %5747 = vmatpush.bf16.msra.mxu0 %v4911
        %5748 = vmatpush.bf16.msra.mxu0 %v4907
        %5749 = vmatmul.bf16.gmra.mxu0 %v3029
        %v5750 = vpop.f32.mrf.mxu0
        %v5751 = vadd.f32 %v5738, %v5750
        %v5752 = vpop.f32.mrf.mxu0
        %5753 = vdwg.mxu0
        %5754 = vmatpush.bf16.msra.mxu0 %v4967
        %5755 = vmatpush.bf16.msra.mxu0 %v4963
        %5756 = vmatpush.bf16.msra.mxu0 %v4959
        %5757 = vmatpush.bf16.msra.mxu0 %v4955
        %5758 = vmatpush.bf16.msra.mxu0 %v4951
        %5759 = vmatpush.bf16.msra.mxu0 %v4947
        %5760 = vmatpush.bf16.msra.mxu0 %v4943
        %5761 = vmatpush.bf16.msra.mxu0 %v4939
        %5762 = vmatmul.bf16.gmra.mxu0 %v3030
        %v5763 = vpop.f32.mrf.mxu0
        %v5764 = vadd.f32 %v5751, %v5763
        %v5765 = vpop.f32.mrf.mxu0
        %5766 = vdwg.mxu0
        %5767 = vmatpush.bf16.msra.mxu0 %v4999
        %5768 = vmatpush.bf16.msra.mxu0 %v4995
        %5769 = vmatpush.bf16.msra.mxu0 %v4991
        %5770 = vmatpush.bf16.msra.mxu0 %v4987
        %5771 = vmatpush.bf16.msra.mxu0 %v4983
        %5772 = vmatpush.bf16.msra.mxu0 %v4979
        %5773 = vmatpush.bf16.msra.mxu0 %v4975
        %5774 = vmatpush.bf16.msra.mxu0 %v4971
        %5775 = vmatmul.bf16.gmra.mxu0 %v3031
        %v5776 = vpop.f32.mrf.mxu0
        %v5777 = vadd.f32 %v5764, %v5776
        %v5778 = vpop.f32.mrf.mxu0
        %5779 = vdwg.mxu0
        %5780 = vmatpush.bf16.msra.mxu0 %v5031
        %5781 = vmatpush.bf16.msra.mxu0 %v5027
        %5782 = vmatpush.bf16.msra.mxu0 %v5023
        %5783 = vmatpush.bf16.msra.mxu0 %v5019
        %5784 = vmatpush.bf16.msra.mxu0 %v5015
        %5785 = vmatpush.bf16.msra.mxu0 %v5011
        %5786 = vmatpush.bf16.msra.mxu0 %v5007
        %5787 = vmatpush.bf16.msra.mxu0 %v5003
        %5788 = vmatmul.bf16.gmra.mxu0 %v3032
        %v5789 = vpop.f32.mrf.mxu0
        %v5790 = vadd.f32 %v5777, %v5789
        %v5791 = vpop.f32.mrf.mxu0
        %5792 = vdwg.mxu0
        %5793 = vmatpush.bf16.msra.mxu0 %v5063
        %5794 = vmatpush.bf16.msra.mxu0 %v5059
        %5795 = vmatpush.bf16.msra.mxu0 %v5055
        %5796 = vmatpush.bf16.msra.mxu0 %v5051
        %5797 = vmatpush.bf16.msra.mxu0 %v5047
        %5798 = vmatpush.bf16.msra.mxu0 %v5043
        %5799 = vmatpush.bf16.msra.mxu0 %v5039
        %5800 = vmatpush.bf16.msra.mxu0 %v5035
        %5801 = vmatmul.bf16.gmra.mxu0 %v3033
        %v5802 = vpop.f32.mrf.mxu0
        %v5803 = vadd.f32 %v5790, %v5802
        %v5804 = vpop.f32.mrf.mxu0
        %5805 = vdwg.mxu0
        %5806 = vmatpush.bf16.msra.mxu0 %v5095
        %5807 = vmatpush.bf16.msra.mxu0 %v5091
        %5808 = vmatpush.bf16.msra.mxu0 %v5087
        %5809 = vmatpush.bf16.msra.mxu0 %v5083
        %5810 = vmatpush.bf16.msra.mxu0 %v5079
        %5811 = vmatpush.bf16.msra.mxu0 %v5075
        %5812 = vmatpush.bf16.msra.mxu0 %v5071
        %5813 = vmatpush.bf16.msra.mxu0 %v5067
        %5814 = vmatmul.bf16.gmra.mxu0 %v3034
        %v5815 = vpop.f32.mrf.mxu0
        %v5816 = vadd.f32 %v5803, %v5815
        %v5817 = vpop.f32.mrf.mxu0
        %5818 = vdwg.mxu0
        %5819 = vmatpush.bf16.msra.mxu0 %v4616
        %5820 = vmatpush.bf16.msra.mxu0 %v4612
        %5821 = vmatpush.bf16.msra.mxu0 %v4608
        %5822 = vmatpush.bf16.msra.mxu0 %v4604
        %5823 = vmatpush.bf16.msra.mxu0 %v4600
        %5824 = vmatpush.bf16.msra.mxu0 %v4596
        %5825 = vmatpush.bf16.msra.mxu0 %v4592
        %5826 = vmatpush.bf16.msra.mxu0 %v4588
        %5827 = vmatmul.bf16.gmra.mxu0 %v3019
        %v5828 = vpop.f32.mrf.mxu0
        %v5829 = vadd.f32 %v2988, %v5828
        %v5830 = vpop.f32.mrf.mxu0
        %5831 = vdwg.mxu0
        %5832 = vmatpush.bf16.msra.mxu0 %v4648
        %5833 = vmatpush.bf16.msra.mxu0 %v4644
        %5834 = vmatpush.bf16.msra.mxu0 %v4640
        %5835 = vmatpush.bf16.msra.mxu0 %v4636
        %5836 = vmatpush.bf16.msra.mxu0 %v4632
        %5837 = vmatpush.bf16.msra.mxu0 %v4628
        %5838 = vmatpush.bf16.msra.mxu0 %v4624
        %5839 = vmatpush.bf16.msra.mxu0 %v4620
        %5840 = vmatmul.bf16.gmra.mxu0 %v3020
        %v5841 = vpop.f32.mrf.mxu0
        %v5842 = vadd.f32 %v5829, %v5841
        %v5843 = vpop.f32.mrf.mxu0
        %5844 = vdwg.mxu0
        %5845 = vmatpush.bf16.msra.mxu0 %v4680
        %5846 = vmatpush.bf16.msra.mxu0 %v4676
        %5847 = vmatpush.bf16.msra.mxu0 %v4672
        %5848 = vmatpush.bf16.msra.mxu0 %v4668
        %5849 = vmatpush.bf16.msra.mxu0 %v4664
        %5850 = vmatpush.bf16.msra.mxu0 %v4660
        %5851 = vmatpush.bf16.msra.mxu0 %v4656
        %5852 = vmatpush.bf16.msra.mxu0 %v4652
        %5853 = vmatmul.bf16.gmra.mxu0 %v3021
        %v5854 = vpop.f32.mrf.mxu0
        %v5855 = vadd.f32 %v5842, %v5854
        %v5856 = vpop.f32.mrf.mxu0
        %5857 = vdwg.mxu0
        %5858 = vmatpush.bf16.msra.mxu0 %v4712
        %5859 = vmatpush.bf16.msra.mxu0 %v4708
        %5860 = vmatpush.bf16.msra.mxu0 %v4704
        %5861 = vmatpush.bf16.msra.mxu0 %v4700
        %5862 = vmatpush.bf16.msra.mxu0 %v4696
        %5863 = vmatpush.bf16.msra.mxu0 %v4692
        %5864 = vmatpush.bf16.msra.mxu0 %v4688
        %5865 = vmatpush.bf16.msra.mxu0 %v4684
        %5866 = vmatmul.bf16.gmra.mxu0 %v3022
        %v5867 = vpop.f32.mrf.mxu0
        %v5868 = vadd.f32 %v5855, %v5867
        %v5869 = vpop.f32.mrf.mxu0
        %5870 = vdwg.mxu0
        %5871 = vmatpush.bf16.msra.mxu0 %v4744
        %5872 = vmatpush.bf16.msra.mxu0 %v4740
        %5873 = vmatpush.bf16.msra.mxu0 %v4736
        %5874 = vmatpush.bf16.msra.mxu0 %v4732
        %5875 = vmatpush.bf16.msra.mxu0 %v4728
        %5876 = vmatpush.bf16.msra.mxu0 %v4724
        %5877 = vmatpush.bf16.msra.mxu0 %v4720
        %5878 = vmatpush.bf16.msra.mxu0 %v4716
        %5879 = vmatmul.bf16.gmra.mxu0 %v3023
        %v5880 = vpop.f32.mrf.mxu0
        %v5881 = vadd.f32 %v5868, %v5880
        %v5882 = vpop.f32.mrf.mxu0
        %5883 = vdwg.mxu0
        %5884 = vmatpush.bf16.msra.mxu0 %v4776
        %5885 = vmatpush.bf16.msra.mxu0 %v4772
        %5886 = vmatpush.bf16.msra.mxu0 %v4768
        %5887 = vmatpush.bf16.msra.mxu0 %v4764
        %5888 = vmatpush.bf16.msra.mxu0 %v4760
        %5889 = vmatpush.bf16.msra.mxu0 %v4756
        %5890 = vmatpush.bf16.msra.mxu0 %v4752
        %5891 = vmatpush.bf16.msra.mxu0 %v4748
        %5892 = vmatmul.bf16.gmra.mxu0 %v3024
        %v5893 = vpop.f32.mrf.mxu0
        %v5894 = vadd.f32 %v5881, %v5893
        %v5895 = vpop.f32.mrf.mxu0
        %5896 = vdwg.mxu0
        %5897 = vmatpush.bf16.msra.mxu0 %v4808
        %5898 = vmatpush.bf16.msra.mxu0 %v4804
        %5899 = vmatpush.bf16.msra.mxu0 %v4800
        %5900 = vmatpush.bf16.msra.mxu0 %v4796
        %5901 = vmatpush.bf16.msra.mxu0 %v4792
        %5902 = vmatpush.bf16.msra.mxu0 %v4788
        %5903 = vmatpush.bf16.msra.mxu0 %v4784
        %5904 = vmatpush.bf16.msra.mxu0 %v4780
        %5905 = vmatmul.bf16.gmra.mxu0 %v3025
        %v5906 = vpop.f32.mrf.mxu0
        %v5907 = vadd.f32 %v5894, %v5906
        %v5908 = vpop.f32.mrf.mxu0
        %5909 = vdwg.mxu0
        %5910 = vmatpush.bf16.msra.mxu0 %v4840
        %5911 = vmatpush.bf16.msra.mxu0 %v4836
        %5912 = vmatpush.bf16.msra.mxu0 %v4832
        %5913 = vmatpush.bf16.msra.mxu0 %v4828
        %5914 = vmatpush.bf16.msra.mxu0 %v4824
        %5915 = vmatpush.bf16.msra.mxu0 %v4820
        %5916 = vmatpush.bf16.msra.mxu0 %v4816
        %5917 = vmatpush.bf16.msra.mxu0 %v4812
        %5918 = vmatmul.bf16.gmra.mxu0 %v3026
        %v5919 = vpop.f32.mrf.mxu0
        %v5920 = vadd.f32 %v5907, %v5919
        %v5921 = vpop.f32.mrf.mxu0
        %5922 = vdwg.mxu0
        %5923 = vmatpush.bf16.msra.mxu0 %v4872
        %5924 = vmatpush.bf16.msra.mxu0 %v4868
        %5925 = vmatpush.bf16.msra.mxu0 %v4864
        %5926 = vmatpush.bf16.msra.mxu0 %v4860
        %5927 = vmatpush.bf16.msra.mxu0 %v4856
        %5928 = vmatpush.bf16.msra.mxu0 %v4852
        %5929 = vmatpush.bf16.msra.mxu0 %v4848
        %5930 = vmatpush.bf16.msra.mxu0 %v4844
        %5931 = vmatmul.bf16.gmra.mxu0 %v3027
        %v5932 = vpop.f32.mrf.mxu0
        %v5933 = vadd.f32 %v5920, %v5932
        %v5934 = vpop.f32.mrf.mxu0
        %5935 = vdwg.mxu0
        %5936 = vmatpush.bf16.msra.mxu0 %v4904
        %5937 = vmatpush.bf16.msra.mxu0 %v4900
        %5938 = vmatpush.bf16.msra.mxu0 %v4896
        %5939 = vmatpush.bf16.msra.mxu0 %v4892
        %5940 = vmatpush.bf16.msra.mxu0 %v4888
        %5941 = vmatpush.bf16.msra.mxu0 %v4884
        %5942 = vmatpush.bf16.msra.mxu0 %v4880
        %5943 = vmatpush.bf16.msra.mxu0 %v4876
        %5944 = vmatmul.bf16.gmra.mxu0 %v3028
        %v5945 = vpop.f32.mrf.mxu0
        %v5946 = vadd.f32 %v5933, %v5945
        %v5947 = vpop.f32.mrf.mxu0
        %5948 = vdwg.mxu0
        %5949 = vmatpush.bf16.msra.mxu0 %v4936
        %5950 = vmatpush.bf16.msra.mxu0 %v4932
        %5951 = vmatpush.bf16.msra.mxu0 %v4928
        %5952 = vmatpush.bf16.msra.mxu0 %v4924
        %5953 = vmatpush.bf16.msra.mxu0 %v4920
        %5954 = vmatpush.bf16.msra.mxu0 %v4916
        %5955 = vmatpush.bf16.msra.mxu0 %v4912
        %5956 = vmatpush.bf16.msra.mxu0 %v4908
        %5957 = vmatmul.bf16.gmra.mxu0 %v3029
        %v5958 = vpop.f32.mrf.mxu0
        %v5959 = vadd.f32 %v5946, %v5958
        %v5960 = vpop.f32.mrf.mxu0
        %5961 = vdwg.mxu0
        %5962 = vmatpush.bf16.msra.mxu0 %v4968
        %5963 = vmatpush.bf16.msra.mxu0 %v4964
        %5964 = vmatpush.bf16.msra.mxu0 %v4960
        %5965 = vmatpush.bf16.msra.mxu0 %v4956
        %5966 = vmatpush.bf16.msra.mxu0 %v4952
        %5967 = vmatpush.bf16.msra.mxu0 %v4948
        %5968 = vmatpush.bf16.msra.mxu0 %v4944
        %5969 = vmatpush.bf16.msra.mxu0 %v4940
        %5970 = vmatmul.bf16.gmra.mxu0 %v3030
        %v5971 = vpop.f32.mrf.mxu0
        %v5972 = vadd.f32 %v5959, %v5971
        %v5973 = vpop.f32.mrf.mxu0
        %5974 = vdwg.mxu0
        %5975 = vmatpush.bf16.msra.mxu0 %v5000
        %5976 = vmatpush.bf16.msra.mxu0 %v4996
        %5977 = vmatpush.bf16.msra.mxu0 %v4992
        %5978 = vmatpush.bf16.msra.mxu0 %v4988
        %5979 = vmatpush.bf16.msra.mxu0 %v4984
        %5980 = vmatpush.bf16.msra.mxu0 %v4980
        %5981 = vmatpush.bf16.msra.mxu0 %v4976
        %5982 = vmatpush.bf16.msra.mxu0 %v4972
        %5983 = vmatmul.bf16.gmra.mxu0 %v3031
        %v5984 = vpop.f32.mrf.mxu0
        %v5985 = vadd.f32 %v5972, %v5984
        %v5986 = vpop.f32.mrf.mxu0
        %5987 = vdwg.mxu0
        %5988 = vmatpush.bf16.msra.mxu0 %v5032
        %5989 = vmatpush.bf16.msra.mxu0 %v5028
        %5990 = vmatpush.bf16.msra.mxu0 %v5024
        %5991 = vmatpush.bf16.msra.mxu0 %v5020
        %5992 = vmatpush.bf16.msra.mxu0 %v5016
        %5993 = vmatpush.bf16.msra.mxu0 %v5012
        %5994 = vmatpush.bf16.msra.mxu0 %v5008
        %5995 = vmatpush.bf16.msra.mxu0 %v5004
        %5996 = vmatmul.bf16.gmra.mxu0 %v3032
        %v5997 = vpop.f32.mrf.mxu0
        %v5998 = vadd.f32 %v5985, %v5997
        %v5999 = vpop.f32.mrf.mxu0
        %6000 = vdwg.mxu0
        %6001 = vmatpush.bf16.msra.mxu0 %v5064
        %6002 = vmatpush.bf16.msra.mxu0 %v5060
        %6003 = vmatpush.bf16.msra.mxu0 %v5056
        %6004 = vmatpush.bf16.msra.mxu0 %v5052
        %6005 = vmatpush.bf16.msra.mxu0 %v5048
        %6006 = vmatpush.bf16.msra.mxu0 %v5044
        %6007 = vmatpush.bf16.msra.mxu0 %v5040
        %6008 = vmatpush.bf16.msra.mxu0 %v5036
        %6009 = vmatmul.bf16.gmra.mxu0 %v3033
        %v6010 = vpop.f32.mrf.mxu0
        %v6011 = vadd.f32 %v5998, %v6010
        %v6012 = vpop.f32.mrf.mxu0
        %6013 = vdwg.mxu0
        %6014 = vmatpush.bf16.msra.mxu0 %v5096
        %6015 = vmatpush.bf16.msra.mxu0 %v5092
        %6016 = vmatpush.bf16.msra.mxu0 %v5088
        %6017 = vmatpush.bf16.msra.mxu0 %v5084
        %6018 = vmatpush.bf16.msra.mxu0 %v5080
        %6019 = vmatpush.bf16.msra.mxu0 %v5076
        %6020 = vmatpush.bf16.msra.mxu0 %v5072
        %6021 = vmatpush.bf16.msra.mxu0 %v5068
        %6022 = vmatmul.bf16.gmra.mxu0 %v3034
        %v6023 = vpop.f32.mrf.mxu0
        %v6024 = vadd.f32 %v6011, %v6023
        %v6025 = vpop.f32.mrf.mxu0
        %6026 = vdwg.mxu0
        %6027 = vmatpush.bf16.msra.mxu0 %v4617
        %6028 = vmatpush.bf16.msra.mxu0 %v4613
        %6029 = vmatpush.bf16.msra.mxu0 %v4609
        %6030 = vmatpush.bf16.msra.mxu0 %v4605
        %6031 = vmatpush.bf16.msra.mxu0 %v4601
        %6032 = vmatpush.bf16.msra.mxu0 %v4597
        %6033 = vmatpush.bf16.msra.mxu0 %v4593
        %6034 = vmatpush.bf16.msra.mxu0 %v4589
        %6035 = vmatmul.bf16.gmra.mxu0 %v3019
        %v6036 = vpop.f32.mrf.mxu0
        %v6037 = vadd.f32 %v2989, %v6036
        %v6038 = vpop.f32.mrf.mxu0
        %6039 = vdwg.mxu0
        %6040 = vmatpush.bf16.msra.mxu0 %v4649
        %6041 = vmatpush.bf16.msra.mxu0 %v4645
        %6042 = vmatpush.bf16.msra.mxu0 %v4641
        %6043 = vmatpush.bf16.msra.mxu0 %v4637
        %6044 = vmatpush.bf16.msra.mxu0 %v4633
        %6045 = vmatpush.bf16.msra.mxu0 %v4629
        %6046 = vmatpush.bf16.msra.mxu0 %v4625
        %6047 = vmatpush.bf16.msra.mxu0 %v4621
        %6048 = vmatmul.bf16.gmra.mxu0 %v3020
        %v6049 = vpop.f32.mrf.mxu0
        %v6050 = vadd.f32 %v6037, %v6049
        %v6051 = vpop.f32.mrf.mxu0
        %6052 = vdwg.mxu0
        %6053 = vmatpush.bf16.msra.mxu0 %v4681
        %6054 = vmatpush.bf16.msra.mxu0 %v4677
        %6055 = vmatpush.bf16.msra.mxu0 %v4673
        %6056 = vmatpush.bf16.msra.mxu0 %v4669
        %6057 = vmatpush.bf16.msra.mxu0 %v4665
        %6058 = vmatpush.bf16.msra.mxu0 %v4661
        %6059 = vmatpush.bf16.msra.mxu0 %v4657
        %6060 = vmatpush.bf16.msra.mxu0 %v4653
        %6061 = vmatmul.bf16.gmra.mxu0 %v3021
        %v6062 = vpop.f32.mrf.mxu0
        %v6063 = vadd.f32 %v6050, %v6062
        %v6064 = vpop.f32.mrf.mxu0
        %6065 = vdwg.mxu0
        %6066 = vmatpush.bf16.msra.mxu0 %v4713
        %6067 = vmatpush.bf16.msra.mxu0 %v4709
        %6068 = vmatpush.bf16.msra.mxu0 %v4705
        %6069 = vmatpush.bf16.msra.mxu0 %v4701
        %6070 = vmatpush.bf16.msra.mxu0 %v4697
        %6071 = vmatpush.bf16.msra.mxu0 %v4693
        %6072 = vmatpush.bf16.msra.mxu0 %v4689
        %6073 = vmatpush.bf16.msra.mxu0 %v4685
        %6074 = vmatmul.bf16.gmra.mxu0 %v3022
        %v6075 = vpop.f32.mrf.mxu0
        %v6076 = vadd.f32 %v6063, %v6075
        %v6077 = vpop.f32.mrf.mxu0
        %6078 = vdwg.mxu0
        %6079 = vmatpush.bf16.msra.mxu0 %v4745
        %6080 = vmatpush.bf16.msra.mxu0 %v4741
        %6081 = vmatpush.bf16.msra.mxu0 %v4737
        %6082 = vmatpush.bf16.msra.mxu0 %v4733
        %6083 = vmatpush.bf16.msra.mxu0 %v4729
        %6084 = vmatpush.bf16.msra.mxu0 %v4725
        %6085 = vmatpush.bf16.msra.mxu0 %v4721
        %6086 = vmatpush.bf16.msra.mxu0 %v4717
        %6087 = vmatmul.bf16.gmra.mxu0 %v3023
        %v6088 = vpop.f32.mrf.mxu0
        %v6089 = vadd.f32 %v6076, %v6088
        %v6090 = vpop.f32.mrf.mxu0
        %6091 = vdwg.mxu0
        %6092 = vmatpush.bf16.msra.mxu0 %v4777
        %6093 = vmatpush.bf16.msra.mxu0 %v4773
        %6094 = vmatpush.bf16.msra.mxu0 %v4769
        %6095 = vmatpush.bf16.msra.mxu0 %v4765
        %6096 = vmatpush.bf16.msra.mxu0 %v4761
        %6097 = vmatpush.bf16.msra.mxu0 %v4757
        %6098 = vmatpush.bf16.msra.mxu0 %v4753
        %6099 = vmatpush.bf16.msra.mxu0 %v4749
        %6100 = vmatmul.bf16.gmra.mxu0 %v3024
        %v6101 = vpop.f32.mrf.mxu0
        %v6102 = vadd.f32 %v6089, %v6101
        %v6103 = vpop.f32.mrf.mxu0
        %6104 = vdwg.mxu0
        %6105 = vmatpush.bf16.msra.mxu0 %v4809
        %6106 = vmatpush.bf16.msra.mxu0 %v4805
        %6107 = vmatpush.bf16.msra.mxu0 %v4801
        %6108 = vmatpush.bf16.msra.mxu0 %v4797
        %6109 = vmatpush.bf16.msra.mxu0 %v4793
        %6110 = vmatpush.bf16.msra.mxu0 %v4789
        %6111 = vmatpush.bf16.msra.mxu0 %v4785
        %6112 = vmatpush.bf16.msra.mxu0 %v4781
        %6113 = vmatmul.bf16.gmra.mxu0 %v3025
        %v6114 = vpop.f32.mrf.mxu0
        %v6115 = vadd.f32 %v6102, %v6114
        %v6116 = vpop.f32.mrf.mxu0
        %6117 = vdwg.mxu0
        %6118 = vmatpush.bf16.msra.mxu0 %v4841
        %6119 = vmatpush.bf16.msra.mxu0 %v4837
        %6120 = vmatpush.bf16.msra.mxu0 %v4833
        %6121 = vmatpush.bf16.msra.mxu0 %v4829
        %6122 = vmatpush.bf16.msra.mxu0 %v4825
        %6123 = vmatpush.bf16.msra.mxu0 %v4821
        %6124 = vmatpush.bf16.msra.mxu0 %v4817
        %6125 = vmatpush.bf16.msra.mxu0 %v4813
        %6126 = vmatmul.bf16.gmra.mxu0 %v3026
        %v6127 = vpop.f32.mrf.mxu0
        %v6128 = vadd.f32 %v6115, %v6127
        %v6129 = vpop.f32.mrf.mxu0
        %6130 = vdwg.mxu0
        %6131 = vmatpush.bf16.msra.mxu0 %v4873
        %6132 = vmatpush.bf16.msra.mxu0 %v4869
        %6133 = vmatpush.bf16.msra.mxu0 %v4865
        %6134 = vmatpush.bf16.msra.mxu0 %v4861
        %6135 = vmatpush.bf16.msra.mxu0 %v4857
        %6136 = vmatpush.bf16.msra.mxu0 %v4853
        %6137 = vmatpush.bf16.msra.mxu0 %v4849
        %6138 = vmatpush.bf16.msra.mxu0 %v4845
        %6139 = vmatmul.bf16.gmra.mxu0 %v3027
        %v6140 = vpop.f32.mrf.mxu0
        %v6141 = vadd.f32 %v6128, %v6140
        %v6142 = vpop.f32.mrf.mxu0
        %6143 = vdwg.mxu0
        %6144 = vmatpush.bf16.msra.mxu0 %v4905
        %6145 = vmatpush.bf16.msra.mxu0 %v4901
        %6146 = vmatpush.bf16.msra.mxu0 %v4897
        %6147 = vmatpush.bf16.msra.mxu0 %v4893
        %6148 = vmatpush.bf16.msra.mxu0 %v4889
        %6149 = vmatpush.bf16.msra.mxu0 %v4885
        %6150 = vmatpush.bf16.msra.mxu0 %v4881
        %6151 = vmatpush.bf16.msra.mxu0 %v4877
        %6152 = vmatmul.bf16.gmra.mxu0 %v3028
        %v6153 = vpop.f32.mrf.mxu0
        %v6154 = vadd.f32 %v6141, %v6153
        %v6155 = vpop.f32.mrf.mxu0
        %6156 = vdwg.mxu0
        %6157 = vmatpush.bf16.msra.mxu0 %v4937
        %6158 = vmatpush.bf16.msra.mxu0 %v4933
        %6159 = vmatpush.bf16.msra.mxu0 %v4929
        %6160 = vmatpush.bf16.msra.mxu0 %v4925
        %6161 = vmatpush.bf16.msra.mxu0 %v4921
        %6162 = vmatpush.bf16.msra.mxu0 %v4917
        %6163 = vmatpush.bf16.msra.mxu0 %v4913
        %6164 = vmatpush.bf16.msra.mxu0 %v4909
        %6165 = vmatmul.bf16.gmra.mxu0 %v3029
        %v6166 = vpop.f32.mrf.mxu0
        %v6167 = vadd.f32 %v6154, %v6166
        %v6168 = vpop.f32.mrf.mxu0
        %6169 = vdwg.mxu0
        %6170 = vmatpush.bf16.msra.mxu0 %v4969
        %6171 = vmatpush.bf16.msra.mxu0 %v4965
        %6172 = vmatpush.bf16.msra.mxu0 %v4961
        %6173 = vmatpush.bf16.msra.mxu0 %v4957
        %6174 = vmatpush.bf16.msra.mxu0 %v4953
        %6175 = vmatpush.bf16.msra.mxu0 %v4949
        %6176 = vmatpush.bf16.msra.mxu0 %v4945
        %6177 = vmatpush.bf16.msra.mxu0 %v4941
        %6178 = vmatmul.bf16.gmra.mxu0 %v3030
        %v6179 = vpop.f32.mrf.mxu0
        %v6180 = vadd.f32 %v6167, %v6179
        %v6181 = vpop.f32.mrf.mxu0
        %6182 = vdwg.mxu0
        %6183 = vmatpush.bf16.msra.mxu0 %v5001
        %6184 = vmatpush.bf16.msra.mxu0 %v4997
        %6185 = vmatpush.bf16.msra.mxu0 %v4993
        %6186 = vmatpush.bf16.msra.mxu0 %v4989
        %6187 = vmatpush.bf16.msra.mxu0 %v4985
        %6188 = vmatpush.bf16.msra.mxu0 %v4981
        %6189 = vmatpush.bf16.msra.mxu0 %v4977
        %6190 = vmatpush.bf16.msra.mxu0 %v4973
        %6191 = vmatmul.bf16.gmra.mxu0 %v3031
        %v6192 = vpop.f32.mrf.mxu0
        %v6193 = vadd.f32 %v6180, %v6192
        %v6194 = vpop.f32.mrf.mxu0
        %6195 = vdwg.mxu0
        %6196 = vmatpush.bf16.msra.mxu0 %v5033
        %6197 = vmatpush.bf16.msra.mxu0 %v5029
        %6198 = vmatpush.bf16.msra.mxu0 %v5025
        %6199 = vmatpush.bf16.msra.mxu0 %v5021
        %6200 = vmatpush.bf16.msra.mxu0 %v5017
        %6201 = vmatpush.bf16.msra.mxu0 %v5013
        %6202 = vmatpush.bf16.msra.mxu0 %v5009
        %6203 = vmatpush.bf16.msra.mxu0 %v5005
        %6204 = vmatmul.bf16.gmra.mxu0 %v3032
        %v6205 = vpop.f32.mrf.mxu0
        %v6206 = vadd.f32 %v6193, %v6205
        %v6207 = vpop.f32.mrf.mxu0
        %6208 = vdwg.mxu0
        %6209 = vmatpush.bf16.msra.mxu0 %v5065
        %6210 = vmatpush.bf16.msra.mxu0 %v5061
        %6211 = vmatpush.bf16.msra.mxu0 %v5057
        %6212 = vmatpush.bf16.msra.mxu0 %v5053
        %6213 = vmatpush.bf16.msra.mxu0 %v5049
        %6214 = vmatpush.bf16.msra.mxu0 %v5045
        %6215 = vmatpush.bf16.msra.mxu0 %v5041
        %6216 = vmatpush.bf16.msra.mxu0 %v5037
        %6217 = vmatmul.bf16.gmra.mxu0 %v3033
        %v6218 = vpop.f32.mrf.mxu0
        %v6219 = vadd.f32 %v6206, %v6218
        %v6220 = vpop.f32.mrf.mxu0
        %6221 = vdwg.mxu0
        %6222 = vmatpush.bf16.msra.mxu0 %v5097
        %6223 = vmatpush.bf16.msra.mxu0 %v5093
        %6224 = vmatpush.bf16.msra.mxu0 %v5089
        %6225 = vmatpush.bf16.msra.mxu0 %v5085
        %6226 = vmatpush.bf16.msra.mxu0 %v5081
        %6227 = vmatpush.bf16.msra.mxu0 %v5077
        %6228 = vmatpush.bf16.msra.mxu0 %v5073
        %6229 = vmatpush.bf16.msra.mxu0 %v5069
        %6230 = vmatmul.bf16.gmra.mxu0 %v3034
        %v6231 = vpop.f32.mrf.mxu0
        %v6232 = vadd.f32 %v6219, %v6231
        %v6233 = vpop.f32.mrf.mxu0
        %6234 = vdwg.mxu0
        %6235 = vmatpush.bf16.msra.mxu0 %v4618
        %6236 = vmatpush.bf16.msra.mxu0 %v4614
        %6237 = vmatpush.bf16.msra.mxu0 %v4610
        %6238 = vmatpush.bf16.msra.mxu0 %v4606
        %6239 = vmatpush.bf16.msra.mxu0 %v4602
        %6240 = vmatpush.bf16.msra.mxu0 %v4598
        %6241 = vmatpush.bf16.msra.mxu0 %v4594
        %6242 = vmatpush.bf16.msra.mxu0 %v4590
        %6243 = vmatmul.bf16.gmra.mxu0 %v3019
        %v6244 = vpop.f32.mrf.mxu0
        %v6245 = vadd.f32 %v2990, %v6244
        %v6246 = vpop.f32.mrf.mxu0
        %6247 = vdwg.mxu0
        %6248 = vmatpush.bf16.msra.mxu0 %v4650
        %6249 = vmatpush.bf16.msra.mxu0 %v4646
        %6250 = vmatpush.bf16.msra.mxu0 %v4642
        %6251 = vmatpush.bf16.msra.mxu0 %v4638
        %6252 = vmatpush.bf16.msra.mxu0 %v4634
        %6253 = vmatpush.bf16.msra.mxu0 %v4630
        %6254 = vmatpush.bf16.msra.mxu0 %v4626
        %6255 = vmatpush.bf16.msra.mxu0 %v4622
        %6256 = vmatmul.bf16.gmra.mxu0 %v3020
        %v6257 = vpop.f32.mrf.mxu0
        %v6258 = vadd.f32 %v6245, %v6257
        %v6259 = vpop.f32.mrf.mxu0
        %6260 = vdwg.mxu0
        %6261 = vmatpush.bf16.msra.mxu0 %v4682
        %6262 = vmatpush.bf16.msra.mxu0 %v4678
        %6263 = vmatpush.bf16.msra.mxu0 %v4674
        %6264 = vmatpush.bf16.msra.mxu0 %v4670
        %6265 = vmatpush.bf16.msra.mxu0 %v4666
        %6266 = vmatpush.bf16.msra.mxu0 %v4662
        %6267 = vmatpush.bf16.msra.mxu0 %v4658
        %6268 = vmatpush.bf16.msra.mxu0 %v4654
        %6269 = vmatmul.bf16.gmra.mxu0 %v3021
        %v6270 = vpop.f32.mrf.mxu0
        %v6271 = vadd.f32 %v6258, %v6270
        %v6272 = vpop.f32.mrf.mxu0
        %6273 = vdwg.mxu0
        %6274 = vmatpush.bf16.msra.mxu0 %v4714
        %6275 = vmatpush.bf16.msra.mxu0 %v4710
        %6276 = vmatpush.bf16.msra.mxu0 %v4706
        %6277 = vmatpush.bf16.msra.mxu0 %v4702
        %6278 = vmatpush.bf16.msra.mxu0 %v4698
        %6279 = vmatpush.bf16.msra.mxu0 %v4694
        %6280 = vmatpush.bf16.msra.mxu0 %v4690
        %6281 = vmatpush.bf16.msra.mxu0 %v4686
        %6282 = vmatmul.bf16.gmra.mxu0 %v3022
        %v6283 = vpop.f32.mrf.mxu0
        %v6284 = vadd.f32 %v6271, %v6283
        %v6285 = vpop.f32.mrf.mxu0
        %6286 = vdwg.mxu0
        %6287 = vmatpush.bf16.msra.mxu0 %v4746
        %6288 = vmatpush.bf16.msra.mxu0 %v4742
        %6289 = vmatpush.bf16.msra.mxu0 %v4738
        %6290 = vmatpush.bf16.msra.mxu0 %v4734
        %6291 = vmatpush.bf16.msra.mxu0 %v4730
        %6292 = vmatpush.bf16.msra.mxu0 %v4726
        %6293 = vmatpush.bf16.msra.mxu0 %v4722
        %6294 = vmatpush.bf16.msra.mxu0 %v4718
        %6295 = vmatmul.bf16.gmra.mxu0 %v3023
        %v6296 = vpop.f32.mrf.mxu0
        %v6297 = vadd.f32 %v6284, %v6296
        %v6298 = vpop.f32.mrf.mxu0
        %6299 = vdwg.mxu0
        %6300 = vmatpush.bf16.msra.mxu0 %v4778
        %6301 = vmatpush.bf16.msra.mxu0 %v4774
        %6302 = vmatpush.bf16.msra.mxu0 %v4770
        %6303 = vmatpush.bf16.msra.mxu0 %v4766
        %6304 = vmatpush.bf16.msra.mxu0 %v4762
        %6305 = vmatpush.bf16.msra.mxu0 %v4758
        %6306 = vmatpush.bf16.msra.mxu0 %v4754
        %6307 = vmatpush.bf16.msra.mxu0 %v4750
        %6308 = vmatmul.bf16.gmra.mxu0 %v3024
        %v6309 = vpop.f32.mrf.mxu0
        %v6310 = vadd.f32 %v6297, %v6309
        %v6311 = vpop.f32.mrf.mxu0
        %6312 = vdwg.mxu0
        %6313 = vmatpush.bf16.msra.mxu0 %v4810
        %6314 = vmatpush.bf16.msra.mxu0 %v4806
        %6315 = vmatpush.bf16.msra.mxu0 %v4802
        %6316 = vmatpush.bf16.msra.mxu0 %v4798
        %6317 = vmatpush.bf16.msra.mxu0 %v4794
        %6318 = vmatpush.bf16.msra.mxu0 %v4790
        %6319 = vmatpush.bf16.msra.mxu0 %v4786
        %6320 = vmatpush.bf16.msra.mxu0 %v4782
        %6321 = vmatmul.bf16.gmra.mxu0 %v3025
        %v6322 = vpop.f32.mrf.mxu0
        %v6323 = vadd.f32 %v6310, %v6322
        %v6324 = vpop.f32.mrf.mxu0
        %6325 = vdwg.mxu0
        %6326 = vmatpush.bf16.msra.mxu0 %v4842
        %6327 = vmatpush.bf16.msra.mxu0 %v4838
        %6328 = vmatpush.bf16.msra.mxu0 %v4834
        %6329 = vmatpush.bf16.msra.mxu0 %v4830
        %6330 = vmatpush.bf16.msra.mxu0 %v4826
        %6331 = vmatpush.bf16.msra.mxu0 %v4822
        %6332 = vmatpush.bf16.msra.mxu0 %v4818
        %6333 = vmatpush.bf16.msra.mxu0 %v4814
        %6334 = vmatmul.bf16.gmra.mxu0 %v3026
        %v6335 = vpop.f32.mrf.mxu0
        %v6336 = vadd.f32 %v6323, %v6335
        %v6337 = vpop.f32.mrf.mxu0
        %6338 = vdwg.mxu0
        %6339 = vmatpush.bf16.msra.mxu0 %v4874
        %6340 = vmatpush.bf16.msra.mxu0 %v4870
        %6341 = vmatpush.bf16.msra.mxu0 %v4866
        %6342 = vmatpush.bf16.msra.mxu0 %v4862
        %6343 = vmatpush.bf16.msra.mxu0 %v4858
        %6344 = vmatpush.bf16.msra.mxu0 %v4854
        %6345 = vmatpush.bf16.msra.mxu0 %v4850
        %6346 = vmatpush.bf16.msra.mxu0 %v4846
        %6347 = vmatmul.bf16.gmra.mxu0 %v3027
        %v6348 = vpop.f32.mrf.mxu0
        %v6349 = vadd.f32 %v6336, %v6348
        %v6350 = vpop.f32.mrf.mxu0
        %6351 = vdwg.mxu0
        %6352 = vmatpush.bf16.msra.mxu0 %v4906
        %6353 = vmatpush.bf16.msra.mxu0 %v4902
        %6354 = vmatpush.bf16.msra.mxu0 %v4898
        %6355 = vmatpush.bf16.msra.mxu0 %v4894
        %6356 = vmatpush.bf16.msra.mxu0 %v4890
        %6357 = vmatpush.bf16.msra.mxu0 %v4886
        %6358 = vmatpush.bf16.msra.mxu0 %v4882
        %6359 = vmatpush.bf16.msra.mxu0 %v4878
        %6360 = vmatmul.bf16.gmra.mxu0 %v3028
        %v6361 = vpop.f32.mrf.mxu0
        %v6362 = vadd.f32 %v6349, %v6361
        %v6363 = vpop.f32.mrf.mxu0
        %6364 = vdwg.mxu0
        %6365 = vmatpush.bf16.msra.mxu0 %v4938
        %6366 = vmatpush.bf16.msra.mxu0 %v4934
        %6367 = vmatpush.bf16.msra.mxu0 %v4930
        %6368 = vmatpush.bf16.msra.mxu0 %v4926
        %6369 = vmatpush.bf16.msra.mxu0 %v4922
        %6370 = vmatpush.bf16.msra.mxu0 %v4918
        %6371 = vmatpush.bf16.msra.mxu0 %v4914
        %6372 = vmatpush.bf16.msra.mxu0 %v4910
        %6373 = vmatmul.bf16.gmra.mxu0 %v3029
        %v6374 = vpop.f32.mrf.mxu0
        %v6375 = vadd.f32 %v6362, %v6374
        %v6376 = vpop.f32.mrf.mxu0
        %6377 = vdwg.mxu0
        %6378 = vmatpush.bf16.msra.mxu0 %v4970
        %6379 = vmatpush.bf16.msra.mxu0 %v4966
        %6380 = vmatpush.bf16.msra.mxu0 %v4962
        %6381 = vmatpush.bf16.msra.mxu0 %v4958
        %6382 = vmatpush.bf16.msra.mxu0 %v4954
        %6383 = vmatpush.bf16.msra.mxu0 %v4950
        %6384 = vmatpush.bf16.msra.mxu0 %v4946
        %6385 = vmatpush.bf16.msra.mxu0 %v4942
        %6386 = vmatmul.bf16.gmra.mxu0 %v3030
        %v6387 = vpop.f32.mrf.mxu0
        %v6388 = vadd.f32 %v6375, %v6387
        %v6389 = vpop.f32.mrf.mxu0
        %6390 = vdwg.mxu0
        %6391 = vmatpush.bf16.msra.mxu0 %v5002
        %6392 = vmatpush.bf16.msra.mxu0 %v4998
        %6393 = vmatpush.bf16.msra.mxu0 %v4994
        %6394 = vmatpush.bf16.msra.mxu0 %v4990
        %6395 = vmatpush.bf16.msra.mxu0 %v4986
        %6396 = vmatpush.bf16.msra.mxu0 %v4982
        %6397 = vmatpush.bf16.msra.mxu0 %v4978
        %6398 = vmatpush.bf16.msra.mxu0 %v4974
        %6399 = vmatmul.bf16.gmra.mxu0 %v3031
        %v6400 = vpop.f32.mrf.mxu0
        %v6401 = vadd.f32 %v6388, %v6400
        %v6402 = vpop.f32.mrf.mxu0
        %6403 = vdwg.mxu0
        %6404 = vmatpush.bf16.msra.mxu0 %v5034
        %6405 = vmatpush.bf16.msra.mxu0 %v5030
        %6406 = vmatpush.bf16.msra.mxu0 %v5026
        %6407 = vmatpush.bf16.msra.mxu0 %v5022
        %6408 = vmatpush.bf16.msra.mxu0 %v5018
        %6409 = vmatpush.bf16.msra.mxu0 %v5014
        %6410 = vmatpush.bf16.msra.mxu0 %v5010
        %6411 = vmatpush.bf16.msra.mxu0 %v5006
        %6412 = vmatmul.bf16.gmra.mxu0 %v3032
        %v6413 = vpop.f32.mrf.mxu0
        %v6414 = vadd.f32 %v6401, %v6413
        %v6415 = vpop.f32.mrf.mxu0
        %6416 = vdwg.mxu0
        %6417 = vmatpush.bf16.msra.mxu0 %v5066
        %6418 = vmatpush.bf16.msra.mxu0 %v5062
        %6419 = vmatpush.bf16.msra.mxu0 %v5058
        %6420 = vmatpush.bf16.msra.mxu0 %v5054
        %6421 = vmatpush.bf16.msra.mxu0 %v5050
        %6422 = vmatpush.bf16.msra.mxu0 %v5046
        %6423 = vmatpush.bf16.msra.mxu0 %v5042
        %6424 = vmatpush.bf16.msra.mxu0 %v5038
        %6425 = vmatmul.bf16.gmra.mxu0 %v3033
        %v6426 = vpop.f32.mrf.mxu0
        %v6427 = vadd.f32 %v6414, %v6426
        %v6428 = vpop.f32.mrf.mxu0
        %6429 = vdwg.mxu0
        %6430 = vmatpush.bf16.msra.mxu0 %v5098
        %6431 = vmatpush.bf16.msra.mxu0 %v5094
        %6432 = vmatpush.bf16.msra.mxu0 %v5090
        %6433 = vmatpush.bf16.msra.mxu0 %v5086
        %6434 = vmatpush.bf16.msra.mxu0 %v5082
        %6435 = vmatpush.bf16.msra.mxu0 %v5078
        %6436 = vmatpush.bf16.msra.mxu0 %v5074
        %6437 = vmatpush.bf16.msra.mxu0 %v5070
        %6438 = vmatmul.bf16.gmra.mxu0 %v3034
        %v6439 = vpop.f32.mrf.mxu0
        %v6440 = vadd.f32 %v6427, %v6439
        %v6441 = vpop.f32.mrf.mxu0
        %6442 = vdwg.mxu0
        %v6443 = vmax.f32 %v5816, 0.0
        %v6444 = vmax.f32 %v6024, 0.0
        %v6445 = vmax.f32 %v6232, 0.0
        %v6446 = vmax.f32 %v6440, 0.0
        %v6447 = vld [vmem:[#allocation3] sm:$0xff]
        %v6448 = vpack.c.bf16 %v6443, %v6443
        %v6449 = vpack.c.bf16 %v6444, %v6444
        %v6450 = vpack.c.bf16 %v6445, %v6445
        %v6451 = vpack.c.bf16 %v6446, %v6446
        %v6452 = vld [vmem:[%s383] sm:$0xf]
        %v6453 = vld [vmem:[%s383 + $0x4] sm:$0xf]
        %v6454 = vld [vmem:[%s383 + $0x8] sm:$0xf]
        %v6455 = vld [vmem:[%s383 + $0xc] sm:$0xf]
        %v6456 = vld [vmem:[%s383 + $0x10] sm:$0xf]
        %v6457 = vld [vmem:[%s383 + $0x14] sm:$0xf]
        %v6458 = vld [vmem:[%s383 + $0x18] sm:$0xf]
        %v6459 = vld [vmem:[%s383 + $0x1c] sm:$0xf]
        %v6460 = vld [vmem:[%s383 + $0x20] sm:$0xf]
        %v6461 = vld [vmem:[%s383 + $0x24] sm:$0xf]
        %v6462 = vld [vmem:[%s383 + $0x28] sm:$0xf]
        %v6463 = vld [vmem:[%s383 + $0x2c] sm:$0xf]
        %v6464 = vld [vmem:[%s383 + $0x30] sm:$0xf]
        %v6465 = vld [vmem:[%s383 + $0x34] sm:$0xf]
        %v6466 = vld [vmem:[%s383 + $0x38] sm:$0xf]
        %v6467 = vld [vmem:[%s383 + $0x3c] sm:$0xf]
        %v6468 = vld [vmem:[%s383 + $0x40] sm:$0xf]
        %v6469 = vld [vmem:[%s383 + $0x44] sm:$0xf]
        %v6470 = vld [vmem:[%s383 + $0x48] sm:$0xf]
        %v6471 = vld [vmem:[%s383 + $0x4c] sm:$0xf]
        %v6472 = vld [vmem:[%s383 + $0x50] sm:$0xf]
        %v6473 = vld [vmem:[%s383 + $0x54] sm:$0xf]
        %v6474 = vld [vmem:[%s383 + $0x58] sm:$0xf]
        %v6475 = vld [vmem:[%s383 + $0x5c] sm:$0xf]
        %v6476 = vld [vmem:[%s383 + $0x60] sm:$0xf]
        %v6477 = vld [vmem:[%s383 + $0x64] sm:$0xf]
        %v6478 = vld [vmem:[%s383 + $0x68] sm:$0xf]
        %v6479 = vld [vmem:[%s383 + $0x6c] sm:$0xf]
        %v6480 = vld [vmem:[%s383 + $0x70] sm:$0xf]
        %v6481 = vld [vmem:[%s383 + $0x74] sm:$0xf]
        %v6482 = vld [vmem:[%s383 + $0x78] sm:$0xf]
        %v6483 = vld [vmem:[%s383 + $0x7c] sm:$0xf]
        %v6484 = vld [vmem:[%s383 + $0x80] sm:$0xf]
        %v6485 = vld [vmem:[%s383 + $0x84] sm:$0xf]
        %v6486 = vld [vmem:[%s383 + $0x88] sm:$0xf]
        %v6487 = vld [vmem:[%s383 + $0x8c] sm:$0xf]
        %v6488 = vld [vmem:[%s383 + $0x90] sm:$0xf]
        %v6489 = vld [vmem:[%s383 + $0x94] sm:$0xf]
        %v6490 = vld [vmem:[%s383 + $0x98] sm:$0xf]
        %v6491 = vld [vmem:[%s383 + $0x9c] sm:$0xf]
        %v6492 = vld [vmem:[%s383 + $0xa0] sm:$0xf]
        %v6493 = vld [vmem:[%s383 + $0xa4] sm:$0xf]
        %v6494 = vld [vmem:[%s383 + $0xa8] sm:$0xf]
        %v6495 = vld [vmem:[%s383 + $0xac] sm:$0xf]
        %v6496 = vld [vmem:[%s383 + $0xb0] sm:$0xf]
        %v6497 = vld [vmem:[%s383 + $0xb4] sm:$0xf]
        %v6498 = vld [vmem:[%s383 + $0xb8] sm:$0xf]
        %v6499 = vld [vmem:[%s383 + $0xbc] sm:$0xf]
        %v6500 = vld [vmem:[%s383 + $0xc0] sm:$0xf]
        %v6501 = vld [vmem:[%s383 + $0xc4] sm:$0xf]
        %v6502 = vld [vmem:[%s383 + $0xc8] sm:$0xf]
        %v6503 = vld [vmem:[%s383 + $0xcc] sm:$0xf]
        %v6504 = vld [vmem:[%s383 + $0xd0] sm:$0xf]
        %v6505 = vld [vmem:[%s383 + $0xd4] sm:$0xf]
        %v6506 = vld [vmem:[%s383 + $0xd8] sm:$0xf]
        %v6507 = vld [vmem:[%s383 + $0xdc] sm:$0xf]
        %v6508 = vld [vmem:[%s383 + $0xe0] sm:$0xf]
        %v6509 = vld [vmem:[%s383 + $0xe4] sm:$0xf]
        %v6510 = vld [vmem:[%s383 + $0xe8] sm:$0xf]
        %v6511 = vld [vmem:[%s383 + $0xec] sm:$0xf]
        %v6512 = vld [vmem:[%s383 + $0xf0] sm:$0xf]
        %v6513 = vld [vmem:[%s383 + $0xf4] sm:$0xf]
        %v6514 = vld [vmem:[%s383 + $0xf8] sm:$0xf]
        %v6515 = vld [vmem:[%s383 + $0xfc] sm:$0xf]
        %v6580 = vunpack.c.l.b16 %v6452
        %v6581 = vunpack.c.l.b16 %v6453
        %v6582 = vunpack.c.l.b16 %v6454
        %v6583 = vunpack.c.l.b16 %v6455
        %v6584 = vunpack.c.l.b16 %v6456
        %v6585 = vunpack.c.l.b16 %v6457
        %v6586 = vunpack.c.l.b16 %v6458
        %v6587 = vunpack.c.l.b16 %v6459
        %v6588 = vunpack.c.l.b16 %v6460
        %v6589 = vunpack.c.l.b16 %v6461
        %v6590 = vunpack.c.l.b16 %v6462
        %v6591 = vunpack.c.l.b16 %v6463
        %v6592 = vunpack.c.l.b16 %v6464
        %v6593 = vunpack.c.l.b16 %v6465
        %v6594 = vunpack.c.l.b16 %v6466
        %v6595 = vunpack.c.l.b16 %v6467
        %v6596 = vunpack.c.l.b16 %v6468
        %v6597 = vunpack.c.l.b16 %v6469
        %v6598 = vunpack.c.l.b16 %v6470
        %v6599 = vunpack.c.l.b16 %v6471
        %v6600 = vunpack.c.l.b16 %v6472
        %v6601 = vunpack.c.l.b16 %v6473
        %v6602 = vunpack.c.l.b16 %v6474
        %v6603 = vunpack.c.l.b16 %v6475
        %v6604 = vunpack.c.l.b16 %v6476
        %v6605 = vunpack.c.l.b16 %v6477
        %v6606 = vunpack.c.l.b16 %v6478
        %v6607 = vunpack.c.l.b16 %v6479
        %v6608 = vunpack.c.l.b16 %v6480
        %v6609 = vunpack.c.l.b16 %v6481
        %v6610 = vunpack.c.l.b16 %v6482
        %v6611 = vunpack.c.l.b16 %v6483
        %v6612 = vunpack.c.l.b16 %v6484
        %v6613 = vunpack.c.l.b16 %v6485
        %v6614 = vunpack.c.l.b16 %v6486
        %v6615 = vunpack.c.l.b16 %v6487
        %v6616 = vunpack.c.l.b16 %v6488
        %v6617 = vunpack.c.l.b16 %v6489
        %v6618 = vunpack.c.l.b16 %v6490
        %v6619 = vunpack.c.l.b16 %v6491
        %v6620 = vunpack.c.l.b16 %v6492
        %v6621 = vunpack.c.l.b16 %v6493
        %v6622 = vunpack.c.l.b16 %v6494
        %v6623 = vunpack.c.l.b16 %v6495
        %v6624 = vunpack.c.l.b16 %v6496
        %v6625 = vunpack.c.l.b16 %v6497
        %v6626 = vunpack.c.l.b16 %v6498
        %v6627 = vunpack.c.l.b16 %v6499
        %v6628 = vunpack.c.l.b16 %v6500
        %v6629 = vunpack.c.l.b16 %v6501
        %v6630 = vunpack.c.l.b16 %v6502
        %v6631 = vunpack.c.l.b16 %v6503
        %v6632 = vunpack.c.l.b16 %v6504
        %v6633 = vunpack.c.l.b16 %v6505
        %v6634 = vunpack.c.l.b16 %v6506
        %v6635 = vunpack.c.l.b16 %v6507
        %v6636 = vunpack.c.l.b16 %v6508
        %v6637 = vunpack.c.l.b16 %v6509
        %v6638 = vunpack.c.l.b16 %v6510
        %v6639 = vunpack.c.l.b16 %v6511
        %v6640 = vunpack.c.l.b16 %v6512
        %v6641 = vunpack.c.l.b16 %v6513
        %v6642 = vunpack.c.l.b16 %v6514
        %v6643 = vunpack.c.l.b16 %v6515
        %v6644 = vpack.c.b16 %v6581, %v6580
        %v6645 = vpack.c.b16 %v6583, %v6582
        %v6646 = vpack.c.b16 %v6585, %v6584
        %v6647 = vpack.c.b16 %v6587, %v6586
        %v6648 = vpack.c.b16 %v6589, %v6588
        %v6649 = vpack.c.b16 %v6591, %v6590
        %v6650 = vpack.c.b16 %v6593, %v6592
        %v6651 = vpack.c.b16 %v6595, %v6594
        %v6652 = vpack.c.b16 %v6597, %v6596
        %v6653 = vpack.c.b16 %v6599, %v6598
        %v6654 = vpack.c.b16 %v6601, %v6600
        %v6655 = vpack.c.b16 %v6603, %v6602
        %v6656 = vpack.c.b16 %v6605, %v6604
        %v6657 = vpack.c.b16 %v6607, %v6606
        %v6658 = vpack.c.b16 %v6609, %v6608
        %v6659 = vpack.c.b16 %v6611, %v6610
        %v6660 = vpack.c.b16 %v6613, %v6612
        %v6661 = vpack.c.b16 %v6615, %v6614
        %v6662 = vpack.c.b16 %v6617, %v6616
        %v6663 = vpack.c.b16 %v6619, %v6618
        %v6664 = vpack.c.b16 %v6621, %v6620
        %v6665 = vpack.c.b16 %v6623, %v6622
        %v6666 = vpack.c.b16 %v6625, %v6624
        %v6667 = vpack.c.b16 %v6627, %v6626
        %v6668 = vpack.c.b16 %v6629, %v6628
        %v6669 = vpack.c.b16 %v6631, %v6630
        %v6670 = vpack.c.b16 %v6633, %v6632
        %v6671 = vpack.c.b16 %v6635, %v6634
        %v6672 = vpack.c.b16 %v6637, %v6636
        %v6673 = vpack.c.b16 %v6639, %v6638
        %v6674 = vpack.c.b16 %v6641, %v6640
        %v6675 = vpack.c.b16 %v6643, %v6642
        %6708 = vmatpush.bf16.msra.mxu0 %v6651
        %6709 = vmatpush.bf16.msra.mxu0 %v6650
        %6710 = vmatpush.bf16.msra.mxu0 %v6649
        %6711 = vmatpush.bf16.msra.mxu0 %v6648
        %6712 = vmatpush.bf16.msra.mxu0 %v6647
        %6713 = vmatpush.bf16.msra.mxu0 %v6646
        %6714 = vmatpush.bf16.msra.mxu0 %v6645
        %6715 = vmatpush.bf16.msra.mxu0 %v6644
        %6716 = vmatmul.bf16.gmra.mxu0 %v6448
        %v6717 = vpop.f32.mrf.mxu0
        %v6718 = vadd.f32 0.0, %v6717
        %v6719 = vpop.f32.mrf.mxu0
        %6720 = vdwg.mxu0
        %6721 = vmatpush.bf16.msra.mxu0 %v6659
        %6722 = vmatpush.bf16.msra.mxu0 %v6658
        %6723 = vmatpush.bf16.msra.mxu0 %v6657
        %6724 = vmatpush.bf16.msra.mxu0 %v6656
        %6725 = vmatpush.bf16.msra.mxu0 %v6655
        %6726 = vmatpush.bf16.msra.mxu0 %v6654
        %6727 = vmatpush.bf16.msra.mxu0 %v6653
        %6728 = vmatpush.bf16.msra.mxu0 %v6652
        %6729 = vmatmul.bf16.gmra.mxu0 %v6449
        %v6730 = vpop.f32.mrf.mxu0
        %v6731 = vadd.f32 %v6718, %v6730
        %v6732 = vpop.f32.mrf.mxu0
        %6733 = vdwg.mxu0
        %6734 = vmatpush.bf16.msra.mxu0 %v6667
        %6735 = vmatpush.bf16.msra.mxu0 %v6666
        %6736 = vmatpush.bf16.msra.mxu0 %v6665
        %6737 = vmatpush.bf16.msra.mxu0 %v6664
        %6738 = vmatpush.bf16.msra.mxu0 %v6663
        %6739 = vmatpush.bf16.msra.mxu0 %v6662
        %6740 = vmatpush.bf16.msra.mxu0 %v6661
        %6741 = vmatpush.bf16.msra.mxu0 %v6660
        %6742 = vmatmul.bf16.gmra.mxu0 %v6450
        %v6743 = vpop.f32.mrf.mxu0
        %v6744 = vadd.f32 %v6731, %v6743
        %v6745 = vpop.f32.mrf.mxu0
        %6746 = vdwg.mxu0
        %6747 = vmatpush.bf16.msra.mxu0 %v6675
        %6748 = vmatpush.bf16.msra.mxu0 %v6674
        %6749 = vmatpush.bf16.msra.mxu0 %v6673
        %6750 = vmatpush.bf16.msra.mxu0 %v6672
        %6751 = vmatpush.bf16.msra.mxu0 %v6671
        %6752 = vmatpush.bf16.msra.mxu0 %v6670
        %6753 = vmatpush.bf16.msra.mxu0 %v6669
        %6754 = vmatpush.bf16.msra.mxu0 %v6668
        %6755 = vmatmul.bf16.gmra.mxu0 %v6451
        %v6756 = vpop.f32.mrf.mxu0
        %v6757 = vadd.f32 %v6744, %v6756
        %v6758 = vpop.f32.mrf.mxu0
        %6759 = vdwg.mxu0
        %v6760 = vadd.f32 %v6447, %v6757
        %6761 = vst [vmem:[#allocation3] sm:$0xff] %v6760
        %p6762 = scmp.eq.s32.totalorder %s27, 3
        // Predicated region
        $region81: #{tpu_custom_call.1} parent=47 // pred_check
          %p6763 = pneg %p6762
        $region82: #{tpu_custom_call.1} parent=47 // pred_check_branch
          %6765 = sbr.rel (%p6763) target = $region84
        $region83: #{tpu_custom_call.1} parent=47 // pred_region
          %v6766 = vld [vmem:[#allocation3] sm:$0xff]
          %6767 = vst [vmem:[#allocation16] sm:$0xff] %v6766
        $region84: #{tpu_custom_call.1} parent=47 // pred_fallthru
          _
        // Predicated region
        $region85: #{tpu_custom_call.1} parent=47 // pred_check
          %p6768 = pneg %p202
        $region86: #{tpu_custom_call.1} parent=47 // pred_check_branch
          %6770 = sbr.rel (%p6768) target = $region88
        $region87: #{tpu_custom_call.1} parent=47 // pred_region
          %6772 = vsyncadd [#allocation6], 0
          %s6774 = sshll.u32 [#allocation16], 4
          %s6775 = int_to_ptr.vmem [resolvable:$true] %s6774
          %s6776 = sshll.u32 %s7, 4
          %s6777 = int_to_ptr.hbm [resolvable:$true] %s6776
          %6779 = dma.vmem_to_hbm [thread:$0]  %s6775, 128, %s6777, [#allocation6]
        $region88: #{tpu_custom_call.1} parent=47 // pred_fallthru
          _
        // Predicated region
        $region89: #{tpu_custom_call.1} parent=47 // pred_check
          %p6780 = pneg %p202
        $region90: #{tpu_custom_call.1} parent=47 // pred_check_branch
          %6782 = sbr.rel (%p6780) target = $region92
        $region91: #{tpu_custom_call.1} parent=47 // pred_region
          %6784 = dma.done [#allocation6], 128
        $region92: #{tpu_custom_call.1} parent=47 // pred_fallthru
          _
      $region48: #{tpu_custom_call.1} parent=5 // pred_fallthru
        _
      %p6785 = scmp.le.s32.totalorder 2, %s22
      // Predicated region
      $region93: #{tpu_custom_call.1} parent=5 // pred_check
        %p6786 = pneg %p6785
      $region94: #{tpu_custom_call.1} parent=5 // pred_check_branch
        %6788 = sbr.rel (%p6786) target = $region96
      $region95: #{tpu_custom_call.1} parent=5 // pred_region
        %s6789 = ssub.s32 %s22, 2
      $region96: #{tpu_custom_call.1} parent=5 // pred_fallthru
        _
    $region6: #{tpu_custom_call.1} parent=1 // loop_footer
      %s26 = sadd.s32 1, %s22
    $region7: #{tpu_custom_call.1} parent=1 // loop_footer_branch
      %21 = sbr.rel target = $region3
    $region8: #{tpu_custom_call.1} parent=1 // loop_exit
      _
    %6790 = vsyncpa [#allocation5], 1
    %s6791 = scalar_lea.sflag [#allocation5], 1
    %6792 = vsyncpa %s6791, 1
    %6793 = vsyncpa [#allocation8], 1
    %6794 = vsyncpa [#allocation11], 1
    %s6795 = scalar_lea.sflag [#allocation11], 1
    %6796 = vsyncpa %s6795, 1
    %6797 = vsyncpa [#allocation14], 1
    %s6798 = scalar_lea.sflag [#allocation14], 1
    %6799 = vsyncpa %s6798, 1
    %6800 = vsyncpa [#allocation6], 1
    %s6801 = scalar_lea.sflag [#allocation6], 1
    %6802 = vsyncpa %s6801, 1

</llo_original>
